<compile_context>
chip_gen: v5e
topology: v5e:2x2
jax: 0.10.0
libtpu: 0.0.40
codegen_flags: <defaults>
</compile_context>

<pallas_src>
import jax
import jax.numpy as jnp
from jax import lax
from jax.experimental import pallas as pl
from jax.experimental.pallas import tpu as pltpu

NUM_RELATIONS = 6
HIDDEN_CHANNELS = (256, 256, 256, 256, 256, 256, 256, 256)
HIDDEN_DIMS = (1024, 512)
NODE_EMBEDDING_DIM = 256
NUM_NODE_FEATURES = 13

FEAT_PAD = 128                       # node features zero-padded to a full lane width
C = NODE_EMBEDDING_DIM               # uniform channel width (== every hidden_channels entry)
R = NUM_RELATIONS
L = len(HIDDEN_CHANNELS)
assert all(c == C for c in HIDDEN_CHANNELS)

_VMEM_LIMIT = 48 * 1024 * 1024


# ---------------------------------------------------------------------------
# Kernel 1: fused node-encoder + all L RGCN layers (skip + PReLU + L2 normalize)
#   grid = (L,)  ("arbitrary" — layers are sequential), hidden state carried
#   in the resident output block; per-layer weights pipelined via BlockSpec.
# ---------------------------------------------------------------------------
def rgcn_stack_kernel(alpha_ref,      # SMEM (1,1) f32 — shared PReLU alpha
                      xraw_ref,       # [N, FEAT_PAD] bf16   (resident)
                      encw_ref,       # [FEAT_PAD, C] bf16   (resident)
                      encb_ref,       # [1, C] f32           (resident)
                      a_ref,          # [N, R*N] bf16        (resident, A_cols layout)
                      wcat_ref,       # [1, C, R*C] bf16     (per-layer block)
                      wroot_ref,      # [1, C, C] bf16       (per-layer block)
                      b_ref,          # [1, 1, C] f32        (per-layer block)
                      o_ref):         # [N, C] f32           (carry + final output)
    layer = pl.program_id(0)

    @pl.when(layer == 0)
    def _():
        # Node encoder fused into the first grid step.
        o_ref[...] = (
            jnp.dot(xraw_ref[...], encw_ref[...], preferred_element_type=jnp.float32)
            + encb_ref[...]
        )

    x = o_ref[...]                       # f32 carry (previous layer / encoder output)
    xb = x.astype(jnp.bfloat16)

    # Root transform + bias  (one matmul).
    h = jnp.dot(xb, wroot_ref[0], preferred_element_type=jnp.float32) + b_ref[0]

    # All R relation transforms collapsed into ONE matmul: [N, C] x [C, R*C].
    xw_all = jnp.dot(xb, wcat_ref[0], preferred_element_type=jnp.float32)
    # Restack column blocks into row blocks -> [R*N, C]  (row index = r*N + src).
    xw_rows = jnp.concatenate(
        [xw_all[:, r * C:(r + 1) * C] for r in range(R)], axis=0
    ).astype(jnp.bfloat16)
    # Aggregation over all relations in ONE matmul: [N, R*N] x [R*N, C].
    h = h + jnp.dot(a_ref[...], xw_rows, preferred_element_type=jnp.float32)

    # Skip connection + shared-parameter PReLU + L2 row-normalize (rsqrt form).
    y = h + x
    alpha = alpha_ref[0, 0]
    y = jnp.where(y > 0.0, y, alpha * y)
    sumsq = jnp.sum(y * y, axis=1, keepdims=True)
    o_ref[...] = y * lax.rsqrt(jnp.maximum(sumsq, 1e-24))   # == y / max(||y||, 1e-12)


def rgcn_stack(params, x_pad, a_cols):
    n = x_pad.shape[0]
    return pl.pallas_call(
        rgcn_stack_kernel,
        out_shape=jax.ShapeDtypeStruct((n, C), jnp.float32),
        grid=(L,),
        in_specs=[
            pl.BlockSpec(memory_space=pltpu.MemorySpace.SMEM),         # alpha (scalar)
            pl.BlockSpec((n, FEAT_PAD), lambda l: (0, 0)),             # x_pad   (resident)
            pl.BlockSpec((FEAT_PAD, C), lambda l: (0, 0)),             # enc_w   (resident)
            pl.BlockSpec((1, C), lambda l: (0, 0)),                    # enc_b   (resident)
            pl.BlockSpec((n, R * n), lambda l: (0, 0)),                # A_cols  (resident)
            pl.BlockSpec((1, C, R * C), lambda l: (l, 0, 0)),          # W_rel concat, per layer
            pl.BlockSpec((1, C, C), lambda l: (l, 0, 0)),              # W_root, per layer
            pl.BlockSpec((1, 1, C), lambda l: (l, 0, 0)),              # bias,   per layer
        ],
        out_specs=pl.BlockSpec((n, C), lambda l: (0, 0)),              # resident carry
        compiler_params=pltpu.CompilerParams(
            dimension_semantics=("arbitrary",),
            vmem_limit_bytes=_VMEM_LIMIT,
        ),
    )(params["prelu_alpha"], x_pad, params["enc_w"], params["enc_b"],
      a_cols, params["wcat"], params["wroot"], params["bias"])


# ---------------------------------------------------------------------------
# Kernel 2: fused graph_pooling MLP + global_add_pool + FC head
#   pooled = P @ (relu(h @ W1 + b1) @ W2 + b2)
#   out    = relu( relu(relu(pooled @ F1 + c1) @ F2 + c2) @ Wo + bo )
# ---------------------------------------------------------------------------
def pool_head_kernel(h_ref, p_ref,
                     pw1_ref, pb1_ref, pw2_ref, pb2_ref,
                     fw1_ref, fb1_ref, fw2_ref, fb2_ref,
                     ow_ref, ob_ref, o_ref):
    hb = h_ref[...].astype(jnp.bfloat16)
    g = jnp.dot(hb, pw1_ref[...], preferred_element_type=jnp.float32) + pb1_ref[...]
    g = jnp.maximum(g, 0.0).astype(jnp.bfloat16)
    g = jnp.dot(g, pw2_ref[...], preferred_element_type=jnp.float32) + pb2_ref[...]
    # global_add_pool: one matmul with the one-hot [G, N] assignment matrix.
    g = jnp.dot(p_ref[...], g.astype(jnp.bfloat16), preferred_element_type=jnp.float32)
    # FC head.
    # TODO(synk): nn.Dropout is identity in inference mode; training-mode dropout not implemented.
    g = jnp.dot(g.astype(jnp.bfloat16), fw1_ref[...], preferred_element_type=jnp.float32) + fb1_ref[...]
    g = jnp.maximum(g, 0.0).astype(jnp.bfloat16)
    g = jnp.dot(g, fw2_ref[...], preferred_element_type=jnp.float32) + fb2_ref[...]
    g = jnp.maximum(g, 0.0)
    # Final out layer kept in f32 (tiny [G,512]x[512,1] matvec).
    g = jnp.dot(g, ow_ref[...], preferred_element_type=jnp.float32) + ob_ref[...]
    o_ref[...] = jnp.maximum(g, 0.0)


def pool_head(params, h, pool_mat):
    g = pool_mat.shape[0]
    vmem = lambda: pl.BlockSpec(memory_space=pltpu.MemorySpace.VMEM)
    return pl.pallas_call(
        pool_head_kernel,
        out_shape=jax.ShapeDtypeStruct((g, 1), jnp.float32),
        in_specs=[vmem() for _ in range(12)],
        out_specs=vmem(),
        compiler_params=pltpu.CompilerParams(vmem_limit_bytes=_VMEM_LIMIT),
    )(h, pool_mat,
      params["pool_w1"], params["pool_b1"], params["pool_w2"], params["pool_b2"],
      params["fc1_w"], params["fc1_b"], params["fc2_w"], params["fc2_b"],
      params["out_w"], params["out_b"])


# ---------------------------------------------------------------------------
# Parameter construction (deterministic, synthetic)
# ---------------------------------------------------------------------------
def init_params(key):
    keys = iter(jax.random.split(key, 64))

    def dense(kk, fan_in, fan_out):
        scale = 1.0 / jnp.sqrt(jnp.float32(fan_in))
        return jax.random.uniform(kk, (fan_in, fan_out), jnp.float32, -scale, scale)

    params = {}
    enc_w = dense(next(keys), NUM_NODE_FEATURES, C)
    params["enc_w"] = (
        jnp.zeros((FEAT_PAD, C), jnp.float32).at[:NUM_NODE_FEATURES].set(enc_w)
    ).astype(jnp.bfloat16)
    params["enc_b"] = jnp.zeros((1, C), jnp.float32)
    params["prelu_alpha"] = jnp.full((1, 1), 0.25, jnp.float32)

    wcat_layers, wroot_layers, bias_layers = [], [], []
    for _ in range(L):
        wrel = jax.random.normal(next(keys), (R, C, C), jnp.float32) * 0.05
        wroot = jax.random.normal(next(keys), (C, C), jnp.float32) * 0.05
        # Concatenate relation weights along columns: [C, R*C].
        wcat_layers.append(jnp.concatenate([wrel[r] for r in range(R)], axis=1))
        wroot_layers.append(wroot)
        bias_layers.append(jnp.zeros((1, C), jnp.float32))
    params["wcat"] = jnp.stack(wcat_layers).astype(jnp.bfloat16)    # [L, C, R*C]
    params["wroot"] = jnp.stack(wroot_layers).astype(jnp.bfloat16)  # [L, C, C]
    params["bias"] = jnp.stack(bias_layers)                         # [L, 1, C] f32

    params["pool_w1"] = dense(next(keys), C, C).astype(jnp.bfloat16)
    params["pool_b1"] = jnp.zeros((1, C), jnp.float32)
    params["pool_w2"] = dense(next(keys), C, C).astype(jnp.bfloat16)
    params["pool_b2"] = jnp.zeros((1, C), jnp.float32)

    params["fc1_w"] = dense(next(keys), C, HIDDEN_DIMS[0]).astype(jnp.bfloat16)
    params["fc1_b"] = jnp.zeros((1, HIDDEN_DIMS[0]), jnp.float32)
    params["fc2_w"] = dense(next(keys), HIDDEN_DIMS[0], HIDDEN_DIMS[1]).astype(jnp.bfloat16)
    params["fc2_b"] = jnp.zeros((1, HIDDEN_DIMS[1]), jnp.float32)
    params["out_w"] = dense(next(keys), HIDDEN_DIMS[1], 1)          # f32
    params["out_b"] = jnp.zeros((1, 1), jnp.float32)
    return params


# ---------------------------------------------------------------------------
# Forward pass (glue in plain JAX, hot paths in the two fused Pallas kernels)
# ---------------------------------------------------------------------------
def forward(params, x, edge_index, edge_type, batch, num_graphs):
    n = x.shape[0]
    # Dense relational adjacency in flattened column layout:
    #   A_cols[dst, r*N + src] += 1 per edge (src -> dst) of relation r.
    # Counts are small integers, exactly representable in bf16.
    a_cols = jnp.zeros((n, R * n), jnp.float32)
    a_cols = a_cols.at[edge_index[1], edge_type * n + edge_index[0]].add(1.0)
    a_cols = a_cols.astype(jnp.bfloat16)
    # TODO(synk): for large graphs (N >~ 1k) the resident dense [N, R*N] adjacency should be
    # dst-row tiled per layer (un-fusing the layer grid) to fit v7x's 64 MiB VMEM.

    # Graph pooling assignment matrix (one-hot rows, exact in bf16).
    pool_mat = jnp.zeros((num_graphs, n), jnp.float32)
    pool_mat = pool_mat.at[batch, jnp.arange(n)].set(1.0).astype(jnp.bfloat16)

    # Zero-pad node features to a full 128-lane width for an aligned MXU feed.
    x_pad = (
        jnp.zeros((n, FEAT_PAD), jnp.float32).at[:, : x.shape[1]].set(x)
    ).astype(jnp.bfloat16)

    h = rgcn_stack(params, x_pad, a_cols)       # encoder + 8 fused RGCN layers
    out = pool_head(params, h, pool_mat)        # pooling MLP + add-pool + FC head
    return out


if __name__ == "__main__":
    key = jax.random.PRNGKey(0)
    k_param, k_x, k_ei, k_et = jax.random.split(key, 4)

    N = 64          # nodes
    E = 200         # edges
    G = 2           # graphs in the batch

    params = init_params(k_param)

    x = jax.random.normal(k_x, (N, NUM_NODE_FEATURES), jnp.float32)
    edge_index = jax.random.randint(k_ei, (2, E), 0, N, jnp.int32)
    edge_type = jax.random.randint(k_et, (E,), 0, NUM_RELATIONS, jnp.int32)
    batch = (jnp.arange(N) >= N // 2).astype(jnp.int32)  # first half -> graph 0

    out = forward(params, x, edge_index, edge_type, batch, G)
    out = jax.block_until_ready(out)
    assert out.shape == (G, 1), out.shape
    assert bool(jnp.all(jnp.isfinite(out)))
    print("KERNEL_OK")
</pallas_src>

<mosaic_0001>
module attributes {stable_mosaic.version = 11 : i64} {
  func.func @rgcn_stack_kernel(%arg0: i32, %arg1: memref<1x1xf32, #tpu.memory_space<smem>>, %arg2: memref<64x128xbf16, #tpu.memory_space<vmem>>, %arg3: memref<128x256xbf16, #tpu.memory_space<vmem>>, %arg4: memref<1x256xf32, #tpu.memory_space<vmem>>, %arg5: memref<64x384xbf16, #tpu.memory_space<vmem>>, %arg6: memref<1x256x1536xbf16, #tpu.memory_space<vmem>>, %arg7: memref<1x256x256xbf16, #tpu.memory_space<vmem>>, %arg8: memref<1x1x256xf32, #tpu.memory_space<vmem>>, %arg9: memref<64x256xf32, #tpu.memory_space<vmem>>) attributes {dimension_semantics = [#tpu.dimension_semantics<arbitrary>], iteration_bounds = array<i64: 8>, scalar_prefetch = 0 : i64, scratch_operands = 0 : i64, tpu.core_type = #tpu.core_type<tc>, window_params = [{transform_indices = @transform_0, window_bounds = array<i64: 1, 1>}, {pipeline_mode = #tpu.pipeline_mode<synchronous>, transform_indices = @transform_1, window_bounds = array<i64: 64, 128>}, {pipeline_mode = #tpu.pipeline_mode<synchronous>, transform_indices = @transform_2, window_bounds = array<i64: 128, 256>}, {pipeline_mode = #tpu.pipeline_mode<synchronous>, transform_indices = @transform_3, window_bounds = array<i64: 1, 256>}, {pipeline_mode = #tpu.pipeline_mode<synchronous>, transform_indices = @transform_4, window_bounds = array<i64: 64, 384>}, {transform_indices = @transform_5, window_bounds = array<i64: 1, 256, 1536>}, {transform_indices = @transform_6, window_bounds = array<i64: 1, 256, 256>}, {transform_indices = @transform_7, window_bounds = array<i64: 1, 1, 256>}, {pipeline_mode = #tpu.pipeline_mode<synchronous>, transform_indices = @transform_8, window_bounds = array<i64: 64, 256>}]} {
    %c0_i32 = arith.constant 0 : i32
    %0 = arith.cmpi eq, %arg0, %c0_i32 : i32
    %1 = arith.extui %0 : i1 to i32
    %c0_i32_0 = arith.constant 0 : i32
    %2 = arith.cmpi ne, %1, %c0_i32_0 : i32
    scf.if %2 {
      %c0_22 = arith.constant 0 : index
      %c0_23 = arith.constant 0 : index
      %42 = vector.load %arg2[%c0_22, %c0_23] : memref<64x128xbf16, #tpu.memory_space<vmem>>, vector<64x128xbf16>
      %c0_24 = arith.constant 0 : index
      %c0_25 = arith.constant 0 : index
      %43 = vector.load %arg3[%c0_24, %c0_25] : memref<128x256xbf16, #tpu.memory_space<vmem>>, vector<128x256xbf16>
      %cst_26 = arith.constant dense<0.000000e+00> : vector<64x256xf32>
      %44 = tpu.matmul %42, %43, %cst_26 {dimension_numbers = #tpu.dot_dimension_numbers<[1], [0], [0], [1], [0, 0, 1, 1], [], []>} : vector<64x128xbf16>, vector<128x256xbf16>, vector<64x256xf32> -> vector<64x256xf32>
      %c0_27 = arith.constant 0 : index
      %c0_28 = arith.constant 0 : index
      %45 = vector.load %arg4[%c0_27, %c0_28] : memref<1x256xf32, #tpu.memory_space<vmem>>, vector<1x256xf32>
      %46 = vector.broadcast %45 : vector<1x256xf32> to vector<64x256xf32>
      %47 = arith.addf %44, %46 : vector<64x256xf32>
      %c0_29 = arith.constant 0 : index
      %c0_30 = arith.constant 0 : index
      %48 = vector.load %arg9[%c0_29, %c0_30] : memref<64x256xf32, #tpu.memory_space<vmem>>, vector<64x256xf32>
      tpu.vector_store %arg9[%c0_29, %c0_30], %47 {strides = array<i32>} : memref<64x256xf32, #tpu.memory_space<vmem>>, vector<64x256xf32>,
    } else {
    }
    %c0 = arith.constant 0 : index
    %c0_1 = arith.constant 0 : index
    %3 = vector.load %arg9[%c0, %c0_1] : memref<64x256xf32, #tpu.memory_space<vmem>>, vector<64x256xf32>
    %4 = arith.truncf %3 : vector<64x256xf32> to vector<64x256xbf16>
    %c0_2 = arith.constant 0 : index
    %c0_3 = arith.constant 0 : index
    %c0_4 = arith.constant 0 : index
    %5 = vector.load %arg7[%c0_2, %c0_3, %c0_4] : memref<1x256x256xbf16, #tpu.memory_space<vmem>>, vector<1x256x256xbf16>
    %6 = vector.shape_cast %5 : vector<1x256x256xbf16> to vector<256x256xbf16>
    %cst = arith.constant dense<0.000000e+00> : vector<64x256xf32>
    %7 = tpu.matmul %4, %6, %cst {dimension_numbers = #tpu.dot_dimension_numbers<[1], [0], [0], [1], [0, 0, 1, 1], [], []>} : vector<64x256xbf16>, vector<256x256xbf16>, vector<64x256xf32> -> vector<64x256xf32>
    %c0_5 = arith.constant 0 : index
    %c0_6 = arith.constant 0 : index
    %c0_7 = arith.constant 0 : index
    %8 = vector.load %arg8[%c0_5, %c0_6, %c0_7] : memref<1x1x256xf32, #tpu.memory_space<vmem>>, vector<1x1x256xf32>
    %9 = vector.shape_cast %8 : vector<1x1x256xf32> to vector<1x256xf32>
    %10 = vector.broadcast %9 : vector<1x256xf32> to vector<64x256xf32>
    %11 = arith.addf %7, %10 : vector<64x256xf32>
    %c0_8 = arith.constant 0 : index
    %c0_9 = arith.constant 0 : index
    %c0_10 = arith.constant 0 : index
    %12 = vector.load %arg6[%c0_8, %c0_9, %c0_10] : memref<1x256x1536xbf16, #tpu.memory_space<vmem>>, vector<1x256x1536xbf16>
    %13 = vector.shape_cast %12 : vector<1x256x1536xbf16> to vector<256x1536xbf16>
    %cst_11 = arith.constant dense<0.000000e+00> : vector<64x1536xf32>
    %14 = tpu.matmul %4, %13, %cst_11 {dimension_numbers = #tpu.dot_dimension_numbers<[1], [0], [0], [1], [0, 0, 1, 1], [], []>} : vector<64x256xbf16>, vector<256x1536xbf16>, vector<64x1536xf32> -> vector<64x1536xf32>
    %15 = vector.extract_strided_slice %14 {offsets = [0, 0], sizes = [64, 256], strides = [1, 1]} : vector<64x1536xf32> to vector<64x256xf32>
    %16 = vector.extract_strided_slice %14 {offsets = [0, 256], sizes = [64, 256], strides = [1, 1]} : vector<64x1536xf32> to vector<64x256xf32>
    %17 = vector.extract_strided_slice %14 {offsets = [0, 512], sizes = [64, 256], strides = [1, 1]} : vector<64x1536xf32> to vector<64x256xf32>
    %18 = vector.extract_strided_slice %14 {offsets = [0, 768], sizes = [64, 256], strides = [1, 1]} : vector<64x1536xf32> to vector<64x256xf32>
    %19 = vector.extract_strided_slice %14 {offsets = [0, 1024], sizes = [64, 256], strides = [1, 1]} : vector<64x1536xf32> to vector<64x256xf32>
    %20 = vector.extract_strided_slice %14 {offsets = [0, 1280], sizes = [64, 256], strides = [1, 1]} : vector<64x1536xf32> to vector<64x256xf32>
    %21 = tpu.concatenate %15, %16, %17, %18, %19, %20 in 0 : vector<64x256xf32>, vector<64x256xf32>, vector<64x256xf32>, vector<64x256xf32>, vector<64x256xf32>, vector<64x256xf32> -> vector<384x256xf32>
    %22 = arith.truncf %21 : vector<384x256xf32> to vector<384x256xbf16>
    %c0_12 = arith.constant 0 : index
    %c0_13 = arith.constant 0 : index
    %23 = vector.load %arg5[%c0_12, %c0_13] : memref<64x384xbf16, #tpu.memory_space<vmem>>, vector<64x384xbf16>
    %cst_14 = arith.constant dense<0.000000e+00> : vector<64x256xf32>
    %24 = tpu.matmul %23, %22, %cst_14 {dimension_numbers = #tpu.dot_dimension_numbers<[1], [0], [0], [1], [0, 0, 1, 1], [], []>} : vector<64x384xbf16>, vector<384x256xbf16>, vector<64x256xf32> -> vector<64x256xf32>
    %25 = arith.addf %11, %24 : vector<64x256xf32>
    %26 = arith.addf %25, %3 : vector<64x256xf32>
    %c0_15 = arith.constant 0 : index
    %c0_16 = arith.constant 0 : index
    %27 = memref.load %arg1[%c0_15, %c0_16] : memref<1x1xf32, #tpu.memory_space<smem>>
    %cst_17 = arith.constant 0.000000e+00 : f32
    %28 = vector.broadcast %cst_17 : f32 to vector<64x256xf32>
    %29 = arith.cmpf ogt, %26, %28 : vector<64x256xf32>
    %30 = vector.broadcast %27 : f32 to vector<64x256xf32>
    %31 = arith.mulf %30, %26 : vector<64x256xf32>
    %32 = arith.select %29, %26, %31 : vector<64x256xi1>, vector<64x256xf32>
    %33 = arith.mulf %32, %32 : vector<64x256xf32>
    %cst_18 = arith.constant dense<0.000000e+00> : vector<64xf32>
    %34 = vector.multi_reduction <add>, %33, %cst_18 [1] : vector<64x256xf32> to vector<64xf32>
    %35 = vector.shape_cast %34 : vector<64xf32> to vector<64x1xf32>
    %cst_19 = arith.constant 1.000000e-24 : f32
    %36 = vector.broadcast %cst_19 : f32 to vector<64x1xf32>
    %37 = arith.maximumf %35, %36 : vector<64x1xf32>
    %38 = math.rsqrt %37 : vector<64x1xf32>
    %39 = vector.broadcast %38 : vector<64x1xf32> to vector<64x256xf32>
    %40 = arith.mulf %32, %39 : vector<64x256xf32>
    %c0_20 = arith.constant 0 : index
    %c0_21 = arith.constant 0 : index
    %41 = vector.load %arg9[%c0_20, %c0_21] : memref<64x256xf32, #tpu.memory_space<vmem>>, vector<64x256xf32>
    tpu.vector_store %arg9[%c0_20, %c0_21], %40 {strides = array<i32>} : memref<64x256xf32, #tpu.memory_space<vmem>>, vector<64x256xf32>,
    return
  }
  func.func @transform_0(%arg0: i32) -> (i32, i32) {
    %c0_i32 = arith.constant 0 : i32
    %c0_i32_0 = arith.constant 0 : i32
    %c0_i32_1 = arith.constant 0 : i32
    return %c0_i32, %c0_i32_0 : i32, i32
  }
  func.func @transform_1(%arg0: i32) -> (i32, i32) {
    %c0_i32 = arith.constant 0 : i32
    %c0_i32_0 = arith.constant 0 : i32
    %c0_i32_1 = arith.constant 0 : i32
    return %c0_i32, %c0_i32_0 : i32, i32
  }
  func.func @transform_2(%arg0: i32) -> (i32, i32) {
    %c0_i32 = arith.constant 0 : i32
    %c0_i32_0 = arith.constant 0 : i32
    %c0_i32_1 = arith.constant 0 : i32
    return %c0_i32, %c0_i32_0 : i32, i32
  }
  func.func @transform_3(%arg0: i32) -> (i32, i32) {
    %c0_i32 = arith.constant 0 : i32
    %c0_i32_0 = arith.constant 0 : i32
    %c0_i32_1 = arith.constant 0 : i32
    return %c0_i32, %c0_i32_0 : i32, i32
  }
  func.func @transform_4(%arg0: i32) -> (i32, i32) {
    %c0_i32 = arith.constant 0 : i32
    %c0_i32_0 = arith.constant 0 : i32
    %c0_i32_1 = arith.constant 0 : i32
    return %c0_i32, %c0_i32_0 : i32, i32
  }
  func.func @transform_5(%arg0: i32) -> (i32, i32, i32) {
    %c0_i32 = arith.constant 0 : i32
    %c0_i32_0 = arith.constant 0 : i32
    %c0_i32_1 = arith.constant 0 : i32
    return %arg0, %c0_i32, %c0_i32_0 : i32, i32, i32
  }
  func.func @transform_6(%arg0: i32) -> (i32, i32, i32) {
    %c0_i32 = arith.constant 0 : i32
    %c0_i32_0 = arith.constant 0 : i32
    %c0_i32_1 = arith.constant 0 : i32
    return %arg0, %c0_i32, %c0_i32_0 : i32, i32, i32
  }
  func.func @transform_7(%arg0: i32) -> (i32, i32, i32) {
    %c0_i32 = arith.constant 0 : i32
    %c0_i32_0 = arith.constant 0 : i32
    %c0_i32_1 = arith.constant 0 : i32
    return %arg0, %c0_i32, %c0_i32_0 : i32, i32, i32
  }
  func.func @transform_8(%arg0: i32) -> (i32, i32) {
    %c0_i32 = arith.constant 0 : i32
    %c0_i32_0 = arith.constant 0 : i32
    %c0_i32_1 = arith.constant 0 : i32
    return %c0_i32, %c0_i32_0 : i32, i32
  }
}

</mosaic_0001>

<llo_original>
// kernel: tpu_custom_call.1
$region0: #{tpu_custom_call.1}
  #allocation0 [shape = 'u32[]', space=smem, size = 0x4, offset = 0x4, fixed_abs, tag = 'smem constant byte address 0x4 - core index']
  #allocation1 [shape = 'u32[72,128]{1,0:T(1,128)}', space=vmem, size = 0x9000, scoped, tag = 'internal scratch']
  #allocation2 [shape = 'f32[1,1]{1,0:T(1,128)S(6)}', space=smem, size = 0x200, scoped, tag = 'scoped memory for tpu_custom_call.1']
  %s0 = inlined_call_operand.<no memory space> [shape: f32[1,1], index: 0, kind: input, shape index: {}]
  %s1 = inlined_call_operand.hbm [shape: bf16[64,128], index: 1, kind: input, shape index: {}]
  %s2 = inlined_call_operand.hbm [shape: bf16[128,256], index: 2, kind: input, shape index: {}]
  %s3 = inlined_call_operand.hbm [shape: f32[1,256], index: 3, kind: input, shape index: {}]
  %s4 = inlined_call_operand.hbm [shape: bf16[64,384], index: 4, kind: input, shape index: {}]
  %s5 = inlined_call_operand.hbm [shape: bf16[8,256,1536], index: 5, kind: input, shape index: {}]
  %s6 = inlined_call_operand.hbm [shape: bf16[8,256,256], index: 6, kind: input, shape index: {}]
  %s7 = inlined_call_operand.hbm [shape: f32[8,1,256], index: 7, kind: input, shape index: {}]
  %s8 = inlined_call_operand.hbm [shape: f32[64,256], index: 8, kind: output, shape index: {}]
  %s9 = sld [smem:[#allocation0]]
  $region97: #{tpu_custom_call.1} parent=0
    _
  %s11 = ssub.s32 1, %s9
  %s12 = scalar_select 0, %s11, %s9
  %13 = sst [smem:[#allocation2]] %s0
  $region1: #{tpu_custom_call.1} parent=0
    #allocation3 [shape = 'u8[16384]{0}', space=vmem, size = 0x4000, scoped, tag = 'input window, operand 1, single buffered']
    #allocation4 [shape = 's32[2]{0}', space=sflag, size = 0x8, scoped, tag = 'scoped memory for tpu_custom_call.1']
    #allocation5 [shape = 's32[2]{0}', space=sflag, size = 0x8, scoped, tag = 'scoped memory for tpu_custom_call.1']
    #allocation6 [shape = 'u8[65536]{0}', space=vmem, size = 0x10000, scoped, tag = 'input window, operand 2, single buffered']
    #allocation7 [shape = 's32[1]{0}', space=sflag, size = 0x4, scoped, tag = 'scoped memory for tpu_custom_call.1']
    #allocation8 [shape = 'u8[1024]{0}', space=vmem, size = 0x400, scoped, tag = 'input window, operand 3, single buffered']
    #allocation9 [shape = 'u8[49152]{0}', space=vmem, size = 0xc000, scoped, tag = 'input window, operand 4, single buffered']
    #allocation10 [shape = 's32[1]{0}', space=sflag, size = 0x4, scoped, tag = 'scoped memory for tpu_custom_call.1']
    #allocation11 [shape = 'u8[1572864]{0}', space=vmem, size = 0x180000, scoped, tag = 'input window, operand 5']
    #allocation12 [shape = 'u8[262144]{0}', space=vmem, size = 0x40000, scoped, tag = 'input window, operand 6']
    #allocation13 [shape = 'u8[2048]{0}', space=vmem, size = 0x800, scoped, tag = 'input window, operand 7']
    #allocation14 [shape = 'u8[65536]{0}', space=vmem, size = 0x10000, scoped, tag = 'output window, operand 0, single buffered']
    %14 = vsyncpa [#allocation4], 0
    %15 = vsyncpa [#allocation7], 0
    %16 = vsyncpa [#allocation10], 0
    %17 = vsyncpa [#allocation5], 0
    loop: start=0, step=1, limit=10
    $region2: #{tpu_custom_call.1} parent=1 // loop_pre_header
      _
    $region3: #{tpu_custom_call.1} parent=1 // loop_header
      %s19 = sphi 0, %s23
      %p20 = scmp.ge.s32.totalorder %s19, 10
      %s27 = sphi 0, %s27
      %s29 = sphi 0, %s27
      %s30 = sphi 0, %s29
      %s44 = sphi 0, %s30
      %s48 = sphi 0, %s48
      %s50 = sphi 0, %s48
      %s51 = sphi 0, %s50
      %s65 = sphi 0, %s51
      %s69 = sphi 0, %s69
      %s71 = sphi 0, %s69
      %s72 = sphi 0, %s71
      %s86 = sphi 0, %s72
      %s90 = sphi 0, %s90
      %s92 = sphi 0, %s90
      %s93 = sphi 0, %s92
      %s107 = sphi 0, %s93
      %s111 = sphi 0, %s111
      %s113 = sphi 0, %s111
      %s114 = sphi 0, %s113
      %s128 = sphi 0, %s114
      %s134 = sphi 0, %s136
      %s137 = sphi 0, %s134
      %s138 = sphi 0, %s137
      %s154 = sphi 0, %s138
      %s160 = sphi 0, %s162
      %s163 = sphi 0, %s160
      %s164 = sphi 0, %s163
      %s180 = sphi 0, %s164
      %s186 = sphi 0, %s188
      %s189 = sphi 0, %s186
      %s190 = sphi 0, %s189
      %s206 = sphi 0, %s190
      %s210 = sphi 0, %s210
      %s212 = sphi 0, %s210
      %s213 = sphi 0, %s212
      %s227 = sphi 0, %s213
    $region4: #{tpu_custom_call.1} parent=1 // loop_header_branch
      %22 = sbr.rel (%p20) target = $region8
    $region5: #{tpu_custom_call.1} parent=1 // loop_body
      %s24 = ssub.s32 %s19, 1
      %s25 = ssub.s32 %s19, 2
      %s26 = sadd.s32 %s19, 1
      %s28 = sadd.s32 %s27, 1
      %p31 = scmp.eq.s32.totalorder %s19, 7
      %p32 = scmp.ne.s32.totalorder %s27, %s29
      %p33 = scmp.eq.s32.totalorder %s19, 0
      %p34 = por %p32, %p33
      %p35 = scmp.ne.s32.totalorder %s27, %s29
      %p36 = scmp.eq.s32.totalorder %s24, 7
      %p37 = por %p35, %p36
      %p38 = scmp.ne.s32.totalorder %s29, %s30
      %p39 = scmp.eq.s32.totalorder %s24, 0
      %p40 = por %p38, %p39
      %p41 = scmp.ne.s32.totalorder %s29, %s30
      %p42 = scmp.eq.s32.totalorder %s25, 7
      %p43 = por %p41, %p42
      %p45 = scmp.ne.s32.totalorder %s30, %s44
      %p46 = scmp.eq.s32.totalorder %s25, 0
      %p47 = por %p45, %p46
      %s49 = sadd.s32 %s48, 1
      %p52 = scmp.eq.s32.totalorder %s19, 7
      %p53 = scmp.ne.s32.totalorder %s48, %s50
      %p54 = scmp.eq.s32.totalorder %s19, 0
      %p55 = por %p53, %p54
      %p56 = scmp.ne.s32.totalorder %s48, %s50
      %p57 = scmp.eq.s32.totalorder %s24, 7
      %p58 = por %p56, %p57
      %p59 = scmp.ne.s32.totalorder %s50, %s51
      %p60 = scmp.eq.s32.totalorder %s24, 0
      %p61 = por %p59, %p60
      %p62 = scmp.ne.s32.totalorder %s50, %s51
      %p63 = scmp.eq.s32.totalorder %s25, 7
      %p64 = por %p62, %p63
      %p66 = scmp.ne.s32.totalorder %s51, %s65
      %p67 = scmp.eq.s32.totalorder %s25, 0
      %p68 = por %p66, %p67
      %s70 = sadd.s32 %s69, 1
      %p73 = scmp.eq.s32.totalorder %s19, 7
      %p74 = scmp.ne.s32.totalorder %s69, %s71
      %p75 = scmp.eq.s32.totalorder %s19, 0
      %p76 = por %p74, %p75
      %p77 = scmp.ne.s32.totalorder %s69, %s71
      %p78 = scmp.eq.s32.totalorder %s24, 7
      %p79 = por %p77, %p78
      %p80 = scmp.ne.s32.totalorder %s71, %s72
      %p81 = scmp.eq.s32.totalorder %s24, 0
      %p82 = por %p80, %p81
      %p83 = scmp.ne.s32.totalorder %s71, %s72
      %p84 = scmp.eq.s32.totalorder %s25, 7
      %p85 = por %p83, %p84
      %p87 = scmp.ne.s32.totalorder %s72, %s86
      %p88 = scmp.eq.s32.totalorder %s25, 0
      %p89 = por %p87, %p88
      %s91 = sadd.s32 %s90, 1
      %p94 = scmp.eq.s32.totalorder %s19, 7
      %p95 = scmp.ne.s32.totalorder %s90, %s92
      %p96 = scmp.eq.s32.totalorder %s19, 0
      %p97 = por %p95, %p96
      %p98 = scmp.ne.s32.totalorder %s90, %s92
      %p99 = scmp.eq.s32.totalorder %s24, 7
      %p100 = por %p98, %p99
      %p101 = scmp.ne.s32.totalorder %s92, %s93
      %p102 = scmp.eq.s32.totalorder %s24, 0
      %p103 = por %p101, %p102
      %p104 = scmp.ne.s32.totalorder %s92, %s93
      %p105 = scmp.eq.s32.totalorder %s25, 7
      %p106 = por %p104, %p105
      %p108 = scmp.ne.s32.totalorder %s93, %s107
      %p109 = scmp.eq.s32.totalorder %s25, 0
      %p110 = por %p108, %p109
      %s112 = sadd.s32 %s111, 1
      %p115 = scmp.eq.s32.totalorder %s19, 7
      %p116 = scmp.ne.s32.totalorder %s111, %s113
      %p117 = scmp.eq.s32.totalorder %s19, 0
      %p118 = por %p116, %p117
      %p119 = scmp.ne.s32.totalorder %s111, %s113
      %p120 = scmp.eq.s32.totalorder %s24, 7
      %p121 = por %p119, %p120
      %p122 = scmp.ne.s32.totalorder %s113, %s114
      %p123 = scmp.eq.s32.totalorder %s24, 0
      %p124 = por %p122, %p123
      %p125 = scmp.ne.s32.totalorder %s113, %s114
      %p126 = scmp.eq.s32.totalorder %s25, 7
      %p127 = por %p125, %p126
      %p129 = scmp.ne.s32.totalorder %s114, %s128
      %p130 = scmp.eq.s32.totalorder %s25, 0
      %p131 = por %p129, %p130
      %s132 = ssub.s32 %s19, %s26
      %p133 = scmp.eq.s32.totalorder %s132, 0
      %s135 = sadd.s32 %s134, 1
      %s136 = scalar_select %p133, %s134, %s135
      %p139 = pneg %p133
      %p140 = scmp.eq.s32.totalorder %s19, 7
      %p141 = por %p139, %p140
      %p142 = scmp.ne.s32.totalorder %s134, %s137
      %p143 = scmp.eq.s32.totalorder %s19, 0
      %p144 = por %p142, %p143
      %p145 = scmp.ne.s32.totalorder %s134, %s137
      %p146 = scmp.eq.s32.totalorder %s24, 7
      %p147 = por %p145, %p146
      %p148 = scmp.ne.s32.totalorder %s137, %s138
      %p149 = scmp.eq.s32.totalorder %s24, 0
      %p150 = por %p148, %p149
      %p151 = scmp.ne.s32.totalorder %s137, %s138
      %p152 = scmp.eq.s32.totalorder %s25, 7
      %p153 = por %p151, %p152
      %p155 = scmp.ne.s32.totalorder %s138, %s154
      %p156 = scmp.eq.s32.totalorder %s25, 0
      %p157 = por %p155, %p156
      %s158 = ssub.s32 %s19, %s26
      %p159 = scmp.eq.s32.totalorder %s158, 0
      %s161 = sadd.s32 %s160, 1
      %s162 = scalar_select %p159, %s160, %s161
      %p165 = pneg %p159
      %p166 = scmp.eq.s32.totalorder %s19, 7
      %p167 = por %p165, %p166
      %p168 = scmp.ne.s32.totalorder %s160, %s163
      %p169 = scmp.eq.s32.totalorder %s19, 0
      %p170 = por %p168, %p169
      %p171 = scmp.ne.s32.totalorder %s160, %s163
      %p172 = scmp.eq.s32.totalorder %s24, 7
      %p173 = por %p171, %p172
      %p174 = scmp.ne.s32.totalorder %s163, %s164
      %p175 = scmp.eq.s32.totalorder %s24, 0
      %p176 = por %p174, %p175
      %p177 = scmp.ne.s32.totalorder %s163, %s164
      %p178 = scmp.eq.s32.totalorder %s25, 7
      %p179 = por %p177, %p178
      %p181 = scmp.ne.s32.totalorder %s164, %s180
      %p182 = scmp.eq.s32.totalorder %s25, 0
      %p183 = por %p181, %p182
      %s184 = ssub.s32 %s19, %s26
      %p185 = scmp.eq.s32.totalorder %s184, 0
      %s187 = sadd.s32 %s186, 1
      %s188 = scalar_select %p185, %s186, %s187
      %p191 = pneg %p185
      %p192 = scmp.eq.s32.totalorder %s19, 7
      %p193 = por %p191, %p192
      %p194 = scmp.ne.s32.totalorder %s186, %s189
      %p195 = scmp.eq.s32.totalorder %s19, 0
      %p196 = por %p194, %p195
      %p197 = scmp.ne.s32.totalorder %s186, %s189
      %p198 = scmp.eq.s32.totalorder %s24, 7
      %p199 = por %p197, %p198
      %p200 = scmp.ne.s32.totalorder %s189, %s190
      %p201 = scmp.eq.s32.totalorder %s24, 0
      %p202 = por %p200, %p201
      %p203 = scmp.ne.s32.totalorder %s189, %s190
      %p204 = scmp.eq.s32.totalorder %s25, 7
      %p205 = por %p203, %p204
      %p207 = scmp.ne.s32.totalorder %s190, %s206
      %p208 = scmp.eq.s32.totalorder %s25, 0
      %p209 = por %p207, %p208
      %s211 = sadd.s32 %s210, 1
      %p214 = scmp.eq.s32.totalorder %s19, 7
      %p215 = scmp.ne.s32.totalorder %s210, %s212
      %p216 = scmp.eq.s32.totalorder %s19, 0
      %p217 = por %p215, %p216
      %p218 = scmp.ne.s32.totalorder %s210, %s212
      %p219 = scmp.eq.s32.totalorder %s24, 7
      %p220 = por %p218, %p219
      %p221 = scmp.ne.s32.totalorder %s212, %s213
      %p222 = scmp.eq.s32.totalorder %s24, 0
      %p223 = por %p221, %p222
      %p224 = scmp.ne.s32.totalorder %s212, %s213
      %p225 = scmp.eq.s32.totalorder %s25, 7
      %p226 = por %p224, %p225
      %p228 = scmp.ne.s32.totalorder %s213, %s227
      %p229 = scmp.eq.s32.totalorder %s25, 0
      %p230 = por %p228, %p229
      %p231 = scmp.le.s32.totalorder 1, %s19
      %p232 = scmp.lt.s32.totalorder %s19, 9
      %p233 = pnand %p231, %p232
      %p234 = pneg %p233
      // Predicated region
      $region9: #{tpu_custom_call.1} parent=5 // pred_check
        _
      $region10: #{tpu_custom_call.1} parent=5 // pred_check_branch
        %236 = sbr.rel (%p233) target = $region12
      $region11: #{tpu_custom_call.1} parent=5 // pred_region
        %s237 = ssub.s32 %s19, 1
        // Predicated region
        $region13: #{tpu_custom_call.1} parent=11 // pred_check
          %p238 = pneg %p40
        $region14: #{tpu_custom_call.1} parent=11 // pred_check_branch
          %240 = sbr.rel (%p238) target = $region16
        $region15: #{tpu_custom_call.1} parent=11 // pred_region
          _
        $region16: #{tpu_custom_call.1} parent=11 // pred_fallthru
          _
        // Predicated region
        $region17: #{tpu_custom_call.1} parent=11 // pred_check
          %p241 = pneg %p61
        $region18: #{tpu_custom_call.1} parent=11 // pred_check_branch
          %243 = sbr.rel (%p241) target = $region20
        $region19: #{tpu_custom_call.1} parent=11 // pred_region
          %245 = vsyncadd [#allocation4], 0
          %s246 = sshll.u32 %s1, 4
          %s247 = int_to_ptr.hbm [resolvable:$true] %s246
          %s248 = sshll.u32 [#allocation3], 4
          %s249 = int_to_ptr.vmem [resolvable:$true] %s248
          %254 = dma.hbm_to_vmem [thread:$0]  %s247, 512, %s249, [#allocation4], 64, 64, 4
        $region20: #{tpu_custom_call.1} parent=11 // pred_fallthru
          _
        // Predicated region
        $region21: #{tpu_custom_call.1} parent=11 // pred_check
          %p255 = pneg %p82
        $region22: #{tpu_custom_call.1} parent=11 // pred_check_branch
          %257 = sbr.rel (%p255) target = $region24
        $region23: #{tpu_custom_call.1} parent=11 // pred_region
          %259 = vsyncadd [#allocation7], 0
          %s260 = sshll.u32 %s2, 4
          %s261 = int_to_ptr.hbm [resolvable:$true] %s260
          %s262 = sshll.u32 [#allocation6], 4
          %s263 = int_to_ptr.vmem [resolvable:$true] %s262
          %268 = dma.hbm_to_vmem [thread:$0]  %s261, 2048, %s263, [#allocation7], 128, 128, 8
        $region24: #{tpu_custom_call.1} parent=11 // pred_fallthru
          _
        // Predicated region
        $region25: #{tpu_custom_call.1} parent=11 // pred_check
          %p269 = pneg %p103
        $region26: #{tpu_custom_call.1} parent=11 // pred_check_branch
          %271 = sbr.rel (%p269) target = $region28
        $region27: #{tpu_custom_call.1} parent=11 // pred_region
          %273 = vsyncadd [#allocation7], 0
          %s275 = sshll.u32 %s3, 4
          %s276 = int_to_ptr.hbm [resolvable:$true] %s275
          %s277 = sshll.u32 [#allocation8], 4
          %s278 = int_to_ptr.vmem [resolvable:$true] %s277
          %280 = dma.hbm_to_vmem [thread:$0]  %s276, 32, %s278, [#allocation7]
        $region28: #{tpu_custom_call.1} parent=11 // pred_fallthru
          _
        // Predicated region
        $region29: #{tpu_custom_call.1} parent=11 // pred_check
          %p281 = pneg %p124
        $region30: #{tpu_custom_call.1} parent=11 // pred_check_branch
          %283 = sbr.rel (%p281) target = $region32
        $region31: #{tpu_custom_call.1} parent=11 // pred_region
          %285 = vsyncadd [#allocation10], 0
          %s286 = sshll.u32 %s4, 4
          %s287 = int_to_ptr.hbm [resolvable:$true] %s286
          %s288 = sshll.u32 [#allocation9], 4
          %s289 = int_to_ptr.vmem [resolvable:$true] %s288
          %294 = dma.hbm_to_vmem [thread:$0]  %s287, 1536, %s289, [#allocation10], 192, 192, 12
        $region32: #{tpu_custom_call.1} parent=11 // pred_fallthru
          _
      $region12: #{tpu_custom_call.1} parent=5 // pred_fallthru
        _
      %p295 = scmp.lt.s32.totalorder %s19, 8
      // Predicated region
      $region33: #{tpu_custom_call.1} parent=5 // pred_check
        %p296 = pneg %p295
      $region34: #{tpu_custom_call.1} parent=5 // pred_check_branch
        %298 = sbr.rel (%p296) target = $region36
      $region35: #{tpu_custom_call.1} parent=5 // pred_region
        // Predicated region
        $region37: #{tpu_custom_call.1} parent=35 // pred_check
          %p299 = pneg %p144
        $region38: #{tpu_custom_call.1} parent=35 // pred_check_branch
          %301 = sbr.rel (%p299) target = $region40
        $region39: #{tpu_custom_call.1} parent=35 // pred_region
          %s302 = sand.u32 %s19, 1
          %s303 = scalar_lea.sflag [#allocation4], %s302
          %s304 = sand.u32 %s134, 1
          %s305 = smul.addr %s304, 1536
          %s306 = scalar_lea.vmem [#allocation11], %s305
          %308 = vsyncadd %s303, 0
          %s309 = smul.addr %s19, 384
          %s310 = smul.addr %s309, 4
          %s311 = scalar_lea.hbm %s5, %s310
          %s312 = sshll.u32 %s311, 4
          %s313 = int_to_ptr.hbm [resolvable:$true] %s312
          %s314 = sshll.u32 %s306, 4
          %s315 = int_to_ptr.vmem [resolvable:$true] %s314
          %320 = dma.hbm_to_vmem [thread:$0]  %s313, 24576, %s315, %s303, 768, 768, 48
        $region40: #{tpu_custom_call.1} parent=35 // pred_fallthru
          _
        // Predicated region
        $region41: #{tpu_custom_call.1} parent=35 // pred_check
          %p321 = pneg %p170
        $region42: #{tpu_custom_call.1} parent=35 // pred_check_branch
          %323 = sbr.rel (%p321) target = $region44
        $region43: #{tpu_custom_call.1} parent=35 // pred_region
          %s324 = sand.u32 %s19, 1
          %s325 = scalar_lea.sflag [#allocation4], %s324
          %s326 = sand.u32 %s160, 1
          %s327 = smul.addr %s326, 256
          %s328 = scalar_lea.vmem [#allocation12], %s327
          %330 = vsyncadd %s325, 0
          %s331 = smul.addr %s19, 64
          %s332 = smul.addr %s331, 4
          %s333 = scalar_lea.hbm %s6, %s332
          %s334 = sshll.u32 %s333, 4
          %s335 = int_to_ptr.hbm [resolvable:$true] %s334
          %s336 = sshll.u32 %s328, 4
          %s337 = int_to_ptr.vmem [resolvable:$true] %s336
          %342 = dma.hbm_to_vmem [thread:$0]  %s335, 4096, %s337, %s325, 128, 128, 8
        $region44: #{tpu_custom_call.1} parent=35 // pred_fallthru
          _
        // Predicated region
        $region45: #{tpu_custom_call.1} parent=35 // pred_check
          %p343 = pneg %p196
        $region46: #{tpu_custom_call.1} parent=35 // pred_check_branch
          %345 = sbr.rel (%p343) target = $region48
        $region47: #{tpu_custom_call.1} parent=35 // pred_region
          %s346 = sand.u32 %s19, 1
          %s347 = scalar_lea.sflag [#allocation4], %s346
          %s348 = sand.u32 %s186, 1
          %s349 = smul.addr %s348, 2
          %s350 = scalar_lea.vmem [#allocation13], %s349
          %352 = vsyncadd %s347, 0
          %s353 = smul.addr %s19, 2
          %s354 = scalar_lea.hbm %s7, %s353
          %s356 = sshll.u32 %s354, 4
          %s357 = int_to_ptr.hbm [resolvable:$true] %s356
          %s358 = sshll.u32 %s350, 4
          %s359 = int_to_ptr.vmem [resolvable:$true] %s358
          %361 = dma.hbm_to_vmem [thread:$0]  %s357, 32, %s359, %s347
        $region48: #{tpu_custom_call.1} parent=35 // pred_fallthru
          _
      $region36: #{tpu_custom_call.1} parent=5 // pred_fallthru
        _
      %p362 = scmp.le.s32.totalorder 1, %s19
      %p363 = scmp.lt.s32.totalorder %s19, 9
      %p364 = pnand %p362, %p363
      %p365 = pneg %p364
      // Predicated region
      $region49: #{tpu_custom_call.1} parent=5 // pred_check
        _
      $region50: #{tpu_custom_call.1} parent=5 // pred_check_branch
        %367 = sbr.rel (%p364) target = $region52
      $region51: #{tpu_custom_call.1} parent=5 // pred_region
        %s368 = ssub.s32 %s19, 1
        // Predicated region
        $region53: #{tpu_custom_call.1} parent=51 // pred_check
          %p369 = pneg %p61
        $region54: #{tpu_custom_call.1} parent=51 // pred_check_branch
          %371 = sbr.rel (%p369) target = $region56
        $region55: #{tpu_custom_call.1} parent=51 // pred_region
          %373 = dma.done [#allocation4], 512
        $region56: #{tpu_custom_call.1} parent=51 // pred_fallthru
          _
        // Predicated region
        $region57: #{tpu_custom_call.1} parent=51 // pred_check
          %p374 = pneg %p82
        $region58: #{tpu_custom_call.1} parent=51 // pred_check_branch
          %376 = sbr.rel (%p374) target = $region60
        $region59: #{tpu_custom_call.1} parent=51 // pred_region
          %378 = dma.done [#allocation7], 2048
        $region60: #{tpu_custom_call.1} parent=51 // pred_fallthru
          _
        // Predicated region
        $region61: #{tpu_custom_call.1} parent=51 // pred_check
          %p379 = pneg %p103
        $region62: #{tpu_custom_call.1} parent=51 // pred_check_branch
          %381 = sbr.rel (%p379) target = $region64
        $region63: #{tpu_custom_call.1} parent=51 // pred_region
          %383 = dma.done [#allocation7], 32
        $region64: #{tpu_custom_call.1} parent=51 // pred_fallthru
          _
        // Predicated region
        $region65: #{tpu_custom_call.1} parent=51 // pred_check
          %p384 = pneg %p124
        $region66: #{tpu_custom_call.1} parent=51 // pred_check_branch
          %386 = sbr.rel (%p384) target = $region68
        $region67: #{tpu_custom_call.1} parent=51 // pred_region
          %388 = dma.done [#allocation10], 1536
        $region68: #{tpu_custom_call.1} parent=51 // pred_fallthru
          _
        %s389 = sand.u32 %s24, 1
        %s390 = scalar_lea.sflag [#allocation4], %s389
        %s391 = sand.u32 %s137, 1
        %s392 = smul.addr %s391, 1536
        %s393 = scalar_lea.vmem [#allocation11], %s392
        // Predicated region
        $region69: #{tpu_custom_call.1} parent=51 // pred_check
          %p394 = pneg %p150
        $region70: #{tpu_custom_call.1} parent=51 // pred_check_branch
          %396 = sbr.rel (%p394) target = $region72
        $region71: #{tpu_custom_call.1} parent=51 // pred_region
          %398 = dma.done %s390, 24576
        $region72: #{tpu_custom_call.1} parent=51 // pred_fallthru
          _
        %s399 = sand.u32 %s24, 1
        %s400 = scalar_lea.sflag [#allocation4], %s399
        %s401 = sand.u32 %s163, 1
        %s402 = smul.addr %s401, 256
        %s403 = scalar_lea.vmem [#allocation12], %s402
        // Predicated region
        $region73: #{tpu_custom_call.1} parent=51 // pred_check
          %p404 = pneg %p176
        $region74: #{tpu_custom_call.1} parent=51 // pred_check_branch
          %406 = sbr.rel (%p404) target = $region76
        $region75: #{tpu_custom_call.1} parent=51 // pred_region
          %408 = dma.done %s400, 4096
        $region76: #{tpu_custom_call.1} parent=51 // pred_fallthru
          _
        %s409 = sand.u32 %s24, 1
        %s410 = scalar_lea.sflag [#allocation4], %s409
        %s411 = sand.u32 %s189, 1
        %s412 = smul.addr %s411, 2
        %s413 = scalar_lea.vmem [#allocation13], %s412
        // Predicated region
        $region77: #{tpu_custom_call.1} parent=51 // pred_check
          %p414 = pneg %p202
        $region78: #{tpu_custom_call.1} parent=51 // pred_check_branch
          %416 = sbr.rel (%p414) target = $region80
        $region79: #{tpu_custom_call.1} parent=51 // pred_region
          %418 = dma.done %s410, 32
        $region80: #{tpu_custom_call.1} parent=51 // pred_fallthru
          _
        %p419 = pneg %p40
        %p420 = pneg %p37
        %p421 = pneg %p61
        %p422 = pneg %p58
        %p423 = pneg %p82
        %p424 = pneg %p79
        %p425 = pneg %p103
        %p426 = pneg %p100
        %p427 = pneg %p124
        %p428 = pneg %p121
        %s429 = sand.u32 %s24, 1
        %s430 = scalar_lea.sflag [#allocation4], %s429
        %s431 = sand.u32 %s137, 1
        %s432 = smul.addr %s431, 1536
        %s433 = scalar_lea.vmem [#allocation11], %s432
        %p434 = pneg %p150
        %p435 = pneg %p147
        %s436 = sand.u32 %s24, 1
        %s437 = scalar_lea.sflag [#allocation4], %s436
        %s438 = sand.u32 %s163, 1
        %s439 = smul.addr %s438, 256
        %s440 = scalar_lea.vmem [#allocation12], %s439
        %p441 = pneg %p176
        %p442 = pneg %p173
        %s443 = sand.u32 %s24, 1
        %s444 = scalar_lea.sflag [#allocation4], %s443
        %s445 = sand.u32 %s189, 1
        %s446 = smul.addr %s445, 2
        %s447 = scalar_lea.vmem [#allocation13], %s446
        %p448 = pneg %p202
        %p449 = pneg %p199
        %p450 = pneg %p223
        %p451 = pneg %p220
        %p452 = scmp.eq.s32.totalorder %s24, 0
        // Predicated region
        $region81: #{tpu_custom_call.1} parent=51 // pred_check
          %p453 = pneg %p452
        $region82: #{tpu_custom_call.1} parent=51 // pred_check_branch
          %455 = sbr.rel (%p453) target = $region84
        $region83: #{tpu_custom_call.1} parent=51 // pred_region
          %v456 = vld [vmem:[#allocation3] sm:$0xf]
          %v457 = vld [vmem:[#allocation3 + $0x4] sm:$0xf]
          %v458 = vld [vmem:[#allocation3 + $0x8] sm:$0xf]
          %v459 = vld [vmem:[#allocation3 + $0xc] sm:$0xf]
          %v460 = vld [vmem:[#allocation3 + $0x10] sm:$0xf]
          %v461 = vld [vmem:[#allocation3 + $0x14] sm:$0xf]
          %v462 = vld [vmem:[#allocation3 + $0x18] sm:$0xf]
          %v463 = vld [vmem:[#allocation3 + $0x1c] sm:$0xf]
          %v464 = vld [vmem:[#allocation6] sm:$0xff]
          %v465 = vld [vmem:[#allocation6 + $0x8] sm:$0xff]
          %v466 = vld [vmem:[#allocation6 + $0x10] sm:$0xff]
          %v467 = vld [vmem:[#allocation6 + $0x18] sm:$0xff]
          %v468 = vld [vmem:[#allocation6 + $0x20] sm:$0xff]
          %v469 = vld [vmem:[#allocation6 + $0x28] sm:$0xff]
          %v470 = vld [vmem:[#allocation6 + $0x30] sm:$0xff]
          %v471 = vld [vmem:[#allocation6 + $0x38] sm:$0xff]
          %v472 = vld [vmem:[#allocation6 + $0x40] sm:$0xff]
          %v473 = vld [vmem:[#allocation6 + $0x48] sm:$0xff]
          %v474 = vld [vmem:[#allocation6 + $0x50] sm:$0xff]
          %v475 = vld [vmem:[#allocation6 + $0x58] sm:$0xff]
          %v476 = vld [vmem:[#allocation6 + $0x60] sm:$0xff]
          %v477 = vld [vmem:[#allocation6 + $0x68] sm:$0xff]
          %v478 = vld [vmem:[#allocation6 + $0x70] sm:$0xff]
          %v479 = vld [vmem:[#allocation6 + $0x78] sm:$0xff]
          %v480 = vld [vmem:[#allocation8] sm:$0x3]
          %v482 = vperm.slane %v480, 0
          %v483 = vperm.slane %v480, 1
          %v494 = vunpack.c.l.b16 %v456
          %v495 = vunpack.c.l.b16 %v457
          %v496 = vunpack.c.l.b16 %v458
          %v497 = vunpack.c.l.b16 %v459
          %v498 = vunpack.c.l.b16 %v460
          %v499 = vunpack.c.l.b16 %v461
          %v500 = vunpack.c.l.b16 %v462
          %v501 = vunpack.c.l.b16 %v463
          %v502 = vpack.c.b16 %v495, %v494
          %v503 = vpack.c.b16 %v497, %v496
          %v504 = vpack.c.b16 %v499, %v498
          %v505 = vpack.c.b16 %v501, %v500
          %v526 = vunpack.c.l.b16 %v464
          %v527 = vunpack.c.h.b16 %v464
          %v528 = vunpack.c.l.b16 %v465
          %v529 = vunpack.c.h.b16 %v465
          %v530 = vunpack.c.l.b16 %v466
          %v531 = vunpack.c.h.b16 %v466
          %v532 = vunpack.c.l.b16 %v467
          %v533 = vunpack.c.h.b16 %v467
          %v534 = vunpack.c.l.b16 %v468
          %v535 = vunpack.c.h.b16 %v468
          %v536 = vunpack.c.l.b16 %v469
          %v537 = vunpack.c.h.b16 %v469
          %v538 = vunpack.c.l.b16 %v470
          %v539 = vunpack.c.h.b16 %v470
          %v540 = vunpack.c.l.b16 %v471
          %v541 = vunpack.c.h.b16 %v471
          %v542 = vunpack.c.l.b16 %v472
          %v543 = vunpack.c.h.b16 %v472
          %v544 = vunpack.c.l.b16 %v473
          %v545 = vunpack.c.h.b16 %v473
          %v546 = vunpack.c.l.b16 %v474
          %v547 = vunpack.c.h.b16 %v474
          %v548 = vunpack.c.l.b16 %v475
          %v549 = vunpack.c.h.b16 %v475
          %v550 = vunpack.c.l.b16 %v476
          %v551 = vunpack.c.h.b16 %v476
          %v552 = vunpack.c.l.b16 %v477
          %v553 = vunpack.c.h.b16 %v477
          %v554 = vunpack.c.l.b16 %v478
          %v555 = vunpack.c.h.b16 %v478
          %v556 = vunpack.c.l.b16 %v479
          %v557 = vunpack.c.h.b16 %v479
          %v558 = vpack.c.b16 %v528, %v526
          %v559 = vpack.c.b16 %v529, %v527
          %v560 = vpack.c.b16 %v532, %v530
          %v561 = vpack.c.b16 %v533, %v531
          %v562 = vpack.c.b16 %v536, %v534
          %v563 = vpack.c.b16 %v537, %v535
          %v564 = vpack.c.b16 %v540, %v538
          %v565 = vpack.c.b16 %v541, %v539
          %v566 = vpack.c.b16 %v544, %v542
          %v567 = vpack.c.b16 %v545, %v543
          %v568 = vpack.c.b16 %v548, %v546
          %v569 = vpack.c.b16 %v549, %v547
          %v570 = vpack.c.b16 %v552, %v550
          %v571 = vpack.c.b16 %v553, %v551
          %v572 = vpack.c.b16 %v556, %v554
          %v573 = vpack.c.b16 %v557, %v555
          %590 = vmatpush.bf16.msra.mxu0 %v572
          %591 = vmatpush.bf16.msra.mxu0 %v570
          %592 = vmatpush.bf16.msra.mxu0 %v568
          %593 = vmatpush.bf16.msra.mxu0 %v566
          %594 = vmatpush.bf16.msra.mxu0 %v564
          %595 = vmatpush.bf16.msra.mxu0 %v562
          %596 = vmatpush.bf16.msra.mxu0 %v560
          %597 = vmatpush.bf16.msra.mxu0 %v558
          %598 = vmatmul.bf16.gmra.mxu0 %v502
          %v599 = vpop.f32.mrf.mxu0
          %v600 = vadd.f32 %v482, %v599
          %v601 = vpop.f32.mrf.mxu0
          %v602 = vadd.f32 %v482, %v601
          %603 = vmatmul.bf16.gmra.mxu0 %v503
          %v604 = vpop.f32.mrf.mxu0
          %v605 = vadd.f32 %v482, %v604
          %v606 = vpop.f32.mrf.mxu0
          %v607 = vadd.f32 %v482, %v606
          %608 = vmatmul.bf16.gmra.mxu0 %v504
          %v609 = vpop.f32.mrf.mxu0
          %v610 = vadd.f32 %v482, %v609
          %v611 = vpop.f32.mrf.mxu0
          %v612 = vadd.f32 %v482, %v611
          %613 = vmatmul.bf16.gmra.mxu0 %v505
          %v614 = vpop.f32.mrf.mxu0
          %v615 = vadd.f32 %v482, %v614
          %v616 = vpop.f32.mrf.mxu0
          %v617 = vadd.f32 %v482, %v616
          %618 = vdwg.mxu0
          %619 = vmatpush.bf16.msra.mxu0 %v573
          %620 = vmatpush.bf16.msra.mxu0 %v571
          %621 = vmatpush.bf16.msra.mxu0 %v569
          %622 = vmatpush.bf16.msra.mxu0 %v567
          %623 = vmatpush.bf16.msra.mxu0 %v565
          %624 = vmatpush.bf16.msra.mxu0 %v563
          %625 = vmatpush.bf16.msra.mxu0 %v561
          %626 = vmatpush.bf16.msra.mxu0 %v559
          %627 = vmatmul.bf16.gmra.mxu0 %v502
          %v628 = vpop.f32.mrf.mxu0
          %v629 = vadd.f32 %v483, %v628
          %v630 = vpop.f32.mrf.mxu0
          %v631 = vadd.f32 %v483, %v630
          %632 = vmatmul.bf16.gmra.mxu0 %v503
          %v633 = vpop.f32.mrf.mxu0
          %v634 = vadd.f32 %v483, %v633
          %v635 = vpop.f32.mrf.mxu0
          %v636 = vadd.f32 %v483, %v635
          %637 = vmatmul.bf16.gmra.mxu0 %v504
          %v638 = vpop.f32.mrf.mxu0
          %v639 = vadd.f32 %v483, %v638
          %v640 = vpop.f32.mrf.mxu0
          %v641 = vadd.f32 %v483, %v640
          %642 = vmatmul.bf16.gmra.mxu0 %v505
          %v643 = vpop.f32.mrf.mxu0
          %v644 = vadd.f32 %v483, %v643
          %v645 = vpop.f32.mrf.mxu0
          %v646 = vadd.f32 %v483, %v645
          %647 = vdwg.mxu0
          %648 = vst [vmem:[#allocation14] sm:$0xff] %v600
          %649 = vst [vmem:[#allocation14 + $0x8] sm:$0xff] %v629
          %650 = vst [vmem:[#allocation14 + $0x10] sm:$0xff] %v602
          %651 = vst [vmem:[#allocation14 + $0x18] sm:$0xff] %v631
          %652 = vst [vmem:[#allocation14 + $0x20] sm:$0xff] %v605
          %653 = vst [vmem:[#allocation14 + $0x28] sm:$0xff] %v634
          %654 = vst [vmem:[#allocation14 + $0x30] sm:$0xff] %v607
          %655 = vst [vmem:[#allocation14 + $0x38] sm:$0xff] %v636
          %656 = vst [vmem:[#allocation14 + $0x40] sm:$0xff] %v610
          %657 = vst [vmem:[#allocation14 + $0x48] sm:$0xff] %v639
          %658 = vst [vmem:[#allocation14 + $0x50] sm:$0xff] %v612
          %659 = vst [vmem:[#allocation14 + $0x58] sm:$0xff] %v641
          %660 = vst [vmem:[#allocation14 + $0x60] sm:$0xff] %v615
          %661 = vst [vmem:[#allocation14 + $0x68] sm:$0xff] %v644
          %662 = vst [vmem:[#allocation14 + $0x70] sm:$0xff] %v617
          %663 = vst [vmem:[#allocation14 + $0x78] sm:$0xff] %v646
        $region84: #{tpu_custom_call.1} parent=51 // pred_fallthru
          _
        %v664 = vld [vmem:[#allocation14] sm:$0xff]
        %v665 = vld [vmem:[#allocation14 + $0x8] sm:$0xff]
        %v666 = vld [vmem:[#allocation14 + $0x10] sm:$0xff]
        %v667 = vld [vmem:[#allocation14 + $0x18] sm:$0xff]
        %v668 = vld [vmem:[#allocation14 + $0x20] sm:$0xff]
        %v669 = vld [vmem:[#allocation14 + $0x28] sm:$0xff]
        %v670 = vld [vmem:[#allocation14 + $0x30] sm:$0xff]
        %v671 = vld [vmem:[#allocation14 + $0x38] sm:$0xff]
        %v672 = vld [vmem:[#allocation14 + $0x40] sm:$0xff]
        %v673 = vld [vmem:[#allocation14 + $0x48] sm:$0xff]
        %v674 = vld [vmem:[#allocation14 + $0x50] sm:$0xff]
        %v675 = vld [vmem:[#allocation14 + $0x58] sm:$0xff]
        %v676 = vld [vmem:[#allocation14 + $0x60] sm:$0xff]
        %v677 = vld [vmem:[#allocation14 + $0x68] sm:$0xff]
        %v678 = vld [vmem:[#allocation14 + $0x70] sm:$0xff]
        %v679 = vld [vmem:[#allocation14 + $0x78] sm:$0xff]
        %v680 = vpack.c.bf16 %v666, %v664
        %v681 = vpack.c.bf16 %v667, %v665
        %v682 = vpack.c.bf16 %v670, %v668
        %v683 = vpack.c.bf16 %v671, %v669
        %v684 = vpack.c.bf16 %v674, %v672
        %v685 = vpack.c.bf16 %v675, %v673
        %v686 = vpack.c.bf16 %v678, %v676
        %v687 = vpack.c.bf16 %v679, %v677
        %v688 = vld [vmem:[%s403] sm:$0xff]
        %v689 = vld [vmem:[%s403 + $0x8] sm:$0xff]
        %v690 = vld [vmem:[%s403 + $0x10] sm:$0xff]
        %v691 = vld [vmem:[%s403 + $0x18] sm:$0xff]
        %v692 = vld [vmem:[%s403 + $0x20] sm:$0xff]
        %v693 = vld [vmem:[%s403 + $0x28] sm:$0xff]
        %v694 = vld [vmem:[%s403 + $0x30] sm:$0xff]
        %v695 = vld [vmem:[%s403 + $0x38] sm:$0xff]
        %v696 = vld [vmem:[%s403 + $0x40] sm:$0xff]
        %v697 = vld [vmem:[%s403 + $0x48] sm:$0xff]
        %v698 = vld [vmem:[%s403 + $0x50] sm:$0xff]
        %v699 = vld [vmem:[%s403 + $0x58] sm:$0xff]
        %v700 = vld [vmem:[%s403 + $0x60] sm:$0xff]
        %v701 = vld [vmem:[%s403 + $0x68] sm:$0xff]
        %v702 = vld [vmem:[%s403 + $0x70] sm:$0xff]
        %v703 = vld [vmem:[%s403 + $0x78] sm:$0xff]
        %v704 = vld [vmem:[%s403 + $0x80] sm:$0xff]
        %v705 = vld [vmem:[%s403 + $0x88] sm:$0xff]
        %v706 = vld [vmem:[%s403 + $0x90] sm:$0xff]
        %v707 = vld [vmem:[%s403 + $0x98] sm:$0xff]
        %v708 = vld [vmem:[%s403 + $0xa0] sm:$0xff]
        %v709 = vld [vmem:[%s403 + $0xa8] sm:$0xff]
        %v710 = vld [vmem:[%s403 + $0xb0] sm:$0xff]
        %v711 = vld [vmem:[%s403 + $0xb8] sm:$0xff]
        %v712 = vld [vmem:[%s403 + $0xc0] sm:$0xff]
        %v713 = vld [vmem:[%s403 + $0xc8] sm:$0xff]
        %v714 = vld [vmem:[%s403 + $0xd0] sm:$0xff]
        %v715 = vld [vmem:[%s403 + $0xd8] sm:$0xff]
        %v716 = vld [vmem:[%s403 + $0xe0] sm:$0xff]
        %v717 = vld [vmem:[%s403 + $0xe8] sm:$0xff]
        %v718 = vld [vmem:[%s403 + $0xf0] sm:$0xff]
        %v719 = vld [vmem:[%s403 + $0xf8] sm:$0xff]
        %v720 = vld [vmem:[%s413] sm:$0x3]
        %v722 = vperm.slane %v720, 0
        %v723 = vperm.slane %v720, 1
        %v758 = vunpack.c.l.b16 %v688
        %v759 = vunpack.c.h.b16 %v688
        %v760 = vunpack.c.l.b16 %v689
        %v761 = vunpack.c.h.b16 %v689
        %v762 = vunpack.c.l.b16 %v690
        %v763 = vunpack.c.h.b16 %v690
        %v764 = vunpack.c.l.b16 %v691
        %v765 = vunpack.c.h.b16 %v691
        %v766 = vunpack.c.l.b16 %v692
        %v767 = vunpack.c.h.b16 %v692
        %v768 = vunpack.c.l.b16 %v693
        %v769 = vunpack.c.h.b16 %v693
        %v770 = vunpack.c.l.b16 %v694
        %v771 = vunpack.c.h.b16 %v694
        %v772 = vunpack.c.l.b16 %v695
        %v773 = vunpack.c.h.b16 %v695
        %v774 = vunpack.c.l.b16 %v696
        %v775 = vunpack.c.h.b16 %v696
        %v776 = vunpack.c.l.b16 %v697
        %v777 = vunpack.c.h.b16 %v697
        %v778 = vunpack.c.l.b16 %v698
        %v779 = vunpack.c.h.b16 %v698
        %v780 = vunpack.c.l.b16 %v699
        %v781 = vunpack.c.h.b16 %v699
        %v782 = vunpack.c.l.b16 %v700
        %v783 = vunpack.c.h.b16 %v700
        %v784 = vunpack.c.l.b16 %v701
        %v785 = vunpack.c.h.b16 %v701
        %v786 = vunpack.c.l.b16 %v702
        %v787 = vunpack.c.h.b16 %v702
        %v788 = vunpack.c.l.b16 %v703
        %v789 = vunpack.c.h.b16 %v703
        %v790 = vunpack.c.l.b16 %v704
        %v791 = vunpack.c.h.b16 %v704
        %v792 = vunpack.c.l.b16 %v705
        %v793 = vunpack.c.h.b16 %v705
        %v794 = vunpack.c.l.b16 %v706
        %v795 = vunpack.c.h.b16 %v706
        %v796 = vunpack.c.l.b16 %v707
        %v797 = vunpack.c.h.b16 %v707
        %v798 = vunpack.c.l.b16 %v708
        %v799 = vunpack.c.h.b16 %v708
        %v800 = vunpack.c.l.b16 %v709
        %v801 = vunpack.c.h.b16 %v709
        %v802 = vunpack.c.l.b16 %v710
        %v803 = vunpack.c.h.b16 %v710
        %v804 = vunpack.c.l.b16 %v711
        %v805 = vunpack.c.h.b16 %v711
        %v806 = vunpack.c.l.b16 %v712
        %v807 = vunpack.c.h.b16 %v712
        %v808 = vunpack.c.l.b16 %v713
        %v809 = vunpack.c.h.b16 %v713
        %v810 = vunpack.c.l.b16 %v714
        %v811 = vunpack.c.h.b16 %v714
        %v812 = vunpack.c.l.b16 %v715
        %v813 = vunpack.c.h.b16 %v715
        %v814 = vunpack.c.l.b16 %v716
        %v815 = vunpack.c.h.b16 %v716
        %v816 = vunpack.c.l.b16 %v717
        %v817 = vunpack.c.h.b16 %v717
        %v818 = vunpack.c.l.b16 %v718
        %v819 = vunpack.c.h.b16 %v718
        %v820 = vunpack.c.l.b16 %v719
        %v821 = vunpack.c.h.b16 %v719
        %v822 = vpack.c.b16 %v760, %v758
        %v823 = vpack.c.b16 %v761, %v759
        %v824 = vpack.c.b16 %v764, %v762
        %v825 = vpack.c.b16 %v765, %v763
        %v826 = vpack.c.b16 %v768, %v766
        %v827 = vpack.c.b16 %v769, %v767
        %v828 = vpack.c.b16 %v772, %v770
        %v829 = vpack.c.b16 %v773, %v771
        %v830 = vpack.c.b16 %v776, %v774
        %v831 = vpack.c.b16 %v777, %v775
        %v832 = vpack.c.b16 %v780, %v778
        %v833 = vpack.c.b16 %v781, %v779
        %v834 = vpack.c.b16 %v784, %v782
        %v835 = vpack.c.b16 %v785, %v783
        %v836 = vpack.c.b16 %v788, %v786
        %v837 = vpack.c.b16 %v789, %v787
        %v838 = vpack.c.b16 %v792, %v790
        %v839 = vpack.c.b16 %v793, %v791
        %v840 = vpack.c.b16 %v796, %v794
        %v841 = vpack.c.b16 %v797, %v795
        %v842 = vpack.c.b16 %v800, %v798
        %v843 = vpack.c.b16 %v801, %v799
        %v844 = vpack.c.b16 %v804, %v802
        %v845 = vpack.c.b16 %v805, %v803
        %v846 = vpack.c.b16 %v808, %v806
        %v847 = vpack.c.b16 %v809, %v807
        %v848 = vpack.c.b16 %v812, %v810
        %v849 = vpack.c.b16 %v813, %v811
        %v850 = vpack.c.b16 %v816, %v814
        %v851 = vpack.c.b16 %v817, %v815
        %v852 = vpack.c.b16 %v820, %v818
        %v853 = vpack.c.b16 %v821, %v819
        %886 = vmatpush.bf16.msra.mxu0 %v836
        %887 = vmatpush.bf16.msra.mxu0 %v834
        %888 = vmatpush.bf16.msra.mxu0 %v832
        %889 = vmatpush.bf16.msra.mxu0 %v830
        %890 = vmatpush.bf16.msra.mxu0 %v828
        %891 = vmatpush.bf16.msra.mxu0 %v826
        %892 = vmatpush.bf16.msra.mxu0 %v824
        %893 = vmatpush.bf16.msra.mxu0 %v822
        %894 = vmatmul.bf16.gmra.mxu0 %v680
        %v895 = vpop.f32.mrf.mxu0
        %v896 = vadd.f32 %v722, %v895
        %v897 = vpop.f32.mrf.mxu0
        %v898 = vadd.f32 %v722, %v897
        %899 = vmatmul.bf16.gmra.mxu0 %v682
        %v900 = vpop.f32.mrf.mxu0
        %v901 = vadd.f32 %v722, %v900
        %v902 = vpop.f32.mrf.mxu0
        %v903 = vadd.f32 %v722, %v902
        %904 = vmatmul.bf16.gmra.mxu0 %v684
        %v905 = vpop.f32.mrf.mxu0
        %v906 = vadd.f32 %v722, %v905
        %v907 = vpop.f32.mrf.mxu0
        %v908 = vadd.f32 %v722, %v907
        %909 = vmatmul.bf16.gmra.mxu0 %v686
        %v910 = vpop.f32.mrf.mxu0
        %v911 = vadd.f32 %v722, %v910
        %v912 = vpop.f32.mrf.mxu0
        %v913 = vadd.f32 %v722, %v912
        %914 = vdwg.mxu0
        %915 = vmatpush.bf16.msra.mxu0 %v852
        %916 = vmatpush.bf16.msra.mxu0 %v850
        %917 = vmatpush.bf16.msra.mxu0 %v848
        %918 = vmatpush.bf16.msra.mxu0 %v846
        %919 = vmatpush.bf16.msra.mxu0 %v844
        %920 = vmatpush.bf16.msra.mxu0 %v842
        %921 = vmatpush.bf16.msra.mxu0 %v840
        %922 = vmatpush.bf16.msra.mxu0 %v838
        %923 = vmatmul.bf16.gmra.mxu0 %v681
        %v924 = vpop.f32.mrf.mxu0
        %v925 = vadd.f32 %v896, %v924
        %v926 = vpop.f32.mrf.mxu0
        %v927 = vadd.f32 %v898, %v926
        %928 = vmatmul.bf16.gmra.mxu0 %v683
        %v929 = vpop.f32.mrf.mxu0
        %v930 = vadd.f32 %v901, %v929
        %v931 = vpop.f32.mrf.mxu0
        %v932 = vadd.f32 %v903, %v931
        %933 = vmatmul.bf16.gmra.mxu0 %v685
        %v934 = vpop.f32.mrf.mxu0
        %v935 = vadd.f32 %v906, %v934
        %v936 = vpop.f32.mrf.mxu0
        %v937 = vadd.f32 %v908, %v936
        %938 = vmatmul.bf16.gmra.mxu0 %v687
        %v939 = vpop.f32.mrf.mxu0
        %v940 = vadd.f32 %v911, %v939
        %v941 = vpop.f32.mrf.mxu0
        %v942 = vadd.f32 %v913, %v941
        %943 = vdwg.mxu0
        %944 = vmatpush.bf16.msra.mxu0 %v837
        %945 = vmatpush.bf16.msra.mxu0 %v835
        %946 = vmatpush.bf16.msra.mxu0 %v833
        %947 = vmatpush.bf16.msra.mxu0 %v831
        %948 = vmatpush.bf16.msra.mxu0 %v829
        %949 = vmatpush.bf16.msra.mxu0 %v827
        %950 = vmatpush.bf16.msra.mxu0 %v825
        %951 = vmatpush.bf16.msra.mxu0 %v823
        %952 = vmatmul.bf16.gmra.mxu0 %v680
        %v953 = vpop.f32.mrf.mxu0
        %v954 = vadd.f32 %v723, %v953
        %v955 = vpop.f32.mrf.mxu0
        %v956 = vadd.f32 %v723, %v955
        %957 = vmatmul.bf16.gmra.mxu0 %v682
        %v958 = vpop.f32.mrf.mxu0
        %v959 = vadd.f32 %v723, %v958
        %v960 = vpop.f32.mrf.mxu0
        %v961 = vadd.f32 %v723, %v960
        %962 = vmatmul.bf16.gmra.mxu0 %v684
        %v963 = vpop.f32.mrf.mxu0
        %v964 = vadd.f32 %v723, %v963
        %v965 = vpop.f32.mrf.mxu0
        %v966 = vadd.f32 %v723, %v965
        %967 = vmatmul.bf16.gmra.mxu0 %v686
        %v968 = vpop.f32.mrf.mxu0
        %v969 = vadd.f32 %v723, %v968
        %v970 = vpop.f32.mrf.mxu0
        %v971 = vadd.f32 %v723, %v970
        %972 = vdwg.mxu0
        %973 = vmatpush.bf16.msra.mxu0 %v853
        %974 = vmatpush.bf16.msra.mxu0 %v851
        %975 = vmatpush.bf16.msra.mxu0 %v849
        %976 = vmatpush.bf16.msra.mxu0 %v847
        %977 = vmatpush.bf16.msra.mxu0 %v845
        %978 = vmatpush.bf16.msra.mxu0 %v843
        %979 = vmatpush.bf16.msra.mxu0 %v841
        %980 = vmatpush.bf16.msra.mxu0 %v839
        %981 = vmatmul.bf16.gmra.mxu0 %v681
        %v982 = vpop.f32.mrf.mxu0
        %v983 = vadd.f32 %v954, %v982
        %v984 = vpop.f32.mrf.mxu0
        %v985 = vadd.f32 %v956, %v984
        %986 = vmatmul.bf16.gmra.mxu0 %v683
        %v987 = vpop.f32.mrf.mxu0
        %v988 = vadd.f32 %v959, %v987
        %v989 = vpop.f32.mrf.mxu0
        %v990 = vadd.f32 %v961, %v989
        %991 = vmatmul.bf16.gmra.mxu0 %v685
        %v992 = vpop.f32.mrf.mxu0
        %v993 = vadd.f32 %v964, %v992
        %v994 = vpop.f32.mrf.mxu0
        %v995 = vadd.f32 %v966, %v994
        %996 = vmatmul.bf16.gmra.mxu0 %v687
        %v997 = vpop.f32.mrf.mxu0
        %v998 = vadd.f32 %v969, %v997
        %v999 = vpop.f32.mrf.mxu0
        %v1000 = vadd.f32 %v971, %v999
        %1001 = vdwg.mxu0
        %v1002 = vld [vmem:[%s393] sm:$0xff]
        %v1003 = vld [vmem:[%s393 + $0x8] sm:$0xff]
        %v1004 = vld [vmem:[%s393 + $0x10] sm:$0xff]
        %v1005 = vld [vmem:[%s393 + $0x18] sm:$0xff]
        %v1006 = vld [vmem:[%s393 + $0x20] sm:$0xff]
        %v1007 = vld [vmem:[%s393 + $0x28] sm:$0xff]
        %v1008 = vld [vmem:[%s393 + $0x30] sm:$0xff]
        %v1009 = vld [vmem:[%s393 + $0x38] sm:$0xff]
        %v1010 = vld [vmem:[%s393 + $0x40] sm:$0xff]
        %v1011 = vld [vmem:[%s393 + $0x48] sm:$0xff]
        %v1012 = vld [vmem:[%s393 + $0x50] sm:$0xff]
        %v1013 = vld [vmem:[%s393 + $0x58] sm:$0xff]
        %v1014 = vld [vmem:[%s393 + $0x60] sm:$0xff]
        %v1015 = vld [vmem:[%s393 + $0x68] sm:$0xff]
        %v1016 = vld [vmem:[%s393 + $0x70] sm:$0xff]
        %v1017 = vld [vmem:[%s393 + $0x78] sm:$0xff]
        %v1018 = vld [vmem:[%s393 + $0x80] sm:$0xff]
        %v1019 = vld [vmem:[%s393 + $0x88] sm:$0xff]
        %v1020 = vld [vmem:[%s393 + $0x90] sm:$0xff]
        %v1021 = vld [vmem:[%s393 + $0x98] sm:$0xff]
        %v1022 = vld [vmem:[%s393 + $0xa0] sm:$0xff]
        %v1023 = vld [vmem:[%s393 + $0xa8] sm:$0xff]
        %v1024 = vld [vmem:[%s393 + $0xb0] sm:$0xff]
        %v1025 = vld [vmem:[%s393 + $0xb8] sm:$0xff]
        %v1026 = vld [vmem:[%s393 + $0xc0] sm:$0xff]
        %v1027 = vld [vmem:[%s393 + $0xc8] sm:$0xff]
        %v1028 = vld [vmem:[%s393 + $0xd0] sm:$0xff]
        %v1029 = vld [vmem:[%s393 + $0xd8] sm:$0xff]
        %v1030 = vld [vmem:[%s393 + $0xe0] sm:$0xff]
        %v1031 = vld [vmem:[%s393 + $0xe8] sm:$0xff]
        %v1032 = vld [vmem:[%s393 + $0xf0] sm:$0xff]
        %v1033 = vld [vmem:[%s393 + $0xf8] sm:$0xff]
        %v1034 = vld [vmem:[%s393 + $0x100] sm:$0xff]
        %v1035 = vld [vmem:[%s393 + $0x108] sm:$0xff]
        %v1036 = vld [vmem:[%s393 + $0x110] sm:$0xff]
        %v1037 = vld [vmem:[%s393 + $0x118] sm:$0xff]
        %v1038 = vld [vmem:[%s393 + $0x120] sm:$0xff]
        %v1039 = vld [vmem:[%s393 + $0x128] sm:$0xff]
        %v1040 = vld [vmem:[%s393 + $0x130] sm:$0xff]
        %v1041 = vld [vmem:[%s393 + $0x138] sm:$0xff]
        %v1042 = vld [vmem:[%s393 + $0x140] sm:$0xff]
        %v1043 = vld [vmem:[%s393 + $0x148] sm:$0xff]
        %v1044 = vld [vmem:[%s393 + $0x150] sm:$0xff]
        %v1045 = vld [vmem:[%s393 + $0x158] sm:$0xff]
        %v1046 = vld [vmem:[%s393 + $0x160] sm:$0xff]
        %v1047 = vld [vmem:[%s393 + $0x168] sm:$0xff]
        %v1048 = vld [vmem:[%s393 + $0x170] sm:$0xff]
        %v1049 = vld [vmem:[%s393 + $0x178] sm:$0xff]
        %v1050 = vld [vmem:[%s393 + $0x180] sm:$0xff]
        %v1051 = vld [vmem:[%s393 + $0x188] sm:$0xff]
        %v1052 = vld [vmem:[%s393 + $0x190] sm:$0xff]
        %v1053 = vld [vmem:[%s393 + $0x198] sm:$0xff]
        %v1054 = vld [vmem:[%s393 + $0x1a0] sm:$0xff]
        %v1055 = vld [vmem:[%s393 + $0x1a8] sm:$0xff]
        %v1056 = vld [vmem:[%s393 + $0x1b0] sm:$0xff]
        %v1057 = vld [vmem:[%s393 + $0x1b8] sm:$0xff]
        %v1058 = vld [vmem:[%s393 + $0x1c0] sm:$0xff]
        %v1059 = vld [vmem:[%s393 + $0x1c8] sm:$0xff]
        %v1060 = vld [vmem:[%s393 + $0x1d0] sm:$0xff]
        %v1061 = vld [vmem:[%s393 + $0x1d8] sm:$0xff]
        %v1062 = vld [vmem:[%s393 + $0x1e0] sm:$0xff]
        %v1063 = vld [vmem:[%s393 + $0x1e8] sm:$0xff]
        %v1064 = vld [vmem:[%s393 + $0x1f0] sm:$0xff]
        %v1065 = vld [vmem:[%s393 + $0x1f8] sm:$0xff]
        %v1066 = vld [vmem:[%s393 + $0x200] sm:$0xff]
        %v1067 = vld [vmem:[%s393 + $0x208] sm:$0xff]
        %v1068 = vld [vmem:[%s393 + $0x210] sm:$0xff]
        %v1069 = vld [vmem:[%s393 + $0x218] sm:$0xff]
        %v1070 = vld [vmem:[%s393 + $0x220] sm:$0xff]
        %v1071 = vld [vmem:[%s393 + $0x228] sm:$0xff]
        %v1072 = vld [vmem:[%s393 + $0x230] sm:$0xff]
        %v1073 = vld [vmem:[%s393 + $0x238] sm:$0xff]
        %v1074 = vld [vmem:[%s393 + $0x240] sm:$0xff]
        %v1075 = vld [vmem:[%s393 + $0x248] sm:$0xff]
        %v1076 = vld [vmem:[%s393 + $0x250] sm:$0xff]
        %v1077 = vld [vmem:[%s393 + $0x258] sm:$0xff]
        %v1078 = vld [vmem:[%s393 + $0x260] sm:$0xff]
        %v1079 = vld [vmem:[%s393 + $0x268] sm:$0xff]
        %v1080 = vld [vmem:[%s393 + $0x270] sm:$0xff]
        %v1081 = vld [vmem:[%s393 + $0x278] sm:$0xff]
        %v1082 = vld [vmem:[%s393 + $0x280] sm:$0xff]
        %v1083 = vld [vmem:[%s393 + $0x288] sm:$0xff]
        %v1084 = vld [vmem:[%s393 + $0x290] sm:$0xff]
        %v1085 = vld [vmem:[%s393 + $0x298] sm:$0xff]
        %v1086 = vld [vmem:[%s393 + $0x2a0] sm:$0xff]
        %v1087 = vld [vmem:[%s393 + $0x2a8] sm:$0xff]
        %v1088 = vld [vmem:[%s393 + $0x2b0] sm:$0xff]
        %v1089 = vld [vmem:[%s393 + $0x2b8] sm:$0xff]
        %v1090 = vld [vmem:[%s393 + $0x2c0] sm:$0xff]
        %v1091 = vld [vmem:[%s393 + $0x2c8] sm:$0xff]
        %v1092 = vld [vmem:[%s393 + $0x2d0] sm:$0xff]
        %v1093 = vld [vmem:[%s393 + $0x2d8] sm:$0xff]
        %v1094 = vld [vmem:[%s393 + $0x2e0] sm:$0xff]
        %v1095 = vld [vmem:[%s393 + $0x2e8] sm:$0xff]
        %v1096 = vld [vmem:[%s393 + $0x2f0] sm:$0xff]
        %v1097 = vld [vmem:[%s393 + $0x2f8] sm:$0xff]
        %v1098 = vld [vmem:[%s393 + $0x300] sm:$0xff]
        %v1099 = vld [vmem:[%s393 + $0x308] sm:$0xff]
        %v1100 = vld [vmem:[%s393 + $0x310] sm:$0xff]
        %v1101 = vld [vmem:[%s393 + $0x318] sm:$0xff]
        %v1102 = vld [vmem:[%s393 + $0x320] sm:$0xff]
        %v1103 = vld [vmem:[%s393 + $0x328] sm:$0xff]
        %v1104 = vld [vmem:[%s393 + $0x330] sm:$0xff]
        %v1105 = vld [vmem:[%s393 + $0x338] sm:$0xff]
        %v1106 = vld [vmem:[%s393 + $0x340] sm:$0xff]
        %v1107 = vld [vmem:[%s393 + $0x348] sm:$0xff]
        %v1108 = vld [vmem:[%s393 + $0x350] sm:$0xff]
        %v1109 = vld [vmem:[%s393 + $0x358] sm:$0xff]
        %v1110 = vld [vmem:[%s393 + $0x360] sm:$0xff]
        %v1111 = vld [vmem:[%s393 + $0x368] sm:$0xff]
        %v1112 = vld [vmem:[%s393 + $0x370] sm:$0xff]
        %v1113 = vld [vmem:[%s393 + $0x378] sm:$0xff]
        %v1114 = vld [vmem:[%s393 + $0x380] sm:$0xff]
        %v1115 = vld [vmem:[%s393 + $0x388] sm:$0xff]
        %v1116 = vld [vmem:[%s393 + $0x390] sm:$0xff]
        %v1117 = vld [vmem:[%s393 + $0x398] sm:$0xff]
        %v1118 = vld [vmem:[%s393 + $0x3a0] sm:$0xff]
        %v1119 = vld [vmem:[%s393 + $0x3a8] sm:$0xff]
        %v1120 = vld [vmem:[%s393 + $0x3b0] sm:$0xff]
        %v1121 = vld [vmem:[%s393 + $0x3b8] sm:$0xff]
        %v1122 = vld [vmem:[%s393 + $0x3c0] sm:$0xff]
        %v1123 = vld [vmem:[%s393 + $0x3c8] sm:$0xff]
        %v1124 = vld [vmem:[%s393 + $0x3d0] sm:$0xff]
        %v1125 = vld [vmem:[%s393 + $0x3d8] sm:$0xff]
        %v1126 = vld [vmem:[%s393 + $0x3e0] sm:$0xff]
        %v1127 = vld [vmem:[%s393 + $0x3e8] sm:$0xff]
        %v1128 = vld [vmem:[%s393 + $0x3f0] sm:$0xff]
        %v1129 = vld [vmem:[%s393 + $0x3f8] sm:$0xff]
        %v1130 = vld [vmem:[%s393 + $0x400] sm:$0xff]
        %v1131 = vld [vmem:[%s393 + $0x408] sm:$0xff]
        %v1132 = vld [vmem:[%s393 + $0x410] sm:$0xff]
        %v1133 = vld [vmem:[%s393 + $0x418] sm:$0xff]
        %v1134 = vld [vmem:[%s393 + $0x420] sm:$0xff]
        %v1135 = vld [vmem:[%s393 + $0x428] sm:$0xff]
        %v1136 = vld [vmem:[%s393 + $0x430] sm:$0xff]
        %v1137 = vld [vmem:[%s393 + $0x438] sm:$0xff]
        %v1138 = vld [vmem:[%s393 + $0x440] sm:$0xff]
        %v1139 = vld [vmem:[%s393 + $0x448] sm:$0xff]
        %v1140 = vld [vmem:[%s393 + $0x450] sm:$0xff]
        %v1141 = vld [vmem:[%s393 + $0x458] sm:$0xff]
        %v1142 = vld [vmem:[%s393 + $0x460] sm:$0xff]
        %v1143 = vld [vmem:[%s393 + $0x468] sm:$0xff]
        %v1144 = vld [vmem:[%s393 + $0x470] sm:$0xff]
        %v1145 = vld [vmem:[%s393 + $0x478] sm:$0xff]
        %v1146 = vld [vmem:[%s393 + $0x480] sm:$0xff]
        %v1147 = vld [vmem:[%s393 + $0x488] sm:$0xff]
        %v1148 = vld [vmem:[%s393 + $0x490] sm:$0xff]
        %v1149 = vld [vmem:[%s393 + $0x498] sm:$0xff]
        %v1150 = vld [vmem:[%s393 + $0x4a0] sm:$0xff]
        %v1151 = vld [vmem:[%s393 + $0x4a8] sm:$0xff]
        %v1152 = vld [vmem:[%s393 + $0x4b0] sm:$0xff]
        %v1153 = vld [vmem:[%s393 + $0x4b8] sm:$0xff]
        %v1154 = vld [vmem:[%s393 + $0x4c0] sm:$0xff]
        %v1155 = vld [vmem:[%s393 + $0x4c8] sm:$0xff]
        %v1156 = vld [vmem:[%s393 + $0x4d0] sm:$0xff]
        %v1157 = vld [vmem:[%s393 + $0x4d8] sm:$0xff]
        %v1158 = vld [vmem:[%s393 + $0x4e0] sm:$0xff]
        %v1159 = vld [vmem:[%s393 + $0x4e8] sm:$0xff]
        %v1160 = vld [vmem:[%s393 + $0x4f0] sm:$0xff]
        %v1161 = vld [vmem:[%s393 + $0x4f8] sm:$0xff]
        %v1162 = vld [vmem:[%s393 + $0x500] sm:$0xff]
        %v1163 = vld [vmem:[%s393 + $0x508] sm:$0xff]
        %v1164 = vld [vmem:[%s393 + $0x510] sm:$0xff]
        %v1165 = vld [vmem:[%s393 + $0x518] sm:$0xff]
        %v1166 = vld [vmem:[%s393 + $0x520] sm:$0xff]
        %v1167 = vld [vmem:[%s393 + $0x528] sm:$0xff]
        %v1168 = vld [vmem:[%s393 + $0x530] sm:$0xff]
        %v1169 = vld [vmem:[%s393 + $0x538] sm:$0xff]
        %v1170 = vld [vmem:[%s393 + $0x540] sm:$0xff]
        %v1171 = vld [vmem:[%s393 + $0x548] sm:$0xff]
        %v1172 = vld [vmem:[%s393 + $0x550] sm:$0xff]
        %v1173 = vld [vmem:[%s393 + $0x558] sm:$0xff]
        %v1174 = vld [vmem:[%s393 + $0x560] sm:$0xff]
        %v1175 = vld [vmem:[%s393 + $0x568] sm:$0xff]
        %v1176 = vld [vmem:[%s393 + $0x570] sm:$0xff]
        %v1177 = vld [vmem:[%s393 + $0x578] sm:$0xff]
        %v1178 = vld [vmem:[%s393 + $0x580] sm:$0xff]
        %v1179 = vld [vmem:[%s393 + $0x588] sm:$0xff]
        %v1180 = vld [vmem:[%s393 + $0x590] sm:$0xff]
        %v1181 = vld [vmem:[%s393 + $0x598] sm:$0xff]
        %v1182 = vld [vmem:[%s393 + $0x5a0] sm:$0xff]
        %v1183 = vld [vmem:[%s393 + $0x5a8] sm:$0xff]
        %v1184 = vld [vmem:[%s393 + $0x5b0] sm:$0xff]
        %v1185 = vld [vmem:[%s393 + $0x5b8] sm:$0xff]
        %v1186 = vld [vmem:[%s393 + $0x5c0] sm:$0xff]
        %v1187 = vld [vmem:[%s393 + $0x5c8] sm:$0xff]
        %v1188 = vld [vmem:[%s393 + $0x5d0] sm:$0xff]
        %v1189 = vld [vmem:[%s393 + $0x5d8] sm:$0xff]
        %v1190 = vld [vmem:[%s393 + $0x5e0] sm:$0xff]
        %v1191 = vld [vmem:[%s393 + $0x5e8] sm:$0xff]
        %v1192 = vld [vmem:[%s393 + $0x5f0] sm:$0xff]
        %v1193 = vld [vmem:[%s393 + $0x5f8] sm:$0xff]
        %v1386 = vunpack.c.l.b16 %v1002
        %v1387 = vunpack.c.h.b16 %v1002
        %v1388 = vunpack.c.l.b16 %v1003
        %v1389 = vunpack.c.h.b16 %v1003
        %v1390 = vunpack.c.l.b16 %v1004
        %v1391 = vunpack.c.h.b16 %v1004
        %v1392 = vunpack.c.l.b16 %v1005
        %v1393 = vunpack.c.h.b16 %v1005
        %v1394 = vunpack.c.l.b16 %v1006
        %v1395 = vunpack.c.h.b16 %v1006
        %v1396 = vunpack.c.l.b16 %v1007
        %v1397 = vunpack.c.h.b16 %v1007
        %v1398 = vunpack.c.l.b16 %v1008
        %v1399 = vunpack.c.h.b16 %v1008
        %v1400 = vunpack.c.l.b16 %v1009
        %v1401 = vunpack.c.h.b16 %v1009
        %v1402 = vunpack.c.l.b16 %v1010
        %v1403 = vunpack.c.h.b16 %v1010
        %v1404 = vunpack.c.l.b16 %v1011
        %v1405 = vunpack.c.h.b16 %v1011
        %v1406 = vunpack.c.l.b16 %v1012
        %v1407 = vunpack.c.h.b16 %v1012
        %v1408 = vunpack.c.l.b16 %v1013
        %v1409 = vunpack.c.h.b16 %v1013
        %v1410 = vunpack.c.l.b16 %v1014
        %v1411 = vunpack.c.h.b16 %v1014
        %v1412 = vunpack.c.l.b16 %v1015
        %v1413 = vunpack.c.h.b16 %v1015
        %v1414 = vunpack.c.l.b16 %v1016
        %v1415 = vunpack.c.h.b16 %v1016
        %v1416 = vunpack.c.l.b16 %v1017
        %v1417 = vunpack.c.h.b16 %v1017
        %v1418 = vunpack.c.l.b16 %v1018
        %v1419 = vunpack.c.h.b16 %v1018
        %v1420 = vunpack.c.l.b16 %v1019
        %v1421 = vunpack.c.h.b16 %v1019
        %v1422 = vunpack.c.l.b16 %v1020
        %v1423 = vunpack.c.h.b16 %v1020
        %v1424 = vunpack.c.l.b16 %v1021
        %v1425 = vunpack.c.h.b16 %v1021
        %v1426 = vunpack.c.l.b16 %v1022
        %v1427 = vunpack.c.h.b16 %v1022
        %v1428 = vunpack.c.l.b16 %v1023
        %v1429 = vunpack.c.h.b16 %v1023
        %v1430 = vunpack.c.l.b16 %v1024
        %v1431 = vunpack.c.h.b16 %v1024
        %v1432 = vunpack.c.l.b16 %v1025
        %v1433 = vunpack.c.h.b16 %v1025
        %v1434 = vunpack.c.l.b16 %v1026
        %v1435 = vunpack.c.h.b16 %v1026
        %v1436 = vunpack.c.l.b16 %v1027
        %v1437 = vunpack.c.h.b16 %v1027
        %v1438 = vunpack.c.l.b16 %v1028
        %v1439 = vunpack.c.h.b16 %v1028
        %v1440 = vunpack.c.l.b16 %v1029
        %v1441 = vunpack.c.h.b16 %v1029
        %v1442 = vunpack.c.l.b16 %v1030
        %v1443 = vunpack.c.h.b16 %v1030
        %v1444 = vunpack.c.l.b16 %v1031
        %v1445 = vunpack.c.h.b16 %v1031
        %v1446 = vunpack.c.l.b16 %v1032
        %v1447 = vunpack.c.h.b16 %v1032
        %v1448 = vunpack.c.l.b16 %v1033
        %v1449 = vunpack.c.h.b16 %v1033
        %v1450 = vunpack.c.l.b16 %v1034
        %v1451 = vunpack.c.h.b16 %v1034
        %v1452 = vunpack.c.l.b16 %v1035
        %v1453 = vunpack.c.h.b16 %v1035
        %v1454 = vunpack.c.l.b16 %v1036
        %v1455 = vunpack.c.h.b16 %v1036
        %v1456 = vunpack.c.l.b16 %v1037
        %v1457 = vunpack.c.h.b16 %v1037
        %v1458 = vunpack.c.l.b16 %v1038
        %v1459 = vunpack.c.h.b16 %v1038
        %v1460 = vunpack.c.l.b16 %v1039
        %v1461 = vunpack.c.h.b16 %v1039
        %v1462 = vunpack.c.l.b16 %v1040
        %v1463 = vunpack.c.h.b16 %v1040
        %v1464 = vunpack.c.l.b16 %v1041
        %v1465 = vunpack.c.h.b16 %v1041
        %v1466 = vunpack.c.l.b16 %v1042
        %v1467 = vunpack.c.h.b16 %v1042
        %v1468 = vunpack.c.l.b16 %v1043
        %v1469 = vunpack.c.h.b16 %v1043
        %v1470 = vunpack.c.l.b16 %v1044
        %v1471 = vunpack.c.h.b16 %v1044
        %v1472 = vunpack.c.l.b16 %v1045
        %v1473 = vunpack.c.h.b16 %v1045
        %v1474 = vunpack.c.l.b16 %v1046
        %v1475 = vunpack.c.h.b16 %v1046
        %v1476 = vunpack.c.l.b16 %v1047
        %v1477 = vunpack.c.h.b16 %v1047
        %v1478 = vunpack.c.l.b16 %v1048
        %v1479 = vunpack.c.h.b16 %v1048
        %v1480 = vunpack.c.l.b16 %v1049
        %v1481 = vunpack.c.h.b16 %v1049
        %v1482 = vunpack.c.l.b16 %v1050
        %v1483 = vunpack.c.h.b16 %v1050
        %v1484 = vunpack.c.l.b16 %v1051
        %v1485 = vunpack.c.h.b16 %v1051
        %v1486 = vunpack.c.l.b16 %v1052
        %v1487 = vunpack.c.h.b16 %v1052
        %v1488 = vunpack.c.l.b16 %v1053
        %v1489 = vunpack.c.h.b16 %v1053
        %v1490 = vunpack.c.l.b16 %v1054
        %v1491 = vunpack.c.h.b16 %v1054
        %v1492 = vunpack.c.l.b16 %v1055
        %v1493 = vunpack.c.h.b16 %v1055
        %v1494 = vunpack.c.l.b16 %v1056
        %v1495 = vunpack.c.h.b16 %v1056
        %v1496 = vunpack.c.l.b16 %v1057
        %v1497 = vunpack.c.h.b16 %v1057
        %v1498 = vunpack.c.l.b16 %v1058
        %v1499 = vunpack.c.h.b16 %v1058
        %v1500 = vunpack.c.l.b16 %v1059
        %v1501 = vunpack.c.h.b16 %v1059
        %v1502 = vunpack.c.l.b16 %v1060
        %v1503 = vunpack.c.h.b16 %v1060
        %v1504 = vunpack.c.l.b16 %v1061
        %v1505 = vunpack.c.h.b16 %v1061
        %v1506 = vunpack.c.l.b16 %v1062
        %v1507 = vunpack.c.h.b16 %v1062
        %v1508 = vunpack.c.l.b16 %v1063
        %v1509 = vunpack.c.h.b16 %v1063
        %v1510 = vunpack.c.l.b16 %v1064
        %v1511 = vunpack.c.h.b16 %v1064
        %v1512 = vunpack.c.l.b16 %v1065
        %v1513 = vunpack.c.h.b16 %v1065
        %v1514 = vunpack.c.l.b16 %v1066
        %v1515 = vunpack.c.h.b16 %v1066
        %v1516 = vunpack.c.l.b16 %v1067
        %v1517 = vunpack.c.h.b16 %v1067
        %v1518 = vunpack.c.l.b16 %v1068
        %v1519 = vunpack.c.h.b16 %v1068
        %v1520 = vunpack.c.l.b16 %v1069
        %v1521 = vunpack.c.h.b16 %v1069
        %v1522 = vunpack.c.l.b16 %v1070
        %v1523 = vunpack.c.h.b16 %v1070
        %v1524 = vunpack.c.l.b16 %v1071
        %v1525 = vunpack.c.h.b16 %v1071
        %v1526 = vunpack.c.l.b16 %v1072
        %v1527 = vunpack.c.h.b16 %v1072
        %v1528 = vunpack.c.l.b16 %v1073
        %v1529 = vunpack.c.h.b16 %v1073
        %v1530 = vunpack.c.l.b16 %v1074
        %v1531 = vunpack.c.h.b16 %v1074
        %v1532 = vunpack.c.l.b16 %v1075
        %v1533 = vunpack.c.h.b16 %v1075
        %v1534 = vunpack.c.l.b16 %v1076
        %v1535 = vunpack.c.h.b16 %v1076
        %v1536 = vunpack.c.l.b16 %v1077
        %v1537 = vunpack.c.h.b16 %v1077
        %v1538 = vunpack.c.l.b16 %v1078
        %v1539 = vunpack.c.h.b16 %v1078
        %v1540 = vunpack.c.l.b16 %v1079
        %v1541 = vunpack.c.h.b16 %v1079
        %v1542 = vunpack.c.l.b16 %v1080
        %v1543 = vunpack.c.h.b16 %v1080
        %v1544 = vunpack.c.l.b16 %v1081
        %v1545 = vunpack.c.h.b16 %v1081
        %v1546 = vunpack.c.l.b16 %v1082
        %v1547 = vunpack.c.h.b16 %v1082
        %v1548 = vunpack.c.l.b16 %v1083
        %v1549 = vunpack.c.h.b16 %v1083
        %v1550 = vunpack.c.l.b16 %v1084
        %v1551 = vunpack.c.h.b16 %v1084
        %v1552 = vunpack.c.l.b16 %v1085
        %v1553 = vunpack.c.h.b16 %v1085
        %v1554 = vunpack.c.l.b16 %v1086
        %v1555 = vunpack.c.h.b16 %v1086
        %v1556 = vunpack.c.l.b16 %v1087
        %v1557 = vunpack.c.h.b16 %v1087
        %v1558 = vunpack.c.l.b16 %v1088
        %v1559 = vunpack.c.h.b16 %v1088
        %v1560 = vunpack.c.l.b16 %v1089
        %v1561 = vunpack.c.h.b16 %v1089
        %v1562 = vunpack.c.l.b16 %v1090
        %v1563 = vunpack.c.h.b16 %v1090
        %v1564 = vunpack.c.l.b16 %v1091
        %v1565 = vunpack.c.h.b16 %v1091
        %v1566 = vunpack.c.l.b16 %v1092
        %v1567 = vunpack.c.h.b16 %v1092
        %v1568 = vunpack.c.l.b16 %v1093
        %v1569 = vunpack.c.h.b16 %v1093
        %v1570 = vunpack.c.l.b16 %v1094
        %v1571 = vunpack.c.h.b16 %v1094
        %v1572 = vunpack.c.l.b16 %v1095
        %v1573 = vunpack.c.h.b16 %v1095
        %v1574 = vunpack.c.l.b16 %v1096
        %v1575 = vunpack.c.h.b16 %v1096
        %v1576 = vunpack.c.l.b16 %v1097
        %v1577 = vunpack.c.h.b16 %v1097
        %v1578 = vunpack.c.l.b16 %v1098
        %v1579 = vunpack.c.h.b16 %v1098
        %v1580 = vunpack.c.l.b16 %v1099
        %v1581 = vunpack.c.h.b16 %v1099
        %v1582 = vunpack.c.l.b16 %v1100
        %v1583 = vunpack.c.h.b16 %v1100
        %v1584 = vunpack.c.l.b16 %v1101
        %v1585 = vunpack.c.h.b16 %v1101
        %v1586 = vunpack.c.l.b16 %v1102
        %v1587 = vunpack.c.h.b16 %v1102
        %v1588 = vunpack.c.l.b16 %v1103
        %v1589 = vunpack.c.h.b16 %v1103
        %v1590 = vunpack.c.l.b16 %v1104
        %v1591 = vunpack.c.h.b16 %v1104
        %v1592 = vunpack.c.l.b16 %v1105
        %v1593 = vunpack.c.h.b16 %v1105
        %v1594 = vunpack.c.l.b16 %v1106
        %v1595 = vunpack.c.h.b16 %v1106
        %v1596 = vunpack.c.l.b16 %v1107
        %v1597 = vunpack.c.h.b16 %v1107
        %v1598 = vunpack.c.l.b16 %v1108
        %v1599 = vunpack.c.h.b16 %v1108
        %v1600 = vunpack.c.l.b16 %v1109
        %v1601 = vunpack.c.h.b16 %v1109
        %v1602 = vunpack.c.l.b16 %v1110
        %v1603 = vunpack.c.h.b16 %v1110
        %v1604 = vunpack.c.l.b16 %v1111
        %v1605 = vunpack.c.h.b16 %v1111
        %v1606 = vunpack.c.l.b16 %v1112
        %v1607 = vunpack.c.h.b16 %v1112
        %v1608 = vunpack.c.l.b16 %v1113
        %v1609 = vunpack.c.h.b16 %v1113
        %v1610 = vunpack.c.l.b16 %v1114
        %v1611 = vunpack.c.h.b16 %v1114
        %v1612 = vunpack.c.l.b16 %v1115
        %v1613 = vunpack.c.h.b16 %v1115
        %v1614 = vunpack.c.l.b16 %v1116
        %v1615 = vunpack.c.h.b16 %v1116
        %v1616 = vunpack.c.l.b16 %v1117
        %v1617 = vunpack.c.h.b16 %v1117
        %v1618 = vunpack.c.l.b16 %v1118
        %v1619 = vunpack.c.h.b16 %v1118
        %v1620 = vunpack.c.l.b16 %v1119
        %v1621 = vunpack.c.h.b16 %v1119
        %v1622 = vunpack.c.l.b16 %v1120
        %v1623 = vunpack.c.h.b16 %v1120
        %v1624 = vunpack.c.l.b16 %v1121
        %v1625 = vunpack.c.h.b16 %v1121
        %v1626 = vunpack.c.l.b16 %v1122
        %v1627 = vunpack.c.h.b16 %v1122
        %v1628 = vunpack.c.l.b16 %v1123
        %v1629 = vunpack.c.h.b16 %v1123
        %v1630 = vunpack.c.l.b16 %v1124
        %v1631 = vunpack.c.h.b16 %v1124
        %v1632 = vunpack.c.l.b16 %v1125
        %v1633 = vunpack.c.h.b16 %v1125
        %v1634 = vunpack.c.l.b16 %v1126
        %v1635 = vunpack.c.h.b16 %v1126
        %v1636 = vunpack.c.l.b16 %v1127
        %v1637 = vunpack.c.h.b16 %v1127
        %v1638 = vunpack.c.l.b16 %v1128
        %v1639 = vunpack.c.h.b16 %v1128
        %v1640 = vunpack.c.l.b16 %v1129
        %v1641 = vunpack.c.h.b16 %v1129
        %v1642 = vunpack.c.l.b16 %v1130
        %v1643 = vunpack.c.h.b16 %v1130
        %v1644 = vunpack.c.l.b16 %v1131
        %v1645 = vunpack.c.h.b16 %v1131
        %v1646 = vunpack.c.l.b16 %v1132
        %v1647 = vunpack.c.h.b16 %v1132
        %v1648 = vunpack.c.l.b16 %v1133
        %v1649 = vunpack.c.h.b16 %v1133
        %v1650 = vunpack.c.l.b16 %v1134
        %v1651 = vunpack.c.h.b16 %v1134
        %v1652 = vunpack.c.l.b16 %v1135
        %v1653 = vunpack.c.h.b16 %v1135
        %v1654 = vunpack.c.l.b16 %v1136
        %v1655 = vunpack.c.h.b16 %v1136
        %v1656 = vunpack.c.l.b16 %v1137
        %v1657 = vunpack.c.h.b16 %v1137
        %v1658 = vunpack.c.l.b16 %v1138
        %v1659 = vunpack.c.h.b16 %v1138
        %v1660 = vunpack.c.l.b16 %v1139
        %v1661 = vunpack.c.h.b16 %v1139
        %v1662 = vunpack.c.l.b16 %v1140
        %v1663 = vunpack.c.h.b16 %v1140
        %v1664 = vunpack.c.l.b16 %v1141
        %v1665 = vunpack.c.h.b16 %v1141
        %v1666 = vunpack.c.l.b16 %v1142
        %v1667 = vunpack.c.h.b16 %v1142
        %v1668 = vunpack.c.l.b16 %v1143
        %v1669 = vunpack.c.h.b16 %v1143
        %v1670 = vunpack.c.l.b16 %v1144
        %v1671 = vunpack.c.h.b16 %v1144
        %v1672 = vunpack.c.l.b16 %v1145
        %v1673 = vunpack.c.h.b16 %v1145
        %v1674 = vunpack.c.l.b16 %v1146
        %v1675 = vunpack.c.h.b16 %v1146
        %v1676 = vunpack.c.l.b16 %v1147
        %v1677 = vunpack.c.h.b16 %v1147
        %v1678 = vunpack.c.l.b16 %v1148
        %v1679 = vunpack.c.h.b16 %v1148
        %v1680 = vunpack.c.l.b16 %v1149
        %v1681 = vunpack.c.h.b16 %v1149
        %v1682 = vunpack.c.l.b16 %v1150
        %v1683 = vunpack.c.h.b16 %v1150
        %v1684 = vunpack.c.l.b16 %v1151
        %v1685 = vunpack.c.h.b16 %v1151
        %v1686 = vunpack.c.l.b16 %v1152
        %v1687 = vunpack.c.h.b16 %v1152
        %v1688 = vunpack.c.l.b16 %v1153
        %v1689 = vunpack.c.h.b16 %v1153
        %v1690 = vunpack.c.l.b16 %v1154
        %v1691 = vunpack.c.h.b16 %v1154
        %v1692 = vunpack.c.l.b16 %v1155
        %v1693 = vunpack.c.h.b16 %v1155
        %v1694 = vunpack.c.l.b16 %v1156
        %v1695 = vunpack.c.h.b16 %v1156
        %v1696 = vunpack.c.l.b16 %v1157
        %v1697 = vunpack.c.h.b16 %v1157
        %v1698 = vunpack.c.l.b16 %v1158
        %v1699 = vunpack.c.h.b16 %v1158
        %v1700 = vunpack.c.l.b16 %v1159
        %v1701 = vunpack.c.h.b16 %v1159
        %v1702 = vunpack.c.l.b16 %v1160
        %v1703 = vunpack.c.h.b16 %v1160
        %v1704 = vunpack.c.l.b16 %v1161
        %v1705 = vunpack.c.h.b16 %v1161
        %v1706 = vunpack.c.l.b16 %v1162
        %v1707 = vunpack.c.h.b16 %v1162
        %v1708 = vunpack.c.l.b16 %v1163
        %v1709 = vunpack.c.h.b16 %v1163
        %v1710 = vunpack.c.l.b16 %v1164
        %v1711 = vunpack.c.h.b16 %v1164
        %v1712 = vunpack.c.l.b16 %v1165
        %v1713 = vunpack.c.h.b16 %v1165
        %v1714 = vunpack.c.l.b16 %v1166
        %v1715 = vunpack.c.h.b16 %v1166
        %v1716 = vunpack.c.l.b16 %v1167
        %v1717 = vunpack.c.h.b16 %v1167
        %v1718 = vunpack.c.l.b16 %v1168
        %v1719 = vunpack.c.h.b16 %v1168
        %v1720 = vunpack.c.l.b16 %v1169
        %v1721 = vunpack.c.h.b16 %v1169
        %v1722 = vunpack.c.l.b16 %v1170
        %v1723 = vunpack.c.h.b16 %v1170
        %v1724 = vunpack.c.l.b16 %v1171
        %v1725 = vunpack.c.h.b16 %v1171
        %v1726 = vunpack.c.l.b16 %v1172
        %v1727 = vunpack.c.h.b16 %v1172
        %v1728 = vunpack.c.l.b16 %v1173
        %v1729 = vunpack.c.h.b16 %v1173
        %v1730 = vunpack.c.l.b16 %v1174
        %v1731 = vunpack.c.h.b16 %v1174
        %v1732 = vunpack.c.l.b16 %v1175
        %v1733 = vunpack.c.h.b16 %v1175
        %v1734 = vunpack.c.l.b16 %v1176
        %v1735 = vunpack.c.h.b16 %v1176
        %v1736 = vunpack.c.l.b16 %v1177
        %v1737 = vunpack.c.h.b16 %v1177
        %v1738 = vunpack.c.l.b16 %v1178
        %v1739 = vunpack.c.h.b16 %v1178
        %v1740 = vunpack.c.l.b16 %v1179
        %v1741 = vunpack.c.h.b16 %v1179
        %v1742 = vunpack.c.l.b16 %v1180
        %v1743 = vunpack.c.h.b16 %v1180
        %v1744 = vunpack.c.l.b16 %v1181
        %v1745 = vunpack.c.h.b16 %v1181
        %v1746 = vunpack.c.l.b16 %v1182
        %v1747 = vunpack.c.h.b16 %v1182
        %v1748 = vunpack.c.l.b16 %v1183
        %v1749 = vunpack.c.h.b16 %v1183
        %v1750 = vunpack.c.l.b16 %v1184
        %v1751 = vunpack.c.h.b16 %v1184
        %v1752 = vunpack.c.l.b16 %v1185
        %v1753 = vunpack.c.h.b16 %v1185
        %v1754 = vunpack.c.l.b16 %v1186
        %v1755 = vunpack.c.h.b16 %v1186
        %v1756 = vunpack.c.l.b16 %v1187
        %v1757 = vunpack.c.h.b16 %v1187
        %v1758 = vunpack.c.l.b16 %v1188
        %v1759 = vunpack.c.h.b16 %v1188
        %v1760 = vunpack.c.l.b16 %v1189
        %v1761 = vunpack.c.h.b16 %v1189
        %v1762 = vunpack.c.l.b16 %v1190
        %v1763 = vunpack.c.h.b16 %v1190
        %v1764 = vunpack.c.l.b16 %v1191
        %v1765 = vunpack.c.h.b16 %v1191
        %v1766 = vunpack.c.l.b16 %v1192
        %v1767 = vunpack.c.h.b16 %v1192
        %v1768 = vunpack.c.l.b16 %v1193
        %v1769 = vunpack.c.h.b16 %v1193
        %v1770 = vpack.c.b16 %v1398, %v1386
        %v1771 = vpack.c.b16 %v1399, %v1387
        %v1772 = vpack.c.b16 %v1400, %v1388
        %v1773 = vpack.c.b16 %v1401, %v1389
        %v1774 = vpack.c.b16 %v1402, %v1390
        %v1775 = vpack.c.b16 %v1403, %v1391
        %v1776 = vpack.c.b16 %v1404, %v1392
        %v1777 = vpack.c.b16 %v1405, %v1393
        %v1778 = vpack.c.b16 %v1406, %v1394
        %v1779 = vpack.c.b16 %v1407, %v1395
        %v1780 = vpack.c.b16 %v1408, %v1396
        %v1781 = vpack.c.b16 %v1409, %v1397
        %v1782 = vpack.c.b16 %v1422, %v1410
        %v1783 = vpack.c.b16 %v1423, %v1411
        %v1784 = vpack.c.b16 %v1424, %v1412
        %v1785 = vpack.c.b16 %v1425, %v1413
        %v1786 = vpack.c.b16 %v1426, %v1414
        %v1787 = vpack.c.b16 %v1427, %v1415
        %v1788 = vpack.c.b16 %v1428, %v1416
        %v1789 = vpack.c.b16 %v1429, %v1417
        %v1790 = vpack.c.b16 %v1430, %v1418
        %v1791 = vpack.c.b16 %v1431, %v1419
        %v1792 = vpack.c.b16 %v1432, %v1420
        %v1793 = vpack.c.b16 %v1433, %v1421
        %v1794 = vpack.c.b16 %v1446, %v1434
        %v1795 = vpack.c.b16 %v1447, %v1435
        %v1796 = vpack.c.b16 %v1448, %v1436
        %v1797 = vpack.c.b16 %v1449, %v1437
        %v1798 = vpack.c.b16 %v1450, %v1438
        %v1799 = vpack.c.b16 %v1451, %v1439
        %v1800 = vpack.c.b16 %v1452, %v1440
        %v1801 = vpack.c.b16 %v1453, %v1441
        %v1802 = vpack.c.b16 %v1454, %v1442
        %v1803 = vpack.c.b16 %v1455, %v1443
        %v1804 = vpack.c.b16 %v1456, %v1444
        %v1805 = vpack.c.b16 %v1457, %v1445
        %v1806 = vpack.c.b16 %v1470, %v1458
        %v1807 = vpack.c.b16 %v1471, %v1459
        %v1808 = vpack.c.b16 %v1472, %v1460
        %v1809 = vpack.c.b16 %v1473, %v1461
        %v1810 = vpack.c.b16 %v1474, %v1462
        %v1811 = vpack.c.b16 %v1475, %v1463
        %v1812 = vpack.c.b16 %v1476, %v1464
        %v1813 = vpack.c.b16 %v1477, %v1465
        %v1814 = vpack.c.b16 %v1478, %v1466
        %v1815 = vpack.c.b16 %v1479, %v1467
        %v1816 = vpack.c.b16 %v1480, %v1468
        %v1817 = vpack.c.b16 %v1481, %v1469
        %v1818 = vpack.c.b16 %v1494, %v1482
        %v1819 = vpack.c.b16 %v1495, %v1483
        %v1820 = vpack.c.b16 %v1496, %v1484
        %v1821 = vpack.c.b16 %v1497, %v1485
        %v1822 = vpack.c.b16 %v1498, %v1486
        %v1823 = vpack.c.b16 %v1499, %v1487
        %v1824 = vpack.c.b16 %v1500, %v1488
        %v1825 = vpack.c.b16 %v1501, %v1489
        %v1826 = vpack.c.b16 %v1502, %v1490
        %v1827 = vpack.c.b16 %v1503, %v1491
        %v1828 = vpack.c.b16 %v1504, %v1492
        %v1829 = vpack.c.b16 %v1505, %v1493
        %v1830 = vpack.c.b16 %v1518, %v1506
        %v1831 = vpack.c.b16 %v1519, %v1507
        %v1832 = vpack.c.b16 %v1520, %v1508
        %v1833 = vpack.c.b16 %v1521, %v1509
        %v1834 = vpack.c.b16 %v1522, %v1510
        %v1835 = vpack.c.b16 %v1523, %v1511
        %v1836 = vpack.c.b16 %v1524, %v1512
        %v1837 = vpack.c.b16 %v1525, %v1513
        %v1838 = vpack.c.b16 %v1526, %v1514
        %v1839 = vpack.c.b16 %v1527, %v1515
        %v1840 = vpack.c.b16 %v1528, %v1516
        %v1841 = vpack.c.b16 %v1529, %v1517
        %v1842 = vpack.c.b16 %v1542, %v1530
        %v1843 = vpack.c.b16 %v1543, %v1531
        %v1844 = vpack.c.b16 %v1544, %v1532
        %v1845 = vpack.c.b16 %v1545, %v1533
        %v1846 = vpack.c.b16 %v1546, %v1534
        %v1847 = vpack.c.b16 %v1547, %v1535
        %v1848 = vpack.c.b16 %v1548, %v1536
        %v1849 = vpack.c.b16 %v1549, %v1537
        %v1850 = vpack.c.b16 %v1550, %v1538
        %v1851 = vpack.c.b16 %v1551, %v1539
        %v1852 = vpack.c.b16 %v1552, %v1540
        %v1853 = vpack.c.b16 %v1553, %v1541
        %v1854 = vpack.c.b16 %v1566, %v1554
        %v1855 = vpack.c.b16 %v1567, %v1555
        %v1856 = vpack.c.b16 %v1568, %v1556
        %v1857 = vpack.c.b16 %v1569, %v1557
        %v1858 = vpack.c.b16 %v1570, %v1558
        %v1859 = vpack.c.b16 %v1571, %v1559
        %v1860 = vpack.c.b16 %v1572, %v1560
        %v1861 = vpack.c.b16 %v1573, %v1561
        %v1862 = vpack.c.b16 %v1574, %v1562
        %v1863 = vpack.c.b16 %v1575, %v1563
        %v1864 = vpack.c.b16 %v1576, %v1564
        %v1865 = vpack.c.b16 %v1577, %v1565
        %v1866 = vpack.c.b16 %v1590, %v1578
        %v1867 = vpack.c.b16 %v1591, %v1579
        %v1868 = vpack.c.b16 %v1592, %v1580
        %v1869 = vpack.c.b16 %v1593, %v1581
        %v1870 = vpack.c.b16 %v1594, %v1582
        %v1871 = vpack.c.b16 %v1595, %v1583
        %v1872 = vpack.c.b16 %v1596, %v1584
        %v1873 = vpack.c.b16 %v1597, %v1585
        %v1874 = vpack.c.b16 %v1598, %v1586
        %v1875 = vpack.c.b16 %v1599, %v1587
        %v1876 = vpack.c.b16 %v1600, %v1588
        %v1877 = vpack.c.b16 %v1601, %v1589
        %v1878 = vpack.c.b16 %v1614, %v1602
        %v1879 = vpack.c.b16 %v1615, %v1603
        %v1880 = vpack.c.b16 %v1616, %v1604
        %v1881 = vpack.c.b16 %v1617, %v1605
        %v1882 = vpack.c.b16 %v1618, %v1606
        %v1883 = vpack.c.b16 %v1619, %v1607
        %v1884 = vpack.c.b16 %v1620, %v1608
        %v1885 = vpack.c.b16 %v1621, %v1609
        %v1886 = vpack.c.b16 %v1622, %v1610
        %v1887 = vpack.c.b16 %v1623, %v1611
        %v1888 = vpack.c.b16 %v1624, %v1612
        %v1889 = vpack.c.b16 %v1625, %v1613
        %v1890 = vpack.c.b16 %v1638, %v1626
        %v1891 = vpack.c.b16 %v1639, %v1627
        %v1892 = vpack.c.b16 %v1640, %v1628
        %v1893 = vpack.c.b16 %v1641, %v1629
        %v1894 = vpack.c.b16 %v1642, %v1630
        %v1895 = vpack.c.b16 %v1643, %v1631
        %v1896 = vpack.c.b16 %v1644, %v1632
        %v1897 = vpack.c.b16 %v1645, %v1633
        %v1898 = vpack.c.b16 %v1646, %v1634
        %v1899 = vpack.c.b16 %v1647, %v1635
        %v1900 = vpack.c.b16 %v1648, %v1636
        %v1901 = vpack.c.b16 %v1649, %v1637
        %v1902 = vpack.c.b16 %v1662, %v1650
        %v1903 = vpack.c.b16 %v1663, %v1651
        %v1904 = vpack.c.b16 %v1664, %v1652
        %v1905 = vpack.c.b16 %v1665, %v1653
        %v1906 = vpack.c.b16 %v1666, %v1654
        %v1907 = vpack.c.b16 %v1667, %v1655
        %v1908 = vpack.c.b16 %v1668, %v1656
        %v1909 = vpack.c.b16 %v1669, %v1657
        %v1910 = vpack.c.b16 %v1670, %v1658
        %v1911 = vpack.c.b16 %v1671, %v1659
        %v1912 = vpack.c.b16 %v1672, %v1660
        %v1913 = vpack.c.b16 %v1673, %v1661
        %v1914 = vpack.c.b16 %v1686, %v1674
        %v1915 = vpack.c.b16 %v1687, %v1675
        %v1916 = vpack.c.b16 %v1688, %v1676
        %v1917 = vpack.c.b16 %v1689, %v1677
        %v1918 = vpack.c.b16 %v1690, %v1678
        %v1919 = vpack.c.b16 %v1691, %v1679
        %v1920 = vpack.c.b16 %v1692, %v1680
        %v1921 = vpack.c.b16 %v1693, %v1681
        %v1922 = vpack.c.b16 %v1694, %v1682
        %v1923 = vpack.c.b16 %v1695, %v1683
        %v1924 = vpack.c.b16 %v1696, %v1684
        %v1925 = vpack.c.b16 %v1697, %v1685
        %v1926 = vpack.c.b16 %v1710, %v1698
        %v1927 = vpack.c.b16 %v1711, %v1699
        %v1928 = vpack.c.b16 %v1712, %v1700
        %v1929 = vpack.c.b16 %v1713, %v1701
        %v1930 = vpack.c.b16 %v1714, %v1702
        %v1931 = vpack.c.b16 %v1715, %v1703
        %v1932 = vpack.c.b16 %v1716, %v1704
        %v1933 = vpack.c.b16 %v1717, %v1705
        %v1934 = vpack.c.b16 %v1718, %v1706
        %v1935 = vpack.c.b16 %v1719, %v1707
        %v1936 = vpack.c.b16 %v1720, %v1708
        %v1937 = vpack.c.b16 %v1721, %v1709
        %v1938 = vpack.c.b16 %v1734, %v1722
        %v1939 = vpack.c.b16 %v1735, %v1723
        %v1940 = vpack.c.b16 %v1736, %v1724
        %v1941 = vpack.c.b16 %v1737, %v1725
        %v1942 = vpack.c.b16 %v1738, %v1726
        %v1943 = vpack.c.b16 %v1739, %v1727
        %v1944 = vpack.c.b16 %v1740, %v1728
        %v1945 = vpack.c.b16 %v1741, %v1729
        %v1946 = vpack.c.b16 %v1742, %v1730
        %v1947 = vpack.c.b16 %v1743, %v1731
        %v1948 = vpack.c.b16 %v1744, %v1732
        %v1949 = vpack.c.b16 %v1745, %v1733
        %v1950 = vpack.c.b16 %v1758, %v1746
        %v1951 = vpack.c.b16 %v1759, %v1747
        %v1952 = vpack.c.b16 %v1760, %v1748
        %v1953 = vpack.c.b16 %v1761, %v1749
        %v1954 = vpack.c.b16 %v1762, %v1750
        %v1955 = vpack.c.b16 %v1763, %v1751
        %v1956 = vpack.c.b16 %v1764, %v1752
        %v1957 = vpack.c.b16 %v1765, %v1753
        %v1958 = vpack.c.b16 %v1766, %v1754
        %v1959 = vpack.c.b16 %v1767, %v1755
        %v1960 = vpack.c.b16 %v1768, %v1756
        %v1961 = vpack.c.b16 %v1769, %v1757
        %2154 = vmatpush.bf16.msra.mxu0 %v1854
        %2155 = vmatpush.bf16.msra.mxu0 %v1842
        %2156 = vmatpush.bf16.msra.mxu0 %v1830
        %2157 = vmatpush.bf16.msra.mxu0 %v1818
        %2158 = vmatpush.bf16.msra.mxu0 %v1806
        %2159 = vmatpush.bf16.msra.mxu0 %v1794
        %2160 = vmatpush.bf16.msra.mxu0 %v1782
        %2161 = vmatpush.bf16.msra.mxu0 %v1770
        %2162 = vmatmul.bf16.gmra.mxu0 %v680
        %v2163 = vpop.f32.mrf.mxu0
        %v2164 = vadd.f32 0.0, %v2163
        %v2165 = vpop.f32.mrf.mxu0
        %v2166 = vadd.f32 0.0, %v2165
        %2167 = vmatmul.bf16.gmra.mxu0 %v682
        %v2168 = vpop.f32.mrf.mxu0
        %v2169 = vadd.f32 0.0, %v2168
        %v2170 = vpop.f32.mrf.mxu0
        %v2171 = vadd.f32 0.0, %v2170
        %2172 = vmatmul.bf16.gmra.mxu0 %v684
        %v2173 = vpop.f32.mrf.mxu0
        %v2174 = vadd.f32 0.0, %v2173
        %v2175 = vpop.f32.mrf.mxu0
        %v2176 = vadd.f32 0.0, %v2175
        %2177 = vmatmul.bf16.gmra.mxu0 %v686
        %v2178 = vpop.f32.mrf.mxu0
        %v2179 = vadd.f32 0.0, %v2178
        %v2180 = vpop.f32.mrf.mxu0
        %v2181 = vadd.f32 0.0, %v2180
        %2182 = vdwg.mxu0
        %2183 = vmatpush.bf16.msra.mxu0 %v1950
        %2184 = vmatpush.bf16.msra.mxu0 %v1938
        %2185 = vmatpush.bf16.msra.mxu0 %v1926
        %2186 = vmatpush.bf16.msra.mxu0 %v1914
        %2187 = vmatpush.bf16.msra.mxu0 %v1902
        %2188 = vmatpush.bf16.msra.mxu0 %v1890
        %2189 = vmatpush.bf16.msra.mxu0 %v1878
        %2190 = vmatpush.bf16.msra.mxu0 %v1866
        %2191 = vmatmul.bf16.gmra.mxu0 %v681
        %v2192 = vpop.f32.mrf.mxu0
        %v2193 = vadd.f32 %v2164, %v2192
        %v2194 = vpop.f32.mrf.mxu0
        %v2195 = vadd.f32 %v2166, %v2194
        %2196 = vmatmul.bf16.gmra.mxu0 %v683
        %v2197 = vpop.f32.mrf.mxu0
        %v2198 = vadd.f32 %v2169, %v2197
        %v2199 = vpop.f32.mrf.mxu0
        %v2200 = vadd.f32 %v2171, %v2199
        %2201 = vmatmul.bf16.gmra.mxu0 %v685
        %v2202 = vpop.f32.mrf.mxu0
        %v2203 = vadd.f32 %v2174, %v2202
        %v2204 = vpop.f32.mrf.mxu0
        %v2205 = vadd.f32 %v2176, %v2204
        %2206 = vmatmul.bf16.gmra.mxu0 %v687
        %v2207 = vpop.f32.mrf.mxu0
        %v2208 = vadd.f32 %v2179, %v2207
        %v2209 = vpop.f32.mrf.mxu0
        %v2210 = vadd.f32 %v2181, %v2209
        %2211 = vdwg.mxu0
        %2212 = vmatpush.bf16.msra.mxu0 %v1855
        %2213 = vmatpush.bf16.msra.mxu0 %v1843
        %2214 = vmatpush.bf16.msra.mxu0 %v1831
        %2215 = vmatpush.bf16.msra.mxu0 %v1819
        %2216 = vmatpush.bf16.msra.mxu0 %v1807
        %2217 = vmatpush.bf16.msra.mxu0 %v1795
        %2218 = vmatpush.bf16.msra.mxu0 %v1783
        %2219 = vmatpush.bf16.msra.mxu0 %v1771
        %2220 = vmatmul.bf16.gmra.mxu0 %v680
        %v2221 = vpop.f32.mrf.mxu0
        %v2222 = vadd.f32 0.0, %v2221
        %v2223 = vpop.f32.mrf.mxu0
        %v2224 = vadd.f32 0.0, %v2223
        %2225 = vmatmul.bf16.gmra.mxu0 %v682
        %v2226 = vpop.f32.mrf.mxu0
        %v2227 = vadd.f32 0.0, %v2226
        %v2228 = vpop.f32.mrf.mxu0
        %v2229 = vadd.f32 0.0, %v2228
        %2230 = vmatmul.bf16.gmra.mxu0 %v684
        %v2231 = vpop.f32.mrf.mxu0
        %v2232 = vadd.f32 0.0, %v2231
        %v2233 = vpop.f32.mrf.mxu0
        %v2234 = vadd.f32 0.0, %v2233
        %2235 = vmatmul.bf16.gmra.mxu0 %v686
        %v2236 = vpop.f32.mrf.mxu0
        %v2237 = vadd.f32 0.0, %v2236
        %v2238 = vpop.f32.mrf.mxu0
        %v2239 = vadd.f32 0.0, %v2238
        %2240 = vdwg.mxu0
        %2241 = vmatpush.bf16.msra.mxu0 %v1951
        %2242 = vmatpush.bf16.msra.mxu0 %v1939
        %2243 = vmatpush.bf16.msra.mxu0 %v1927
        %2244 = vmatpush.bf16.msra.mxu0 %v1915
        %2245 = vmatpush.bf16.msra.mxu0 %v1903
        %2246 = vmatpush.bf16.msra.mxu0 %v1891
        %2247 = vmatpush.bf16.msra.mxu0 %v1879
        %2248 = vmatpush.bf16.msra.mxu0 %v1867
        %2249 = vmatmul.bf16.gmra.mxu0 %v681
        %v2250 = vpop.f32.mrf.mxu0
        %v2251 = vadd.f32 %v2222, %v2250
        %v2252 = vpop.f32.mrf.mxu0
        %v2253 = vadd.f32 %v2224, %v2252
        %2254 = vmatmul.bf16.gmra.mxu0 %v683
        %v2255 = vpop.f32.mrf.mxu0
        %v2256 = vadd.f32 %v2227, %v2255
        %v2257 = vpop.f32.mrf.mxu0
        %v2258 = vadd.f32 %v2229, %v2257
        %2259 = vmatmul.bf16.gmra.mxu0 %v685
        %v2260 = vpop.f32.mrf.mxu0
        %v2261 = vadd.f32 %v2232, %v2260
        %v2262 = vpop.f32.mrf.mxu0
        %v2263 = vadd.f32 %v2234, %v2262
        %2264 = vmatmul.bf16.gmra.mxu0 %v687
        %v2265 = vpop.f32.mrf.mxu0
        %v2266 = vadd.f32 %v2237, %v2265
        %v2267 = vpop.f32.mrf.mxu0
        %v2268 = vadd.f32 %v2239, %v2267
        %2269 = vdwg.mxu0
        %2270 = vmatpush.bf16.msra.mxu0 %v1856
        %2271 = vmatpush.bf16.msra.mxu0 %v1844
        %2272 = vmatpush.bf16.msra.mxu0 %v1832
        %2273 = vmatpush.bf16.msra.mxu0 %v1820
        %2274 = vmatpush.bf16.msra.mxu0 %v1808
        %2275 = vmatpush.bf16.msra.mxu0 %v1796
        %2276 = vmatpush.bf16.msra.mxu0 %v1784
        %2277 = vmatpush.bf16.msra.mxu0 %v1772
        %2278 = vmatmul.bf16.gmra.mxu0 %v680
        %v2279 = vpop.f32.mrf.mxu0
        %v2280 = vadd.f32 0.0, %v2279
        %v2281 = vpop.f32.mrf.mxu0
        %v2282 = vadd.f32 0.0, %v2281
        %2283 = vmatmul.bf16.gmra.mxu0 %v682
        %v2284 = vpop.f32.mrf.mxu0
        %v2285 = vadd.f32 0.0, %v2284
        %v2286 = vpop.f32.mrf.mxu0
        %v2287 = vadd.f32 0.0, %v2286
        %2288 = vmatmul.bf16.gmra.mxu0 %v684
        %v2289 = vpop.f32.mrf.mxu0
        %v2290 = vadd.f32 0.0, %v2289
        %v2291 = vpop.f32.mrf.mxu0
        %v2292 = vadd.f32 0.0, %v2291
        %2293 = vmatmul.bf16.gmra.mxu0 %v686
        %v2294 = vpop.f32.mrf.mxu0
        %v2295 = vadd.f32 0.0, %v2294
        %v2296 = vpop.f32.mrf.mxu0
        %v2297 = vadd.f32 0.0, %v2296
        %2298 = vdwg.mxu0
        %2299 = vmatpush.bf16.msra.mxu0 %v1952
        %2300 = vmatpush.bf16.msra.mxu0 %v1940
        %2301 = vmatpush.bf16.msra.mxu0 %v1928
        %2302 = vmatpush.bf16.msra.mxu0 %v1916
        %2303 = vmatpush.bf16.msra.mxu0 %v1904
        %2304 = vmatpush.bf16.msra.mxu0 %v1892
        %2305 = vmatpush.bf16.msra.mxu0 %v1880
        %2306 = vmatpush.bf16.msra.mxu0 %v1868
        %2307 = vmatmul.bf16.gmra.mxu0 %v681
        %v2308 = vpop.f32.mrf.mxu0
        %v2309 = vadd.f32 %v2280, %v2308
        %v2310 = vpop.f32.mrf.mxu0
        %v2311 = vadd.f32 %v2282, %v2310
        %2312 = vmatmul.bf16.gmra.mxu0 %v683
        %v2313 = vpop.f32.mrf.mxu0
        %v2314 = vadd.f32 %v2285, %v2313
        %v2315 = vpop.f32.mrf.mxu0
        %v2316 = vadd.f32 %v2287, %v2315
        %2317 = vmatmul.bf16.gmra.mxu0 %v685
        %v2318 = vpop.f32.mrf.mxu0
        %v2319 = vadd.f32 %v2290, %v2318
        %v2320 = vpop.f32.mrf.mxu0
        %v2321 = vadd.f32 %v2292, %v2320
        %2322 = vmatmul.bf16.gmra.mxu0 %v687
        %v2323 = vpop.f32.mrf.mxu0
        %v2324 = vadd.f32 %v2295, %v2323
        %v2325 = vpop.f32.mrf.mxu0
        %v2326 = vadd.f32 %v2297, %v2325
        %2327 = vdwg.mxu0
        %2328 = vmatpush.bf16.msra.mxu0 %v1857
        %2329 = vmatpush.bf16.msra.mxu0 %v1845
        %2330 = vmatpush.bf16.msra.mxu0 %v1833
        %2331 = vmatpush.bf16.msra.mxu0 %v1821
        %2332 = vmatpush.bf16.msra.mxu0 %v1809
        %2333 = vmatpush.bf16.msra.mxu0 %v1797
        %2334 = vmatpush.bf16.msra.mxu0 %v1785
        %2335 = vmatpush.bf16.msra.mxu0 %v1773
        %2336 = vmatmul.bf16.gmra.mxu0 %v680
        %v2337 = vpop.f32.mrf.mxu0
        %v2338 = vadd.f32 0.0, %v2337
        %v2339 = vpop.f32.mrf.mxu0
        %v2340 = vadd.f32 0.0, %v2339
        %2341 = vmatmul.bf16.gmra.mxu0 %v682
        %v2342 = vpop.f32.mrf.mxu0
        %v2343 = vadd.f32 0.0, %v2342
        %v2344 = vpop.f32.mrf.mxu0
        %v2345 = vadd.f32 0.0, %v2344
        %2346 = vmatmul.bf16.gmra.mxu0 %v684
        %v2347 = vpop.f32.mrf.mxu0
        %v2348 = vadd.f32 0.0, %v2347
        %v2349 = vpop.f32.mrf.mxu0
        %v2350 = vadd.f32 0.0, %v2349
        %2351 = vmatmul.bf16.gmra.mxu0 %v686
        %v2352 = vpop.f32.mrf.mxu0
        %v2353 = vadd.f32 0.0, %v2352
        %v2354 = vpop.f32.mrf.mxu0
        %v2355 = vadd.f32 0.0, %v2354
        %2356 = vdwg.mxu0
        %2357 = vmatpush.bf16.msra.mxu0 %v1953
        %2358 = vmatpush.bf16.msra.mxu0 %v1941
        %2359 = vmatpush.bf16.msra.mxu0 %v1929
        %2360 = vmatpush.bf16.msra.mxu0 %v1917
        %2361 = vmatpush.bf16.msra.mxu0 %v1905
        %2362 = vmatpush.bf16.msra.mxu0 %v1893
        %2363 = vmatpush.bf16.msra.mxu0 %v1881
        %2364 = vmatpush.bf16.msra.mxu0 %v1869
        %2365 = vmatmul.bf16.gmra.mxu0 %v681
        %v2366 = vpop.f32.mrf.mxu0
        %v2367 = vadd.f32 %v2338, %v2366
        %v2368 = vpop.f32.mrf.mxu0
        %v2369 = vadd.f32 %v2340, %v2368
        %2370 = vmatmul.bf16.gmra.mxu0 %v683
        %v2371 = vpop.f32.mrf.mxu0
        %v2372 = vadd.f32 %v2343, %v2371
        %v2373 = vpop.f32.mrf.mxu0
        %v2374 = vadd.f32 %v2345, %v2373
        %2375 = vmatmul.bf16.gmra.mxu0 %v685
        %v2376 = vpop.f32.mrf.mxu0
        %v2377 = vadd.f32 %v2348, %v2376
        %v2378 = vpop.f32.mrf.mxu0
        %v2379 = vadd.f32 %v2350, %v2378
        %2380 = vmatmul.bf16.gmra.mxu0 %v687
        %v2381 = vpop.f32.mrf.mxu0
        %v2382 = vadd.f32 %v2353, %v2381
        %v2383 = vpop.f32.mrf.mxu0
        %v2384 = vadd.f32 %v2355, %v2383
        %2385 = vdwg.mxu0
        %2386 = vmatpush.bf16.msra.mxu0 %v1858
        %2387 = vmatpush.bf16.msra.mxu0 %v1846
        %2388 = vmatpush.bf16.msra.mxu0 %v1834
        %2389 = vmatpush.bf16.msra.mxu0 %v1822
        %2390 = vmatpush.bf16.msra.mxu0 %v1810
        %2391 = vmatpush.bf16.msra.mxu0 %v1798
        %2392 = vmatpush.bf16.msra.mxu0 %v1786
        %2393 = vmatpush.bf16.msra.mxu0 %v1774
        %2394 = vmatmul.bf16.gmra.mxu0 %v680
        %v2395 = vpop.f32.mrf.mxu0
        %v2396 = vadd.f32 0.0, %v2395
        %v2397 = vpop.f32.mrf.mxu0
        %v2398 = vadd.f32 0.0, %v2397
        %2399 = vmatmul.bf16.gmra.mxu0 %v682
        %v2400 = vpop.f32.mrf.mxu0
        %v2401 = vadd.f32 0.0, %v2400
        %v2402 = vpop.f32.mrf.mxu0
        %v2403 = vadd.f32 0.0, %v2402
        %2404 = vmatmul.bf16.gmra.mxu0 %v684
        %v2405 = vpop.f32.mrf.mxu0
        %v2406 = vadd.f32 0.0, %v2405
        %v2407 = vpop.f32.mrf.mxu0
        %v2408 = vadd.f32 0.0, %v2407
        %2409 = vmatmul.bf16.gmra.mxu0 %v686
        %v2410 = vpop.f32.mrf.mxu0
        %v2411 = vadd.f32 0.0, %v2410
        %v2412 = vpop.f32.mrf.mxu0
        %v2413 = vadd.f32 0.0, %v2412
        %2414 = vdwg.mxu0
        %2415 = vmatpush.bf16.msra.mxu0 %v1954
        %2416 = vmatpush.bf16.msra.mxu0 %v1942
        %2417 = vmatpush.bf16.msra.mxu0 %v1930
        %2418 = vmatpush.bf16.msra.mxu0 %v1918
        %2419 = vmatpush.bf16.msra.mxu0 %v1906
        %2420 = vmatpush.bf16.msra.mxu0 %v1894
        %2421 = vmatpush.bf16.msra.mxu0 %v1882
        %2422 = vmatpush.bf16.msra.mxu0 %v1870
        %2423 = vmatmul.bf16.gmra.mxu0 %v681
        %v2424 = vpop.f32.mrf.mxu0
        %v2425 = vadd.f32 %v2396, %v2424
        %v2426 = vpop.f32.mrf.mxu0
        %v2427 = vadd.f32 %v2398, %v2426
        %2428 = vmatmul.bf16.gmra.mxu0 %v683
        %v2429 = vpop.f32.mrf.mxu0
        %v2430 = vadd.f32 %v2401, %v2429
        %v2431 = vpop.f32.mrf.mxu0
        %v2432 = vadd.f32 %v2403, %v2431
        %2433 = vmatmul.bf16.gmra.mxu0 %v685
        %v2434 = vpop.f32.mrf.mxu0
        %v2435 = vadd.f32 %v2406, %v2434
        %v2436 = vpop.f32.mrf.mxu0
        %v2437 = vadd.f32 %v2408, %v2436
        %2438 = vmatmul.bf16.gmra.mxu0 %v687
        %v2439 = vpop.f32.mrf.mxu0
        %v2440 = vadd.f32 %v2411, %v2439
        %v2441 = vpop.f32.mrf.mxu0
        %v2442 = vadd.f32 %v2413, %v2441
        %2443 = vdwg.mxu0
        %2444 = vmatpush.bf16.msra.mxu0 %v1859
        %2445 = vmatpush.bf16.msra.mxu0 %v1847
        %2446 = vmatpush.bf16.msra.mxu0 %v1835
        %2447 = vmatpush.bf16.msra.mxu0 %v1823
        %2448 = vmatpush.bf16.msra.mxu0 %v1811
        %2449 = vmatpush.bf16.msra.mxu0 %v1799
        %2450 = vmatpush.bf16.msra.mxu0 %v1787
        %2451 = vmatpush.bf16.msra.mxu0 %v1775
        %2452 = vmatmul.bf16.gmra.mxu0 %v680
        %v2453 = vpop.f32.mrf.mxu0
        %v2454 = vadd.f32 0.0, %v2453
        %v2455 = vpop.f32.mrf.mxu0
        %v2456 = vadd.f32 0.0, %v2455
        %2457 = vmatmul.bf16.gmra.mxu0 %v682
        %v2458 = vpop.f32.mrf.mxu0
        %v2459 = vadd.f32 0.0, %v2458
        %v2460 = vpop.f32.mrf.mxu0
        %v2461 = vadd.f32 0.0, %v2460
        %2462 = vmatmul.bf16.gmra.mxu0 %v684
        %v2463 = vpop.f32.mrf.mxu0
        %v2464 = vadd.f32 0.0, %v2463
        %v2465 = vpop.f32.mrf.mxu0
        %v2466 = vadd.f32 0.0, %v2465
        %2467 = vmatmul.bf16.gmra.mxu0 %v686
        %v2468 = vpop.f32.mrf.mxu0
        %v2469 = vadd.f32 0.0, %v2468
        %v2470 = vpop.f32.mrf.mxu0
        %v2471 = vadd.f32 0.0, %v2470
        %2472 = vdwg.mxu0
        %2473 = vmatpush.bf16.msra.mxu0 %v1955
        %2474 = vmatpush.bf16.msra.mxu0 %v1943
        %2475 = vmatpush.bf16.msra.mxu0 %v1931
        %2476 = vmatpush.bf16.msra.mxu0 %v1919
        %2477 = vmatpush.bf16.msra.mxu0 %v1907
        %2478 = vmatpush.bf16.msra.mxu0 %v1895
        %2479 = vmatpush.bf16.msra.mxu0 %v1883
        %2480 = vmatpush.bf16.msra.mxu0 %v1871
        %2481 = vmatmul.bf16.gmra.mxu0 %v681
        %v2482 = vpop.f32.mrf.mxu0
        %v2483 = vadd.f32 %v2454, %v2482
        %v2484 = vpop.f32.mrf.mxu0
        %v2485 = vadd.f32 %v2456, %v2484
        %2486 = vmatmul.bf16.gmra.mxu0 %v683
        %v2487 = vpop.f32.mrf.mxu0
        %v2488 = vadd.f32 %v2459, %v2487
        %v2489 = vpop.f32.mrf.mxu0
        %v2490 = vadd.f32 %v2461, %v2489
        %2491 = vmatmul.bf16.gmra.mxu0 %v685
        %v2492 = vpop.f32.mrf.mxu0
        %v2493 = vadd.f32 %v2464, %v2492
        %v2494 = vpop.f32.mrf.mxu0
        %v2495 = vadd.f32 %v2466, %v2494
        %2496 = vmatmul.bf16.gmra.mxu0 %v687
        %v2497 = vpop.f32.mrf.mxu0
        %v2498 = vadd.f32 %v2469, %v2497
        %v2499 = vpop.f32.mrf.mxu0
        %v2500 = vadd.f32 %v2471, %v2499
        %2501 = vdwg.mxu0
        %2502 = vmatpush.bf16.msra.mxu0 %v1860
        %2503 = vmatpush.bf16.msra.mxu0 %v1848
        %2504 = vmatpush.bf16.msra.mxu0 %v1836
        %2505 = vmatpush.bf16.msra.mxu0 %v1824
        %2506 = vmatpush.bf16.msra.mxu0 %v1812
        %2507 = vmatpush.bf16.msra.mxu0 %v1800
        %2508 = vmatpush.bf16.msra.mxu0 %v1788
        %2509 = vmatpush.bf16.msra.mxu0 %v1776
        %2510 = vmatmul.bf16.gmra.mxu0 %v680
        %v2511 = vpop.f32.mrf.mxu0
        %v2512 = vadd.f32 0.0, %v2511
        %v2513 = vpop.f32.mrf.mxu0
        %v2514 = vadd.f32 0.0, %v2513
        %2515 = vmatmul.bf16.gmra.mxu0 %v682
        %v2516 = vpop.f32.mrf.mxu0
        %v2517 = vadd.f32 0.0, %v2516
        %v2518 = vpop.f32.mrf.mxu0
        %v2519 = vadd.f32 0.0, %v2518
        %2520 = vmatmul.bf16.gmra.mxu0 %v684
        %v2521 = vpop.f32.mrf.mxu0
        %v2522 = vadd.f32 0.0, %v2521
        %v2523 = vpop.f32.mrf.mxu0
        %v2524 = vadd.f32 0.0, %v2523
        %2525 = vmatmul.bf16.gmra.mxu0 %v686
        %v2526 = vpop.f32.mrf.mxu0
        %v2527 = vadd.f32 0.0, %v2526
        %v2528 = vpop.f32.mrf.mxu0
        %v2529 = vadd.f32 0.0, %v2528
        %2530 = vdwg.mxu0
        %2531 = vmatpush.bf16.msra.mxu0 %v1956
        %2532 = vmatpush.bf16.msra.mxu0 %v1944
        %2533 = vmatpush.bf16.msra.mxu0 %v1932
        %2534 = vmatpush.bf16.msra.mxu0 %v1920
        %2535 = vmatpush.bf16.msra.mxu0 %v1908
        %2536 = vmatpush.bf16.msra.mxu0 %v1896
        %2537 = vmatpush.bf16.msra.mxu0 %v1884
        %2538 = vmatpush.bf16.msra.mxu0 %v1872
        %2539 = vmatmul.bf16.gmra.mxu0 %v681
        %v2540 = vpop.f32.mrf.mxu0
        %v2541 = vadd.f32 %v2512, %v2540
        %v2542 = vpop.f32.mrf.mxu0
        %v2543 = vadd.f32 %v2514, %v2542
        %2544 = vmatmul.bf16.gmra.mxu0 %v683
        %v2545 = vpop.f32.mrf.mxu0
        %v2546 = vadd.f32 %v2517, %v2545
        %v2547 = vpop.f32.mrf.mxu0
        %v2548 = vadd.f32 %v2519, %v2547
        %2549 = vmatmul.bf16.gmra.mxu0 %v685
        %v2550 = vpop.f32.mrf.mxu0
        %v2551 = vadd.f32 %v2522, %v2550
        %v2552 = vpop.f32.mrf.mxu0
        %v2553 = vadd.f32 %v2524, %v2552
        %2554 = vmatmul.bf16.gmra.mxu0 %v687
        %v2555 = vpop.f32.mrf.mxu0
        %v2556 = vadd.f32 %v2527, %v2555
        %v2557 = vpop.f32.mrf.mxu0
        %v2558 = vadd.f32 %v2529, %v2557
        %2559 = vdwg.mxu0
        %2560 = vmatpush.bf16.msra.mxu0 %v1861
        %2561 = vmatpush.bf16.msra.mxu0 %v1849
        %2562 = vmatpush.bf16.msra.mxu0 %v1837
        %2563 = vmatpush.bf16.msra.mxu0 %v1825
        %2564 = vmatpush.bf16.msra.mxu0 %v1813
        %2565 = vmatpush.bf16.msra.mxu0 %v1801
        %2566 = vmatpush.bf16.msra.mxu0 %v1789
        %2567 = vmatpush.bf16.msra.mxu0 %v1777
        %2568 = vmatmul.bf16.gmra.mxu0 %v680
        %v2569 = vpop.f32.mrf.mxu0
        %v2570 = vadd.f32 0.0, %v2569
        %v2571 = vpop.f32.mrf.mxu0
        %v2572 = vadd.f32 0.0, %v2571
        %2573 = vmatmul.bf16.gmra.mxu0 %v682
        %v2574 = vpop.f32.mrf.mxu0
        %v2575 = vadd.f32 0.0, %v2574
        %v2576 = vpop.f32.mrf.mxu0
        %v2577 = vadd.f32 0.0, %v2576
        %2578 = vmatmul.bf16.gmra.mxu0 %v684
        %v2579 = vpop.f32.mrf.mxu0
        %v2580 = vadd.f32 0.0, %v2579
        %v2581 = vpop.f32.mrf.mxu0
        %v2582 = vadd.f32 0.0, %v2581
        %2583 = vmatmul.bf16.gmra.mxu0 %v686
        %v2584 = vpop.f32.mrf.mxu0
        %v2585 = vadd.f32 0.0, %v2584
        %v2586 = vpop.f32.mrf.mxu0
        %v2587 = vadd.f32 0.0, %v2586
        %2588 = vdwg.mxu0
        %2589 = vmatpush.bf16.msra.mxu0 %v1957
        %2590 = vmatpush.bf16.msra.mxu0 %v1945
        %2591 = vmatpush.bf16.msra.mxu0 %v1933
        %2592 = vmatpush.bf16.msra.mxu0 %v1921
        %2593 = vmatpush.bf16.msra.mxu0 %v1909
        %2594 = vmatpush.bf16.msra.mxu0 %v1897
        %2595 = vmatpush.bf16.msra.mxu0 %v1885
        %2596 = vmatpush.bf16.msra.mxu0 %v1873
        %2597 = vmatmul.bf16.gmra.mxu0 %v681
        %v2598 = vpop.f32.mrf.mxu0
        %v2599 = vadd.f32 %v2570, %v2598
        %v2600 = vpop.f32.mrf.mxu0
        %v2601 = vadd.f32 %v2572, %v2600
        %2602 = vmatmul.bf16.gmra.mxu0 %v683
        %v2603 = vpop.f32.mrf.mxu0
        %v2604 = vadd.f32 %v2575, %v2603
        %v2605 = vpop.f32.mrf.mxu0
        %v2606 = vadd.f32 %v2577, %v2605
        %2607 = vmatmul.bf16.gmra.mxu0 %v685
        %v2608 = vpop.f32.mrf.mxu0
        %v2609 = vadd.f32 %v2580, %v2608
        %v2610 = vpop.f32.mrf.mxu0
        %v2611 = vadd.f32 %v2582, %v2610
        %2612 = vmatmul.bf16.gmra.mxu0 %v687
        %v2613 = vpop.f32.mrf.mxu0
        %v2614 = vadd.f32 %v2585, %v2613
        %v2615 = vpop.f32.mrf.mxu0
        %v2616 = vadd.f32 %v2587, %v2615
        %2617 = vdwg.mxu0
        %2618 = vmatpush.bf16.msra.mxu0 %v1862
        %2619 = vmatpush.bf16.msra.mxu0 %v1850
        %2620 = vmatpush.bf16.msra.mxu0 %v1838
        %2621 = vmatpush.bf16.msra.mxu0 %v1826
        %2622 = vmatpush.bf16.msra.mxu0 %v1814
        %2623 = vmatpush.bf16.msra.mxu0 %v1802
        %2624 = vmatpush.bf16.msra.mxu0 %v1790
        %2625 = vmatpush.bf16.msra.mxu0 %v1778
        %2626 = vmatmul.bf16.gmra.mxu0 %v680
        %v2627 = vpop.f32.mrf.mxu0
        %v2628 = vadd.f32 0.0, %v2627
        %v2629 = vpop.f32.mrf.mxu0
        %v2630 = vadd.f32 0.0, %v2629
        %2631 = vmatmul.bf16.gmra.mxu0 %v682
        %v2632 = vpop.f32.mrf.mxu0
        %v2633 = vadd.f32 0.0, %v2632
        %v2634 = vpop.f32.mrf.mxu0
        %v2635 = vadd.f32 0.0, %v2634
        %2636 = vmatmul.bf16.gmra.mxu0 %v684
        %v2637 = vpop.f32.mrf.mxu0
        %v2638 = vadd.f32 0.0, %v2637
        %v2639 = vpop.f32.mrf.mxu0
        %v2640 = vadd.f32 0.0, %v2639
        %2641 = vmatmul.bf16.gmra.mxu0 %v686
        %v2642 = vpop.f32.mrf.mxu0
        %v2643 = vadd.f32 0.0, %v2642
        %v2644 = vpop.f32.mrf.mxu0
        %v2645 = vadd.f32 0.0, %v2644
        %2646 = vdwg.mxu0
        %2647 = vmatpush.bf16.msra.mxu0 %v1958
        %2648 = vmatpush.bf16.msra.mxu0 %v1946
        %2649 = vmatpush.bf16.msra.mxu0 %v1934
        %2650 = vmatpush.bf16.msra.mxu0 %v1922
        %2651 = vmatpush.bf16.msra.mxu0 %v1910
        %2652 = vmatpush.bf16.msra.mxu0 %v1898
        %2653 = vmatpush.bf16.msra.mxu0 %v1886
        %2654 = vmatpush.bf16.msra.mxu0 %v1874
        %2655 = vmatmul.bf16.gmra.mxu0 %v681
        %v2656 = vpop.f32.mrf.mxu0
        %v2657 = vadd.f32 %v2628, %v2656
        %v2658 = vpop.f32.mrf.mxu0
        %v2659 = vadd.f32 %v2630, %v2658
        %2660 = vmatmul.bf16.gmra.mxu0 %v683
        %v2661 = vpop.f32.mrf.mxu0
        %v2662 = vadd.f32 %v2633, %v2661
        %v2663 = vpop.f32.mrf.mxu0
        %v2664 = vadd.f32 %v2635, %v2663
        %2665 = vmatmul.bf16.gmra.mxu0 %v685
        %v2666 = vpop.f32.mrf.mxu0
        %v2667 = vadd.f32 %v2638, %v2666
        %v2668 = vpop.f32.mrf.mxu0
        %v2669 = vadd.f32 %v2640, %v2668
        %2670 = vmatmul.bf16.gmra.mxu0 %v687
        %v2671 = vpop.f32.mrf.mxu0
        %v2672 = vadd.f32 %v2643, %v2671
        %v2673 = vpop.f32.mrf.mxu0
        %v2674 = vadd.f32 %v2645, %v2673
        %2675 = vdwg.mxu0
        %2676 = vmatpush.bf16.msra.mxu0 %v1863
        %2677 = vmatpush.bf16.msra.mxu0 %v1851
        %2678 = vmatpush.bf16.msra.mxu0 %v1839
        %2679 = vmatpush.bf16.msra.mxu0 %v1827
        %2680 = vmatpush.bf16.msra.mxu0 %v1815
        %2681 = vmatpush.bf16.msra.mxu0 %v1803
        %2682 = vmatpush.bf16.msra.mxu0 %v1791
        %2683 = vmatpush.bf16.msra.mxu0 %v1779
        %2684 = vmatmul.bf16.gmra.mxu0 %v680
        %v2685 = vpop.f32.mrf.mxu0
        %v2686 = vadd.f32 0.0, %v2685
        %v2687 = vpop.f32.mrf.mxu0
        %v2688 = vadd.f32 0.0, %v2687
        %2689 = vmatmul.bf16.gmra.mxu0 %v682
        %v2690 = vpop.f32.mrf.mxu0
        %v2691 = vadd.f32 0.0, %v2690
        %v2692 = vpop.f32.mrf.mxu0
        %v2693 = vadd.f32 0.0, %v2692
        %2694 = vmatmul.bf16.gmra.mxu0 %v684
        %v2695 = vpop.f32.mrf.mxu0
        %v2696 = vadd.f32 0.0, %v2695
        %v2697 = vpop.f32.mrf.mxu0
        %v2698 = vadd.f32 0.0, %v2697
        %2699 = vmatmul.bf16.gmra.mxu0 %v686
        %v2700 = vpop.f32.mrf.mxu0
        %v2701 = vadd.f32 0.0, %v2700
        %v2702 = vpop.f32.mrf.mxu0
        %v2703 = vadd.f32 0.0, %v2702
        %2704 = vdwg.mxu0
        %2705 = vmatpush.bf16.msra.mxu0 %v1959
        %2706 = vmatpush.bf16.msra.mxu0 %v1947
        %2707 = vmatpush.bf16.msra.mxu0 %v1935
        %2708 = vmatpush.bf16.msra.mxu0 %v1923
        %2709 = vmatpush.bf16.msra.mxu0 %v1911
        %2710 = vmatpush.bf16.msra.mxu0 %v1899
        %2711 = vmatpush.bf16.msra.mxu0 %v1887
        %2712 = vmatpush.bf16.msra.mxu0 %v1875
        %2713 = vmatmul.bf16.gmra.mxu0 %v681
        %v2714 = vpop.f32.mrf.mxu0
        %v2715 = vadd.f32 %v2686, %v2714
        %v2716 = vpop.f32.mrf.mxu0
        %v2717 = vadd.f32 %v2688, %v2716
        %2718 = vmatmul.bf16.gmra.mxu0 %v683
        %v2719 = vpop.f32.mrf.mxu0
        %v2720 = vadd.f32 %v2691, %v2719
        %v2721 = vpop.f32.mrf.mxu0
        %v2722 = vadd.f32 %v2693, %v2721
        %2723 = vmatmul.bf16.gmra.mxu0 %v685
        %v2724 = vpop.f32.mrf.mxu0
        %v2725 = vadd.f32 %v2696, %v2724
        %v2726 = vpop.f32.mrf.mxu0
        %v2727 = vadd.f32 %v2698, %v2726
        %2728 = vmatmul.bf16.gmra.mxu0 %v687
        %v2729 = vpop.f32.mrf.mxu0
        %v2730 = vadd.f32 %v2701, %v2729
        %v2731 = vpop.f32.mrf.mxu0
        %v2732 = vadd.f32 %v2703, %v2731
        %2733 = vdwg.mxu0
        %2734 = vmatpush.bf16.msra.mxu0 %v1864
        %2735 = vmatpush.bf16.msra.mxu0 %v1852
        %2736 = vmatpush.bf16.msra.mxu0 %v1840
        %2737 = vmatpush.bf16.msra.mxu0 %v1828
        %2738 = vmatpush.bf16.msra.mxu0 %v1816
        %2739 = vmatpush.bf16.msra.mxu0 %v1804
        %2740 = vmatpush.bf16.msra.mxu0 %v1792
        %2741 = vmatpush.bf16.msra.mxu0 %v1780
        %2742 = vmatmul.bf16.gmra.mxu0 %v680
        %v2743 = vpop.f32.mrf.mxu0
        %v2744 = vadd.f32 0.0, %v2743
        %v2745 = vpop.f32.mrf.mxu0
        %v2746 = vadd.f32 0.0, %v2745
        %2747 = vmatmul.bf16.gmra.mxu0 %v682
        %v2748 = vpop.f32.mrf.mxu0
        %v2749 = vadd.f32 0.0, %v2748
        %v2750 = vpop.f32.mrf.mxu0
        %v2751 = vadd.f32 0.0, %v2750
        %2752 = vmatmul.bf16.gmra.mxu0 %v684
        %v2753 = vpop.f32.mrf.mxu0
        %v2754 = vadd.f32 0.0, %v2753
        %v2755 = vpop.f32.mrf.mxu0
        %v2756 = vadd.f32 0.0, %v2755
        %2757 = vmatmul.bf16.gmra.mxu0 %v686
        %v2758 = vpop.f32.mrf.mxu0
        %v2759 = vadd.f32 0.0, %v2758
        %v2760 = vpop.f32.mrf.mxu0
        %v2761 = vadd.f32 0.0, %v2760
        %2762 = vdwg.mxu0
        %2763 = vmatpush.bf16.msra.mxu0 %v1960
        %2764 = vmatpush.bf16.msra.mxu0 %v1948
        %2765 = vmatpush.bf16.msra.mxu0 %v1936
        %2766 = vmatpush.bf16.msra.mxu0 %v1924
        %2767 = vmatpush.bf16.msra.mxu0 %v1912
        %2768 = vmatpush.bf16.msra.mxu0 %v1900
        %2769 = vmatpush.bf16.msra.mxu0 %v1888
        %2770 = vmatpush.bf16.msra.mxu0 %v1876
        %2771 = vmatmul.bf16.gmra.mxu0 %v681
        %v2772 = vpop.f32.mrf.mxu0
        %v2773 = vadd.f32 %v2744, %v2772
        %v2774 = vpop.f32.mrf.mxu0
        %v2775 = vadd.f32 %v2746, %v2774
        %2776 = vmatmul.bf16.gmra.mxu0 %v683
        %v2777 = vpop.f32.mrf.mxu0
        %v2778 = vadd.f32 %v2749, %v2777
        %v2779 = vpop.f32.mrf.mxu0
        %v2780 = vadd.f32 %v2751, %v2779
        %2781 = vmatmul.bf16.gmra.mxu0 %v685
        %v2782 = vpop.f32.mrf.mxu0
        %v2783 = vadd.f32 %v2754, %v2782
        %v2784 = vpop.f32.mrf.mxu0
        %v2785 = vadd.f32 %v2756, %v2784
        %2786 = vmatmul.bf16.gmra.mxu0 %v687
        %v2787 = vpop.f32.mrf.mxu0
        %v2788 = vadd.f32 %v2759, %v2787
        %v2789 = vpop.f32.mrf.mxu0
        %v2790 = vadd.f32 %v2761, %v2789
        %2791 = vdwg.mxu0
        %2792 = vmatpush.bf16.msra.mxu0 %v1865
        %2793 = vmatpush.bf16.msra.mxu0 %v1853
        %2794 = vmatpush.bf16.msra.mxu0 %v1841
        %2795 = vmatpush.bf16.msra.mxu0 %v1829
        %2796 = vmatpush.bf16.msra.mxu0 %v1817
        %2797 = vmatpush.bf16.msra.mxu0 %v1805
        %2798 = vmatpush.bf16.msra.mxu0 %v1793
        %2799 = vmatpush.bf16.msra.mxu0 %v1781
        %2800 = vmatmul.bf16.gmra.mxu0 %v680
        %v2801 = vpop.f32.mrf.mxu0
        %v2802 = vadd.f32 0.0, %v2801
        %v2803 = vpop.f32.mrf.mxu0
        %v2804 = vadd.f32 0.0, %v2803
        %2805 = vmatmul.bf16.gmra.mxu0 %v682
        %v2806 = vpop.f32.mrf.mxu0
        %v2807 = vadd.f32 0.0, %v2806
        %v2808 = vpop.f32.mrf.mxu0
        %v2809 = vadd.f32 0.0, %v2808
        %2810 = vmatmul.bf16.gmra.mxu0 %v684
        %v2811 = vpop.f32.mrf.mxu0
        %v2812 = vadd.f32 0.0, %v2811
        %v2813 = vpop.f32.mrf.mxu0
        %v2814 = vadd.f32 0.0, %v2813
        %2815 = vmatmul.bf16.gmra.mxu0 %v686
        %v2816 = vpop.f32.mrf.mxu0
        %v2817 = vadd.f32 0.0, %v2816
        %v2818 = vpop.f32.mrf.mxu0
        %v2819 = vadd.f32 0.0, %v2818
        %2820 = vdwg.mxu0
        %2821 = vmatpush.bf16.msra.mxu0 %v1961
        %2822 = vmatpush.bf16.msra.mxu0 %v1949
        %2823 = vmatpush.bf16.msra.mxu0 %v1937
        %2824 = vmatpush.bf16.msra.mxu0 %v1925
        %2825 = vmatpush.bf16.msra.mxu0 %v1913
        %2826 = vmatpush.bf16.msra.mxu0 %v1901
        %2827 = vmatpush.bf16.msra.mxu0 %v1889
        %2828 = vmatpush.bf16.msra.mxu0 %v1877
        %2829 = vmatmul.bf16.gmra.mxu0 %v681
        %v2830 = vpop.f32.mrf.mxu0
        %v2831 = vadd.f32 %v2802, %v2830
        %v2832 = vpop.f32.mrf.mxu0
        %v2833 = vadd.f32 %v2804, %v2832
        %2834 = vmatmul.bf16.gmra.mxu0 %v683
        %v2835 = vpop.f32.mrf.mxu0
        %v2836 = vadd.f32 %v2807, %v2835
        %v2837 = vpop.f32.mrf.mxu0
        %v2838 = vadd.f32 %v2809, %v2837
        %2839 = vmatmul.bf16.gmra.mxu0 %v685
        %v2840 = vpop.f32.mrf.mxu0
        %v2841 = vadd.f32 %v2812, %v2840
        %v2842 = vpop.f32.mrf.mxu0
        %v2843 = vadd.f32 %v2814, %v2842
        %2844 = vmatmul.bf16.gmra.mxu0 %v687
        %v2845 = vpop.f32.mrf.mxu0
        %v2846 = vadd.f32 %v2817, %v2845
        %v2847 = vpop.f32.mrf.mxu0
        %v2848 = vadd.f32 %v2819, %v2847
        %2849 = vdwg.mxu0
        %v2850 = vpack.c.bf16 %v2195, %v2193
        %v2851 = vpack.c.bf16 %v2253, %v2251
        %v2852 = vpack.c.bf16 %v2200, %v2198
        %v2853 = vpack.c.bf16 %v2258, %v2256
        %v2854 = vpack.c.bf16 %v2205, %v2203
        %v2855 = vpack.c.bf16 %v2263, %v2261
        %v2856 = vpack.c.bf16 %v2210, %v2208
        %v2857 = vpack.c.bf16 %v2268, %v2266
        %v2858 = vpack.c.bf16 %v2311, %v2309
        %v2859 = vpack.c.bf16 %v2369, %v2367
        %v2860 = vpack.c.bf16 %v2316, %v2314
        %v2861 = vpack.c.bf16 %v2374, %v2372
        %v2862 = vpack.c.bf16 %v2321, %v2319
        %v2863 = vpack.c.bf16 %v2379, %v2377
        %v2864 = vpack.c.bf16 %v2326, %v2324
        %v2865 = vpack.c.bf16 %v2384, %v2382
        %v2866 = vpack.c.bf16 %v2427, %v2425
        %v2867 = vpack.c.bf16 %v2485, %v2483
        %v2868 = vpack.c.bf16 %v2432, %v2430
        %v2869 = vpack.c.bf16 %v2490, %v2488
        %v2870 = vpack.c.bf16 %v2437, %v2435
        %v2871 = vpack.c.bf16 %v2495, %v2493
        %v2872 = vpack.c.bf16 %v2442, %v2440
        %v2873 = vpack.c.bf16 %v2500, %v2498
        %v2874 = vpack.c.bf16 %v2543, %v2541
        %v2875 = vpack.c.bf16 %v2601, %v2599
        %v2876 = vpack.c.bf16 %v2548, %v2546
        %v2877 = vpack.c.bf16 %v2606, %v2604
        %v2878 = vpack.c.bf16 %v2553, %v2551
        %v2879 = vpack.c.bf16 %v2611, %v2609
        %v2880 = vpack.c.bf16 %v2558, %v2556
        %v2881 = vpack.c.bf16 %v2616, %v2614
        %v2882 = vpack.c.bf16 %v2659, %v2657
        %v2883 = vpack.c.bf16 %v2717, %v2715
        %v2884 = vpack.c.bf16 %v2664, %v2662
        %v2885 = vpack.c.bf16 %v2722, %v2720
        %v2886 = vpack.c.bf16 %v2669, %v2667
        %v2887 = vpack.c.bf16 %v2727, %v2725
        %v2888 = vpack.c.bf16 %v2674, %v2672
        %v2889 = vpack.c.bf16 %v2732, %v2730
        %v2890 = vpack.c.bf16 %v2775, %v2773
        %v2891 = vpack.c.bf16 %v2833, %v2831
        %v2892 = vpack.c.bf16 %v2780, %v2778
        %v2893 = vpack.c.bf16 %v2838, %v2836
        %v2894 = vpack.c.bf16 %v2785, %v2783
        %v2895 = vpack.c.bf16 %v2843, %v2841
        %v2896 = vpack.c.bf16 %v2790, %v2788
        %v2897 = vpack.c.bf16 %v2848, %v2846
        %v2898 = vld [vmem:[#allocation9] sm:$0xff]
        %v2899 = vld [vmem:[#allocation9 + $0x8] sm:$0xf]
        %v2900 = vld [vmem:[#allocation9 + $0xc] sm:$0xff]
        %v2901 = vld [vmem:[#allocation9 + $0x14] sm:$0xf]
        %v2902 = vld [vmem:[#allocation9 + $0x18] sm:$0xff]
        %v2903 = vld [vmem:[#allocation9 + $0x20] sm:$0xf]
        %v2904 = vld [vmem:[#allocation9 + $0x24] sm:$0xff]
        %v2905 = vld [vmem:[#allocation9 + $0x2c] sm:$0xf]
        %v2906 = vld [vmem:[#allocation9 + $0x30] sm:$0xff]
        %v2907 = vld [vmem:[#allocation9 + $0x38] sm:$0xf]
        %v2908 = vld [vmem:[#allocation9 + $0x3c] sm:$0xff]
        %v2909 = vld [vmem:[#allocation9 + $0x44] sm:$0xf]
        %v2910 = vld [vmem:[#allocation9 + $0x48] sm:$0xff]
        %v2911 = vld [vmem:[#allocation9 + $0x50] sm:$0xf]
        %v2912 = vld [vmem:[#allocation9 + $0x54] sm:$0xff]
        %v2913 = vld [vmem:[#allocation9 + $0x5c] sm:$0xf]
        %v2930 = vunpack.c.l.b16 %v2898
        %v2931 = vunpack.c.h.b16 %v2898
        %v2932 = vunpack.c.l.b16 %v2899
        %v2933 = vunpack.c.l.b16 %v2900
        %v2934 = vunpack.c.h.b16 %v2900
        %v2935 = vunpack.c.l.b16 %v2901
        %v2936 = vunpack.c.l.b16 %v2902
        %v2937 = vunpack.c.h.b16 %v2902
        %v2938 = vunpack.c.l.b16 %v2903
        %v2939 = vunpack.c.l.b16 %v2904
        %v2940 = vunpack.c.h.b16 %v2904
        %v2941 = vunpack.c.l.b16 %v2905
        %v2942 = vunpack.c.l.b16 %v2906
        %v2943 = vunpack.c.h.b16 %v2906
        %v2944 = vunpack.c.l.b16 %v2907
        %v2945 = vunpack.c.l.b16 %v2908
        %v2946 = vunpack.c.h.b16 %v2908
        %v2947 = vunpack.c.l.b16 %v2909
        %v2948 = vunpack.c.l.b16 %v2910
        %v2949 = vunpack.c.h.b16 %v2910
        %v2950 = vunpack.c.l.b16 %v2911
        %v2951 = vunpack.c.l.b16 %v2912
        %v2952 = vunpack.c.h.b16 %v2912
        %v2953 = vunpack.c.l.b16 %v2913
        %v2954 = vpack.c.b16 %v2933, %v2930
        %v2955 = vpack.c.b16 %v2934, %v2931
        %v2956 = vpack.c.b16 %v2935, %v2932
        %v2957 = vpack.c.b16 %v2939, %v2936
        %v2958 = vpack.c.b16 %v2940, %v2937
        %v2959 = vpack.c.b16 %v2941, %v2938
        %v2960 = vpack.c.b16 %v2945, %v2942
        %v2961 = vpack.c.b16 %v2946, %v2943
        %v2962 = vpack.c.b16 %v2947, %v2944
        %v2963 = vpack.c.b16 %v2951, %v2948
        %v2964 = vpack.c.b16 %v2952, %v2949
        %v2965 = vpack.c.b16 %v2953, %v2950
        %2978 = vmatpush.bf16.msra.mxu0 %v2864
        %2979 = vmatpush.bf16.msra.mxu0 %v2862
        %2980 = vmatpush.bf16.msra.mxu0 %v2860
        %2981 = vmatpush.bf16.msra.mxu0 %v2858
        %2982 = vmatpush.bf16.msra.mxu0 %v2856
        %2983 = vmatpush.bf16.msra.mxu0 %v2854
        %2984 = vmatpush.bf16.msra.mxu0 %v2852
        %2985 = vmatpush.bf16.msra.mxu0 %v2850
        %2986 = vmatmul.bf16.gmra.mxu0 %v2954
        %v2987 = vpop.f32.mrf.mxu0
        %v2988 = vadd.f32 0.0, %v2987
        %v2989 = vpop.f32.mrf.mxu0
        %v2990 = vadd.f32 0.0, %v2989
        %2991 = vmatmul.bf16.gmra.mxu0 %v2957
        %v2992 = vpop.f32.mrf.mxu0
        %v2993 = vadd.f32 0.0, %v2992
        %v2994 = vpop.f32.mrf.mxu0
        %v2995 = vadd.f32 0.0, %v2994
        %2996 = vmatmul.bf16.gmra.mxu0 %v2960
        %v2997 = vpop.f32.mrf.mxu0
        %v2998 = vadd.f32 0.0, %v2997
        %v2999 = vpop.f32.mrf.mxu0
        %v3000 = vadd.f32 0.0, %v2999
        %3001 = vmatmul.bf16.gmra.mxu0 %v2963
        %v3002 = vpop.f32.mrf.mxu0
        %v3003 = vadd.f32 0.0, %v3002
        %v3004 = vpop.f32.mrf.mxu0
        %v3005 = vadd.f32 0.0, %v3004
        %3006 = vdwg.mxu0
        %3007 = vmatpush.bf16.msra.mxu0 %v2880
        %3008 = vmatpush.bf16.msra.mxu0 %v2878
        %3009 = vmatpush.bf16.msra.mxu0 %v2876
        %3010 = vmatpush.bf16.msra.mxu0 %v2874
        %3011 = vmatpush.bf16.msra.mxu0 %v2872
        %3012 = vmatpush.bf16.msra.mxu0 %v2870
        %3013 = vmatpush.bf16.msra.mxu0 %v2868
        %3014 = vmatpush.bf16.msra.mxu0 %v2866
        %3015 = vmatmul.bf16.gmra.mxu0 %v2955
        %v3016 = vpop.f32.mrf.mxu0
        %v3017 = vadd.f32 %v2988, %v3016
        %v3018 = vpop.f32.mrf.mxu0
        %v3019 = vadd.f32 %v2990, %v3018
        %3020 = vmatmul.bf16.gmra.mxu0 %v2958
        %v3021 = vpop.f32.mrf.mxu0
        %v3022 = vadd.f32 %v2993, %v3021
        %v3023 = vpop.f32.mrf.mxu0
        %v3024 = vadd.f32 %v2995, %v3023
        %3025 = vmatmul.bf16.gmra.mxu0 %v2961
        %v3026 = vpop.f32.mrf.mxu0
        %v3027 = vadd.f32 %v2998, %v3026
        %v3028 = vpop.f32.mrf.mxu0
        %v3029 = vadd.f32 %v3000, %v3028
        %3030 = vmatmul.bf16.gmra.mxu0 %v2964
        %v3031 = vpop.f32.mrf.mxu0
        %v3032 = vadd.f32 %v3003, %v3031
        %v3033 = vpop.f32.mrf.mxu0
        %v3034 = vadd.f32 %v3005, %v3033
        %3035 = vdwg.mxu0
        %3036 = vmatpush.bf16.msra.mxu0 %v2896
        %3037 = vmatpush.bf16.msra.mxu0 %v2894
        %3038 = vmatpush.bf16.msra.mxu0 %v2892
        %3039 = vmatpush.bf16.msra.mxu0 %v2890
        %3040 = vmatpush.bf16.msra.mxu0 %v2888
        %3041 = vmatpush.bf16.msra.mxu0 %v2886
        %3042 = vmatpush.bf16.msra.mxu0 %v2884
        %3043 = vmatpush.bf16.msra.mxu0 %v2882
        %3044 = vmatmul.bf16.gmra.mxu0 %v2956
        %v3045 = vpop.f32.mrf.mxu0
        %v3046 = vadd.f32 %v3017, %v3045
        %v3047 = vpop.f32.mrf.mxu0
        %v3048 = vadd.f32 %v3019, %v3047
        %3049 = vmatmul.bf16.gmra.mxu0 %v2959
        %v3050 = vpop.f32.mrf.mxu0
        %v3051 = vadd.f32 %v3022, %v3050
        %v3052 = vpop.f32.mrf.mxu0
        %v3053 = vadd.f32 %v3024, %v3052
        %3054 = vmatmul.bf16.gmra.mxu0 %v2962
        %v3055 = vpop.f32.mrf.mxu0
        %v3056 = vadd.f32 %v3027, %v3055
        %v3057 = vpop.f32.mrf.mxu0
        %v3058 = vadd.f32 %v3029, %v3057
        %3059 = vmatmul.bf16.gmra.mxu0 %v2965
        %v3060 = vpop.f32.mrf.mxu0
        %v3061 = vadd.f32 %v3032, %v3060
        %v3062 = vpop.f32.mrf.mxu0
        %v3063 = vadd.f32 %v3034, %v3062
        %3064 = vdwg.mxu0
        %3065 = vmatpush.bf16.msra.mxu0 %v2865
        %3066 = vmatpush.bf16.msra.mxu0 %v2863
        %3067 = vmatpush.bf16.msra.mxu0 %v2861
        %3068 = vmatpush.bf16.msra.mxu0 %v2859
        %3069 = vmatpush.bf16.msra.mxu0 %v2857
        %3070 = vmatpush.bf16.msra.mxu0 %v2855
        %3071 = vmatpush.bf16.msra.mxu0 %v2853
        %3072 = vmatpush.bf16.msra.mxu0 %v2851
        %3073 = vmatmul.bf16.gmra.mxu0 %v2954
        %v3074 = vpop.f32.mrf.mxu0
        %v3075 = vadd.f32 0.0, %v3074
        %v3076 = vpop.f32.mrf.mxu0
        %v3077 = vadd.f32 0.0, %v3076
        %3078 = vmatmul.bf16.gmra.mxu0 %v2957
        %v3079 = vpop.f32.mrf.mxu0
        %v3080 = vadd.f32 0.0, %v3079
        %v3081 = vpop.f32.mrf.mxu0
        %v3082 = vadd.f32 0.0, %v3081
        %3083 = vmatmul.bf16.gmra.mxu0 %v2960
        %v3084 = vpop.f32.mrf.mxu0
        %v3085 = vadd.f32 0.0, %v3084
        %v3086 = vpop.f32.mrf.mxu0
        %v3087 = vadd.f32 0.0, %v3086
        %3088 = vmatmul.bf16.gmra.mxu0 %v2963
        %v3089 = vpop.f32.mrf.mxu0
        %v3090 = vadd.f32 0.0, %v3089
        %v3091 = vpop.f32.mrf.mxu0
        %v3092 = vadd.f32 0.0, %v3091
        %3093 = vdwg.mxu0
        %3094 = vmatpush.bf16.msra.mxu0 %v2881
        %3095 = vmatpush.bf16.msra.mxu0 %v2879
        %3096 = vmatpush.bf16.msra.mxu0 %v2877
        %3097 = vmatpush.bf16.msra.mxu0 %v2875
        %3098 = vmatpush.bf16.msra.mxu0 %v2873
        %3099 = vmatpush.bf16.msra.mxu0 %v2871
        %3100 = vmatpush.bf16.msra.mxu0 %v2869
        %3101 = vmatpush.bf16.msra.mxu0 %v2867
        %3102 = vmatmul.bf16.gmra.mxu0 %v2955
        %v3103 = vpop.f32.mrf.mxu0
        %v3104 = vadd.f32 %v3075, %v3103
        %v3105 = vpop.f32.mrf.mxu0
        %v3106 = vadd.f32 %v3077, %v3105
        %3107 = vmatmul.bf16.gmra.mxu0 %v2958
        %v3108 = vpop.f32.mrf.mxu0
        %v3109 = vadd.f32 %v3080, %v3108
        %v3110 = vpop.f32.mrf.mxu0
        %v3111 = vadd.f32 %v3082, %v3110
        %3112 = vmatmul.bf16.gmra.mxu0 %v2961
        %v3113 = vpop.f32.mrf.mxu0
        %v3114 = vadd.f32 %v3085, %v3113
        %v3115 = vpop.f32.mrf.mxu0
        %v3116 = vadd.f32 %v3087, %v3115
        %3117 = vmatmul.bf16.gmra.mxu0 %v2964
        %v3118 = vpop.f32.mrf.mxu0
        %v3119 = vadd.f32 %v3090, %v3118
        %v3120 = vpop.f32.mrf.mxu0
        %v3121 = vadd.f32 %v3092, %v3120
        %3122 = vdwg.mxu0
        %3123 = vmatpush.bf16.msra.mxu0 %v2897
        %3124 = vmatpush.bf16.msra.mxu0 %v2895
        %3125 = vmatpush.bf16.msra.mxu0 %v2893
        %3126 = vmatpush.bf16.msra.mxu0 %v2891
        %3127 = vmatpush.bf16.msra.mxu0 %v2889
        %3128 = vmatpush.bf16.msra.mxu0 %v2887
        %3129 = vmatpush.bf16.msra.mxu0 %v2885
        %3130 = vmatpush.bf16.msra.mxu0 %v2883
        %3131 = vmatmul.bf16.gmra.mxu0 %v2956
        %v3132 = vpop.f32.mrf.mxu0
        %v3133 = vadd.f32 %v3104, %v3132
        %v3134 = vpop.f32.mrf.mxu0
        %v3135 = vadd.f32 %v3106, %v3134
        %3136 = vmatmul.bf16.gmra.mxu0 %v2959
        %v3137 = vpop.f32.mrf.mxu0
        %v3138 = vadd.f32 %v3109, %v3137
        %v3139 = vpop.f32.mrf.mxu0
        %v3140 = vadd.f32 %v3111, %v3139
        %3141 = vmatmul.bf16.gmra.mxu0 %v2962
        %v3142 = vpop.f32.mrf.mxu0
        %v3143 = vadd.f32 %v3114, %v3142
        %v3144 = vpop.f32.mrf.mxu0
        %v3145 = vadd.f32 %v3116, %v3144
        %3146 = vmatmul.bf16.gmra.mxu0 %v2965
        %v3147 = vpop.f32.mrf.mxu0
        %v3148 = vadd.f32 %v3119, %v3147
        %v3149 = vpop.f32.mrf.mxu0
        %v3150 = vadd.f32 %v3121, %v3149
        %3151 = vdwg.mxu0
        %v3152 = vadd.f32 %v925, %v3046
        %v3153 = vadd.f32 %v983, %v3133
        %v3154 = vadd.f32 %v927, %v3048
        %v3155 = vadd.f32 %v985, %v3135
        %v3156 = vadd.f32 %v930, %v3051
        %v3157 = vadd.f32 %v988, %v3138
        %v3158 = vadd.f32 %v932, %v3053
        %v3159 = vadd.f32 %v990, %v3140
        %v3160 = vadd.f32 %v935, %v3056
        %v3161 = vadd.f32 %v993, %v3143
        %v3162 = vadd.f32 %v937, %v3058
        %v3163 = vadd.f32 %v995, %v3145
        %v3164 = vadd.f32 %v940, %v3061
        %v3165 = vadd.f32 %v998, %v3148
        %v3166 = vadd.f32 %v942, %v3063
        %v3167 = vadd.f32 %v1000, %v3150
        %v3168 = vadd.f32 %v3152, %v664
        %v3169 = vadd.f32 %v3153, %v665
        %v3170 = vadd.f32 %v3154, %v666
        %v3171 = vadd.f32 %v3155, %v667
        %v3172 = vadd.f32 %v3156, %v668
        %v3173 = vadd.f32 %v3157, %v669
        %v3174 = vadd.f32 %v3158, %v670
        %v3175 = vadd.f32 %v3159, %v671
        %v3176 = vadd.f32 %v3160, %v672
        %v3177 = vadd.f32 %v3161, %v673
        %v3178 = vadd.f32 %v3162, %v674
        %v3179 = vadd.f32 %v3163, %v675
        %v3180 = vadd.f32 %v3164, %v676
        %v3181 = vadd.f32 %v3165, %v677
        %v3182 = vadd.f32 %v3166, %v678
        %v3183 = vadd.f32 %v3167, %v679
        %s3184 = sld [smem:[#allocation2]]
        %vm3185 = vcmp.gt.f32.partialorder %v3168, 0.0
        %vm3186 = vcmp.gt.f32.partialorder %v3169, 0.0
        %vm3187 = vcmp.gt.f32.partialorder %v3170, 0.0
        %vm3188 = vcmp.gt.f32.partialorder %v3171, 0.0
        %vm3189 = vcmp.gt.f32.partialorder %v3172, 0.0
        %vm3190 = vcmp.gt.f32.partialorder %v3173, 0.0
        %vm3191 = vcmp.gt.f32.partialorder %v3174, 0.0
        %vm3192 = vcmp.gt.f32.partialorder %v3175, 0.0
        %vm3193 = vcmp.gt.f32.partialorder %v3176, 0.0
        %vm3194 = vcmp.gt.f32.partialorder %v3177, 0.0
        %vm3195 = vcmp.gt.f32.partialorder %v3178, 0.0
        %vm3196 = vcmp.gt.f32.partialorder %v3179, 0.0
        %vm3197 = vcmp.gt.f32.partialorder %v3180, 0.0
        %vm3198 = vcmp.gt.f32.partialorder %v3181, 0.0
        %vm3199 = vcmp.gt.f32.partialorder %v3182, 0.0
        %vm3200 = vcmp.gt.f32.partialorder %v3183, 0.0
        %v3201 = vstv %s3184
        %v3202 = vmul.f32 %v3201, %v3168
        %v3203 = vmul.f32 %v3201, %v3169
        %v3204 = vmul.f32 %v3201, %v3170
        %v3205 = vmul.f32 %v3201, %v3171
        %v3206 = vmul.f32 %v3201, %v3172
        %v3207 = vmul.f32 %v3201, %v3173
        %v3208 = vmul.f32 %v3201, %v3174
        %v3209 = vmul.f32 %v3201, %v3175
        %v3210 = vmul.f32 %v3201, %v3176
        %v3211 = vmul.f32 %v3201, %v3177
        %v3212 = vmul.f32 %v3201, %v3178
        %v3213 = vmul.f32 %v3201, %v3179
        %v3214 = vmul.f32 %v3201, %v3180
        %v3215 = vmul.f32 %v3201, %v3181
        %v3216 = vmul.f32 %v3201, %v3182
        %v3217 = vmul.f32 %v3201, %v3183
        %v3218 = vsel %vm3185, %v3168, %v3202
        %v3219 = vsel %vm3186, %v3169, %v3203
        %v3220 = vsel %vm3187, %v3170, %v3204
        %v3221 = vsel %vm3188, %v3171, %v3205
        %v3222 = vsel %vm3189, %v3172, %v3206
        %v3223 = vsel %vm3190, %v3173, %v3207
        %v3224 = vsel %vm3191, %v3174, %v3208
        %v3225 = vsel %vm3192, %v3175, %v3209
        %v3226 = vsel %vm3193, %v3176, %v3210
        %v3227 = vsel %vm3194, %v3177, %v3211
        %v3228 = vsel %vm3195, %v3178, %v3212
        %v3229 = vsel %vm3196, %v3179, %v3213
        %v3230 = vsel %vm3197, %v3180, %v3214
        %v3231 = vsel %vm3198, %v3181, %v3215
        %v3232 = vsel %vm3199, %v3182, %v3216
        %v3233 = vsel %vm3200, %v3183, %v3217
        %v3234 = vmul.f32 %v3218, %v3218
        %v3235 = vmul.f32 %v3219, %v3219
        %v3236 = vmul.f32 %v3220, %v3220
        %v3237 = vmul.f32 %v3221, %v3221
        %v3238 = vmul.f32 %v3222, %v3222
        %v3239 = vmul.f32 %v3223, %v3223
        %v3240 = vmul.f32 %v3224, %v3224
        %v3241 = vmul.f32 %v3225, %v3225
        %v3242 = vmul.f32 %v3226, %v3226
        %v3243 = vmul.f32 %v3227, %v3227
        %v3244 = vmul.f32 %v3228, %v3228
        %v3245 = vmul.f32 %v3229, %v3229
        %v3246 = vmul.f32 %v3230, %v3230
        %v3247 = vmul.f32 %v3231, %v3231
        %v3248 = vmul.f32 %v3232, %v3232
        %v3249 = vmul.f32 %v3233, %v3233
        %v3250 = vadd.f32 %v3234, %v3235
        %3251 = vadd.xlane.f32.xlu0 %v3250
        %v3252 = vpop.xlane.xlu0 %3251
        %v3253 = vadd.f32 %v3236, %v3237
        %3254 = vadd.xlane.f32.xlu0 %v3253
        %v3255 = vpop.xlane.xlu0 %3254
        %v3256 = vadd.f32 %v3238, %v3239
        %3257 = vadd.xlane.f32.xlu0 %v3256
        %v3258 = vpop.xlane.xlu0 %3257
        %v3259 = vadd.f32 %v3240, %v3241
        %3260 = vadd.xlane.f32.xlu0 %v3259
        %v3261 = vpop.xlane.xlu0 %3260
        %v3262 = vadd.f32 %v3242, %v3243
        %3263 = vadd.xlane.f32.xlu0 %v3262
        %v3264 = vpop.xlane.xlu0 %3263
        %v3265 = vadd.f32 %v3244, %v3245
        %3266 = vadd.xlane.f32.xlu0 %v3265
        %v3267 = vpop.xlane.xlu0 %3266
        %v3268 = vadd.f32 %v3246, %v3247
        %3269 = vadd.xlane.f32.xlu0 %v3268
        %v3270 = vpop.xlane.xlu0 %3269
        %v3271 = vadd.f32 %v3248, %v3249
        %3272 = vadd.xlane.f32.xlu0 %v3271
        %v3273 = vpop.xlane.xlu0 %3272
        %v3274 = vmax.f32 %v3252, 1e-24
        %v3275 = vmax.f32 %v3255, 1e-24
        %v3276 = vmax.f32 %v3258, 1e-24
        %v3277 = vmax.f32 %v3261, 1e-24
        %v3278 = vmax.f32 %v3264, 1e-24
        %v3279 = vmax.f32 %v3267, 1e-24
        %v3280 = vmax.f32 %v3270, 1e-24
        %v3281 = vmax.f32 %v3273, 1e-24
        %v3282 = vrsqrt.pop %v3274
        %v3283 = vmul.f32 %v3282, %v3274
        %v3284 = vmul.f32 %v3283, %v3282
        %v3285 = vmul.f32 0.5, %v3284
        %v3286 = vsub.f32 1.5, %v3285
        %v3287 = vmul.f32 %v3282, %v3286
        %vm3288 = vweird.f32 %v3274
        %vm3289 = vweird.f32 %v3282
        %vm3290 = vmor %vm3288, %vm3289
        %v3291 = vsel %vm3290, %v3282, %v3287
        %v3292 = vrsqrt.pop %v3275
        %v3293 = vmul.f32 %v3292, %v3275
        %v3294 = vmul.f32 %v3293, %v3292
        %v3295 = vmul.f32 0.5, %v3294
        %v3296 = vsub.f32 1.5, %v3295
        %v3297 = vmul.f32 %v3292, %v3296
        %vm3298 = vweird.f32 %v3275
        %vm3299 = vweird.f32 %v3292
        %vm3300 = vmor %vm3298, %vm3299
        %v3301 = vsel %vm3300, %v3292, %v3297
        %v3302 = vrsqrt.pop %v3276
        %v3303 = vmul.f32 %v3302, %v3276
        %v3304 = vmul.f32 %v3303, %v3302
        %v3305 = vmul.f32 0.5, %v3304
        %v3306 = vsub.f32 1.5, %v3305
        %v3307 = vmul.f32 %v3302, %v3306
        %vm3308 = vweird.f32 %v3276
        %vm3309 = vweird.f32 %v3302
        %vm3310 = vmor %vm3308, %vm3309
        %v3311 = vsel %vm3310, %v3302, %v3307
        %v3312 = vrsqrt.pop %v3277
        %v3313 = vmul.f32 %v3312, %v3277
        %v3314 = vmul.f32 %v3313, %v3312
        %v3315 = vmul.f32 0.5, %v3314
        %v3316 = vsub.f32 1.5, %v3315
        %v3317 = vmul.f32 %v3312, %v3316
        %vm3318 = vweird.f32 %v3277
        %vm3319 = vweird.f32 %v3312
        %vm3320 = vmor %vm3318, %vm3319
        %v3321 = vsel %vm3320, %v3312, %v3317
        %v3322 = vrsqrt.pop %v3278
        %v3323 = vmul.f32 %v3322, %v3278
        %v3324 = vmul.f32 %v3323, %v3322
        %v3325 = vmul.f32 0.5, %v3324
        %v3326 = vsub.f32 1.5, %v3325
        %v3327 = vmul.f32 %v3322, %v3326
        %vm3328 = vweird.f32 %v3278
        %vm3329 = vweird.f32 %v3322
        %vm3330 = vmor %vm3328, %vm3329
        %v3331 = vsel %vm3330, %v3322, %v3327
        %v3332 = vrsqrt.pop %v3279
        %v3333 = vmul.f32 %v3332, %v3279
        %v3334 = vmul.f32 %v3333, %v3332
        %v3335 = vmul.f32 0.5, %v3334
        %v3336 = vsub.f32 1.5, %v3335
        %v3337 = vmul.f32 %v3332, %v3336
        %vm3338 = vweird.f32 %v3279
        %vm3339 = vweird.f32 %v3332
        %vm3340 = vmor %vm3338, %vm3339
        %v3341 = vsel %vm3340, %v3332, %v3337
        %v3342 = vrsqrt.pop %v3280
        %v3343 = vmul.f32 %v3342, %v3280
        %v3344 = vmul.f32 %v3343, %v3342
        %v3345 = vmul.f32 0.5, %v3344
        %v3346 = vsub.f32 1.5, %v3345
        %v3347 = vmul.f32 %v3342, %v3346
        %vm3348 = vweird.f32 %v3280
        %vm3349 = vweird.f32 %v3342
        %vm3350 = vmor %vm3348, %vm3349
        %v3351 = vsel %vm3350, %v3342, %v3347
        %v3352 = vrsqrt.pop %v3281
        %v3353 = vmul.f32 %v3352, %v3281
        %v3354 = vmul.f32 %v3353, %v3352
        %v3355 = vmul.f32 0.5, %v3354
        %v3356 = vsub.f32 1.5, %v3355
        %v3357 = vmul.f32 %v3352, %v3356
        %vm3358 = vweird.f32 %v3281
        %vm3359 = vweird.f32 %v3352
        %vm3360 = vmor %vm3358, %vm3359
        %v3361 = vsel %vm3360, %v3352, %v3357
        %v3362 = vmul.f32 %v3218, %v3291
        %v3363 = vmul.f32 %v3219, %v3291
        %v3364 = vmul.f32 %v3220, %v3301
        %v3365 = vmul.f32 %v3221, %v3301
        %v3366 = vmul.f32 %v3222, %v3311
        %v3367 = vmul.f32 %v3223, %v3311
        %v3368 = vmul.f32 %v3224, %v3321
        %v3369 = vmul.f32 %v3225, %v3321
        %v3370 = vmul.f32 %v3226, %v3331
        %v3371 = vmul.f32 %v3227, %v3331
        %v3372 = vmul.f32 %v3228, %v3341
        %v3373 = vmul.f32 %v3229, %v3341
        %v3374 = vmul.f32 %v3230, %v3351
        %v3375 = vmul.f32 %v3231, %v3351
        %v3376 = vmul.f32 %v3232, %v3361
        %v3377 = vmul.f32 %v3233, %v3361
        %3378 = vst [vmem:[#allocation14] sm:$0xff] %v3362
        %3379 = vst [vmem:[#allocation14 + $0x8] sm:$0xff] %v3363
        %3380 = vst [vmem:[#allocation14 + $0x10] sm:$0xff] %v3364
        %3381 = vst [vmem:[#allocation14 + $0x18] sm:$0xff] %v3365
        %3382 = vst [vmem:[#allocation14 + $0x20] sm:$0xff] %v3366
        %3383 = vst [vmem:[#allocation14 + $0x28] sm:$0xff] %v3367
        %3384 = vst [vmem:[#allocation14 + $0x30] sm:$0xff] %v3368
        %3385 = vst [vmem:[#allocation14 + $0x38] sm:$0xff] %v3369
        %3386 = vst [vmem:[#allocation14 + $0x40] sm:$0xff] %v3370
        %3387 = vst [vmem:[#allocation14 + $0x48] sm:$0xff] %v3371
        %3388 = vst [vmem:[#allocation14 + $0x50] sm:$0xff] %v3372
        %3389 = vst [vmem:[#allocation14 + $0x58] sm:$0xff] %v3373
        %3390 = vst [vmem:[#allocation14 + $0x60] sm:$0xff] %v3374
        %3391 = vst [vmem:[#allocation14 + $0x68] sm:$0xff] %v3375
        %3392 = vst [vmem:[#allocation14 + $0x70] sm:$0xff] %v3376
        %3393 = vst [vmem:[#allocation14 + $0x78] sm:$0xff] %v3377
        // Predicated region
        $region85: #{tpu_custom_call.1} parent=51 // pred_check
          %p3394 = pneg %p220
        $region86: #{tpu_custom_call.1} parent=51 // pred_check_branch
          %3396 = sbr.rel (%p3394) target = $region88
        $region87: #{tpu_custom_call.1} parent=51 // pred_region
          %3398 = vsyncadd [#allocation5], 0
          %s3399 = sshll.u32 [#allocation14], 4
          %s3400 = int_to_ptr.vmem [resolvable:$true] %s3399
          %s3401 = sshll.u32 %s8, 4
          %s3402 = int_to_ptr.hbm [resolvable:$true] %s3401
          %3407 = dma.vmem_to_hbm [thread:$0]  %s3400, 2048, %s3402, [#allocation5], 256, 256, 16
        $region88: #{tpu_custom_call.1} parent=51 // pred_fallthru
          _
        // Predicated region
        $region89: #{tpu_custom_call.1} parent=51 // pred_check
          %p3408 = pneg %p220
        $region90: #{tpu_custom_call.1} parent=51 // pred_check_branch
          %3410 = sbr.rel (%p3408) target = $region92
        $region91: #{tpu_custom_call.1} parent=51 // pred_region
          %3412 = dma.done [#allocation5], 2048
        $region92: #{tpu_custom_call.1} parent=51 // pred_fallthru
          _
      $region52: #{tpu_custom_call.1} parent=5 // pred_fallthru
        _
      %p3413 = scmp.le.s32.totalorder 2, %s19
      // Predicated region
      $region93: #{tpu_custom_call.1} parent=5 // pred_check
        %p3414 = pneg %p3413
      $region94: #{tpu_custom_call.1} parent=5 // pred_check_branch
        %3416 = sbr.rel (%p3414) target = $region96
      $region95: #{tpu_custom_call.1} parent=5 // pred_region
        %s3417 = ssub.s32 %s19, 2
      $region96: #{tpu_custom_call.1} parent=5 // pred_fallthru
        _
    $region6: #{tpu_custom_call.1} parent=1 // loop_footer
      %s23 = sadd.s32 1, %s19
    $region7: #{tpu_custom_call.1} parent=1 // loop_footer_branch
      %18 = sbr.rel target = $region3
    $region8: #{tpu_custom_call.1} parent=1 // loop_exit
      _
    %3418 = vsyncpa [#allocation4], 1
    %s3419 = scalar_lea.sflag [#allocation4], 1
    %3420 = vsyncpa %s3419, 1
    %3421 = vsyncpa [#allocation7], 1
    %3422 = vsyncpa [#allocation10], 1
    %3423 = vsyncpa [#allocation5], 1
    %s3424 = scalar_lea.sflag [#allocation5], 1
    %3425 = vsyncpa %s3424, 1

</llo_original>
